<compile_context>
chip_gen: v7x
topology: tpu7x:2x2x1
jax: 0.10.0
libtpu: 0.0.40
codegen_flags: <defaults>
</compile_context>

<pallas_src>
import jax
import jax.numpy as jnp
import numpy as np
from jax import lax
from jax.experimental import pallas as pl
from jax.experimental.pallas import tpu as pltpu


_TN = (((0,), (0,)), ((), ()))   # contract dim 0 of both operands: A^T @ B on the MXU


def _pt_last_kernel(x_ref, wcc_ref, wqv_ref, bias_ref, out_ref):
    # x_ref block:   (bpb, C, N)            activations, f32
    # wcc_ref:       (6, C, C)              [conv1, conv2, trans1..4] (BN folded), bf16
    # wqv_ref:       (4, C//4 + C, C)       fused [q(/k); v] weights, bf16
    # bias_ref:      (10, C, 1)             [bn1, bn2, v bias x4, folded trans bias x4], f32
    # out_ref block: (bpb, 4, C, N)
    f32, bf16 = jnp.float32, jnp.bfloat16
    bpb, C, N = x_ref.shape
    dq = wqv_ref.shape[1] - C                # == C // 4

    def mm(w, a):                            # bf16 MXU operands, f32 accumulation
        return jnp.dot(w.astype(bf16), a.astype(bf16), preferred_element_type=f32)

    # Fold this block's batch elements onto the lane axis: (C, bpb*N) activation slab
    # so every shared-weight matmul runs with bpb*N lanes (256 on v5e/v6e).
    if bpb == 1:
        h = x_ref[0]
    else:
        h = jnp.concatenate([x_ref[b] for b in range(bpb)], axis=-1)

    # conv1 + bn1 + relu, conv2 + bn2 + relu  (bn scale folded into w, shift into b)
    h = jnp.maximum(mm(wcc_ref[0], h) + bias_ref[0], 0.0)        # (C, bpb*N)
    h = jnp.maximum(mm(wcc_ref[1], h) + bias_ref[1], 0.0)        # (C, bpb*N)

    # 4 stacked SA layers, statically unrolled; each writes its own lane-dense slab.
    for i in range(4):
        # fused q/k + v projection (q_conv and k_conv share weights -> q == k)
        qv = mm(wqv_ref[i], h)                                   # (C//4 + C, bpb*N)
        q_all = qv[:dq]
        v_all = qv[dq:] + bias_ref[2 + i]

        xr_parts = []
        for b in range(bpb):                                     # attention is per batch element
            q = q_all[:, b * N:(b + 1) * N].astype(bf16)         # (C//4, N)
            v = v_all[:, b * N:(b + 1) * N]                      # (C, N)
            # energy[n, m] = sum_d q[d, n] * q[d, m]  (torch: bmm(x_q, x_k)); issued as
            # a transposed-LHS dot_general so no q.T is ever materialised.
            energy = lax.dot_general(q, q, _TN, preferred_element_type=f32)   # (N, N)
            energy = energy - jnp.max(energy, axis=-1, keepdims=True)
            e = jnp.exp(energy)
            # Exact reciprocal for the softmax row normalisation (its error compounds
            # across the 4 residual layers); the eps-guarded column normalisation keeps
            # the cheap approximate EUP reciprocal.
            inv_row = 1.0 / jnp.sum(e, axis=-1, keepdims=True)   # (N, 1)
            p = e * inv_row                                      # softmax(dim=-1), f32
            # torch: attention / (1e-9 + attention.sum(dim=1)); the column scaling is
            # folded onto the (C, N) matmul result instead of a second (N, N) pass.
            inv_col = pl.reciprocal(1e-9 + jnp.sum(p, axis=0, keepdims=True),
                                    approx=True)                 # (1, N)
            # x_r[c, m] = sum_n v[c, n] * attn[n, m]   (torch: bmm(x_v, attention))
            xr_parts.append(mm(v, p) * inv_col)                  # (C, N)
            # TODO(synk): the (N,N) row-scale multiply + column reduce above could be
            # folded into v / moved onto the MXU (inv_row^T @ e matvec), but that needs
            # a (N,1)->(1,N) vector relayout and an M=1 matmul whose lowering is less
            # battle-tested; worth <1% at N=128, so the proven path is kept.
        x_r = xr_parts[0] if bpb == 1 else jnp.concatenate(xr_parts, axis=-1)

        # relu(after_norm(trans_conv(h - x_r)));  after_norm folded into wt/bt
        t = mm(wcc_ref[2 + i], h - x_r) + bias_ref[6 + i]        # (C, bpb*N)
        h = h + jnp.maximum(t, 0.0)
        for b in range(bpb):
            out_ref[b, i] = h[:, b * N:(b + 1) * N].astype(out_ref.dtype)


def _batches_per_block(batch):
    """2 on single-TC chips (v5e/v6e: fold batch onto lanes), 1 elsewhere (v7x/other:
    keep grid=(B,) so the "parallel" batch axis is megacore-sharded across TCs)."""
    if batch % 2 != 0:
        return 1
    try:
        kind = jax.devices()[0].device_kind.lower()
    except Exception:
        kind = ""
    single_tc = any(s in kind for s in
                    ("v5e", "v5 lite", "v5lite", "v6e", "v6 lite", "v6lite"))
    return 2 if single_tc else 1


def point_transformer_last(x_bcn, params, batches_per_block=None):
    """x_bcn: (B, C, N) float32 (PyTorch layout).  Returns (B, 4*C, N) float32."""
    B, C, N = x_bcn.shape
    bpb = _batches_per_block(B) if batches_per_block is None else batches_per_block
    assert B % bpb == 0, (B, bpb)
    out = pl.pallas_call(
        _pt_last_kernel,
        out_shape=jax.ShapeDtypeStruct((B, 4, C, N), jnp.float32),
        grid=(B // bpb,),
        in_specs=[
            pl.BlockSpec((bpb, C, N), lambda g: (g, 0, 0)),              # activations
            pl.BlockSpec(params["wcc"].shape, lambda g: (0, 0, 0)),      # (6, C, C) bf16
            pl.BlockSpec(params["wqv"].shape, lambda g: (0, 0, 0)),      # (4, C//4+C, C) bf16
            pl.BlockSpec(params["bias"].shape, lambda g: (0, 0, 0)),     # (10, C, 1) f32
        ],
        out_specs=pl.BlockSpec((bpb, 4, C, N), lambda g: (g, 0, 0, 0)),
        compiler_params=pltpu.CompilerParams(dimension_semantics=("parallel",)),
    )(x_bcn, params["wcc"], params["wqv"], params["bias"])
    # (B, 4, C, N) -> (B, 4C, N) is a pure reshape == torch.cat((x1..x4), dim=1)
    return out.reshape(B, 4 * C, N)


def fold_params(raw, weight_dtype=jnp.bfloat16):
    """Fold inference BatchNorm into the adjacent 1x1 convs and pack for the kernel.

    raw holds PyTorch-layout tensors: conv weights (C_out, C_in) (kernel-size-1
    squeezed), conv biases (C,), and per-BN (scale, shift) with
    scale = gamma/sqrt(var+eps), shift = beta - mean*scale.
    """
    w1 = raw["s1"][:, None] * raw["w1"]                  # bn1 scale into conv1 rows
    w2 = raw["s2"][:, None] * raw["w2"]                  # bn2 scale into conv2 rows
    wt = raw["sbn"][..., None] * raw["wt"]               # after_norm scale into trans_conv
    wcc = jnp.concatenate([w1[None], w2[None], wt], axis=0).astype(weight_dtype)  # (6, C, C)
    wqv = jnp.concatenate([raw["wq"], raw["wv"]], axis=1).astype(weight_dtype)    # (4, C//4+C, C)
    bt = raw["sbn"] * raw["bt"] + raw["bbn"]             # folded trans_conv + after_norm bias
    bias = jnp.concatenate([raw["b1"][None], raw["b2"][None], raw["bv"], bt],
                           axis=0)[..., None].astype(jnp.float32)                 # (10, C, 1)
    return {"wcc": wcc, "wqv": wqv, "bias": bias}


# ------------- plain-JAX reference (PyTorch op order, folded BN) for verification -------------
def _reference(x, p):
    """Mirrors Point_Transformer_Last.forward with the kernel's precision policy
    (bf16 matmul operands, f32 accumulation; f32 softmax/affine).
    TODO(synk): validates kernel plumbing, not parity against a full-f32 torch run."""
    bf16, f32 = jnp.bfloat16, jnp.float32
    C = x.shape[1]
    dq = C // 4
    wcc, wqv, bias = p["wcc"], p["wqv"], p["bias"]

    def conv(w, a, b=None):                       # w: (Cout, Cin), a: (B, Cin, N)
        y = jnp.einsum("oc,bcn->bon", w.astype(bf16), a.astype(bf16),
                       preferred_element_type=f32)
        return y if b is None else y + b[None]    # b: (Cout, 1)

    h = jax.nn.relu(conv(wcc[0], x, bias[0]))
    h = jax.nn.relu(conv(wcc[1], h, bias[1]))
    outs = []
    for i in range(4):
        q = conv(wqv[i, :dq], h)                                   # (B, C/4, N), == k
        v = conv(wqv[i, dq:], h, bias[2 + i])                      # (B, C, N)
        energy = jnp.einsum("bdn,bdm->bnm", q.astype(bf16), q.astype(bf16),
                            preferred_element_type=f32)            # bmm(x_q, x_k)
        attn = jax.nn.softmax(energy, axis=-1)
        attn = attn / (1e-9 + jnp.sum(attn, axis=1, keepdims=True))
        x_r = jnp.einsum("bcn,bnm->bcm", v.astype(bf16), attn.astype(bf16),
                         preferred_element_type=f32)               # bmm(x_v, attention)
        t = conv(wcc[2 + i], h - x_r, bias[6 + i])
        h = h + jax.nn.relu(t)
        outs.append(h)
    return jnp.concatenate(outs, axis=1)


if __name__ == "__main__":
    B, C, N = 2, 64, 128          # channels=64 (so C//4 = 16), N=128 points
    key = jax.random.PRNGKey(0)
    keys = iter(jax.random.split(key, 64))

    def nrm(shape, scale=0.1):
        return scale * jax.random.normal(next(keys), shape, dtype=jnp.float32)

    def bn_affine(c):
        # deterministic "running stats" folded to (scale, shift)
        gamma = 1.0 + nrm((c,))
        beta = nrm((c,))
        mean = nrm((c,))
        var = 1.0 + 0.1 * jax.random.uniform(next(keys), (c,), dtype=jnp.float32)
        scale = gamma / jnp.sqrt(var + 1e-5)
        shift = beta - mean * scale
        return scale, shift

    raw = {"w1": nrm((C, C))}                   # conv1.weight (Cout, Cin), no bias
    raw["s1"], raw["b1"] = bn_affine(C)
    raw["w2"] = nrm((C, C))                     # conv2.weight
    raw["s2"], raw["b2"] = bn_affine(C)

    wq, wv, bv, wt, bt, sbn, bbn = [], [], [], [], [], [], []
    for _ in range(4):                          # sa1..sa4
        wq.append(nrm((C // 4, C)))             # shared q/k conv weight (Cout, Cin)
        wv.append(nrm((C, C)))                  # v_conv weight
        bv.append(nrm((C,)))                    # v_conv bias
        wt.append(nrm((C, C)))                  # trans_conv weight
        bt.append(nrm((C,)))                    # trans_conv bias
        s, b = bn_affine(C)                     # after_norm
        sbn.append(s); bbn.append(b)
    raw["wq"] = jnp.stack(wq); raw["wv"] = jnp.stack(wv); raw["bv"] = jnp.stack(bv)
    raw["wt"] = jnp.stack(wt); raw["bt"] = jnp.stack(bt)
    raw["sbn"] = jnp.stack(sbn); raw["bbn"] = jnp.stack(bbn)

    params = fold_params(raw)
    x = jax.random.normal(next(keys), (B, C, N), dtype=jnp.float32)   # PyTorch layout (B, C, N)

    out = jax.block_until_ready(point_transformer_last(x, params))
    ref = jax.block_until_ready(_reference(x, params))

    assert out.shape == (B, 4 * C, N), out.shape
    # Tolerance sized for the intentional numerics: bf16 matmul operands (f32
    # accumulation) plus the approximate EUP reciprocal in the column normalisation.
    np.testing.assert_allclose(np.asarray(out), np.asarray(ref), atol=2e-2, rtol=2e-2)
    print("KERNEL_OK")
</pallas_src>

<mosaic_0001>
module attributes {stable_mosaic.version = 11 : i64} {
  func.func @_pt_last_kernel(%arg0: i32, %arg1: memref<1x64x128xf32, #tpu.memory_space<vmem>>, %arg2: memref<6x64x64xbf16, #tpu.memory_space<vmem>>, %arg3: memref<4x80x64xbf16, #tpu.memory_space<vmem>>, %arg4: memref<10x64x1xf32, #tpu.memory_space<vmem>>, %arg5: memref<1x4x64x128xf32, #tpu.memory_space<vmem>>) attributes {dimension_semantics = [#tpu.dimension_semantics<parallel>], iteration_bounds = array<i64: 2>, scalar_prefetch = 0 : i64, scratch_operands = 0 : i64, tpu.core_type = #tpu.core_type<tc>, window_params = [{transform_indices = @transform_0, window_bounds = array<i64: 1, 64, 128>}, {pipeline_mode = #tpu.pipeline_mode<synchronous>, transform_indices = @transform_1, window_bounds = array<i64: 6, 64, 64>}, {pipeline_mode = #tpu.pipeline_mode<synchronous>, transform_indices = @transform_2, window_bounds = array<i64: 4, 80, 64>}, {pipeline_mode = #tpu.pipeline_mode<synchronous>, transform_indices = @transform_3, window_bounds = array<i64: 10, 64, 1>}, {transform_indices = @transform_4, window_bounds = array<i64: 1, 4, 64, 128>}]} {
    %c0 = arith.constant 0 : index
    %c0_0 = arith.constant 0 : index
    %c0_1 = arith.constant 0 : index
    %0 = vector.load %arg1[%c0, %c0_0, %c0_1] : memref<1x64x128xf32, #tpu.memory_space<vmem>>, vector<1x64x128xf32>
    %1 = vector.shape_cast %0 : vector<1x64x128xf32> to vector<64x128xf32>
    %c0_2 = arith.constant 0 : index
    %c0_3 = arith.constant 0 : index
    %c0_4 = arith.constant 0 : index
    %2 = vector.load %arg2[%c0_2, %c0_3, %c0_4] : memref<6x64x64xbf16, #tpu.memory_space<vmem>>, vector<1x64x64xbf16>
    %3 = vector.shape_cast %2 : vector<1x64x64xbf16> to vector<64x64xbf16>
    %4 = arith.truncf %1 : vector<64x128xf32> to vector<64x128xbf16>
    %cst = arith.constant dense<0.000000e+00> : vector<64x128xf32>
    %5 = tpu.matmul %3, %4, %cst {dimension_numbers = #tpu.dot_dimension_numbers<[1], [0], [0], [1], [0, 0, 1, 1], [], []>} : vector<64x64xbf16>, vector<64x128xbf16>, vector<64x128xf32> -> vector<64x128xf32>
    %c0_5 = arith.constant 0 : index
    %c0_6 = arith.constant 0 : index
    %c0_7 = arith.constant 0 : index
    %6 = vector.load %arg4[%c0_5, %c0_6, %c0_7] : memref<10x64x1xf32, #tpu.memory_space<vmem>>, vector<1x64x1xf32>
    %7 = vector.shape_cast %6 : vector<1x64x1xf32> to vector<64x1xf32>
    %8 = vector.broadcast %7 : vector<64x1xf32> to vector<64x128xf32>
    %9 = arith.addf %5, %8 : vector<64x128xf32>
    %cst_8 = arith.constant 0.000000e+00 : f32
    %10 = vector.broadcast %cst_8 : f32 to vector<64x128xf32>
    %11 = arith.maximumf %9, %10 : vector<64x128xf32>
    %c1 = arith.constant 1 : index
    %c0_9 = arith.constant 0 : index
    %c0_10 = arith.constant 0 : index
    %12 = vector.load %arg2[%c1, %c0_9, %c0_10] : memref<6x64x64xbf16, #tpu.memory_space<vmem>>, vector<1x64x64xbf16>
    %13 = vector.shape_cast %12 : vector<1x64x64xbf16> to vector<64x64xbf16>
    %14 = arith.truncf %11 : vector<64x128xf32> to vector<64x128xbf16>
    %cst_11 = arith.constant dense<0.000000e+00> : vector<64x128xf32>
    %15 = tpu.matmul %13, %14, %cst_11 {dimension_numbers = #tpu.dot_dimension_numbers<[1], [0], [0], [1], [0, 0, 1, 1], [], []>} : vector<64x64xbf16>, vector<64x128xbf16>, vector<64x128xf32> -> vector<64x128xf32>
    %c1_12 = arith.constant 1 : index
    %c0_13 = arith.constant 0 : index
    %c0_14 = arith.constant 0 : index
    %16 = vector.load %arg4[%c1_12, %c0_13, %c0_14] : memref<10x64x1xf32, #tpu.memory_space<vmem>>, vector<1x64x1xf32>
    %17 = vector.shape_cast %16 : vector<1x64x1xf32> to vector<64x1xf32>
    %18 = vector.broadcast %17 : vector<64x1xf32> to vector<64x128xf32>
    %19 = arith.addf %15, %18 : vector<64x128xf32>
    %cst_15 = arith.constant 0.000000e+00 : f32
    %20 = vector.broadcast %cst_15 : f32 to vector<64x128xf32>
    %21 = arith.maximumf %19, %20 : vector<64x128xf32>
    %c0_16 = arith.constant 0 : index
    %c0_17 = arith.constant 0 : index
    %c0_18 = arith.constant 0 : index
    %22 = vector.load %arg3[%c0_16, %c0_17, %c0_18] : memref<4x80x64xbf16, #tpu.memory_space<vmem>>, vector<1x80x64xbf16>
    %23 = vector.shape_cast %22 : vector<1x80x64xbf16> to vector<80x64xbf16>
    %24 = arith.truncf %21 : vector<64x128xf32> to vector<64x128xbf16>
    %cst_19 = arith.constant dense<0.000000e+00> : vector<80x128xf32>
    %25 = tpu.matmul %23, %24, %cst_19 {dimension_numbers = #tpu.dot_dimension_numbers<[1], [0], [0], [1], [0, 0, 1, 1], [], []>} : vector<80x64xbf16>, vector<64x128xbf16>, vector<80x128xf32> -> vector<80x128xf32>
    %26 = vector.extract_strided_slice %25 {offsets = [0, 0], sizes = [16, 128], strides = [1, 1]} : vector<80x128xf32> to vector<16x128xf32>
    %27 = vector.extract_strided_slice %25 {offsets = [16, 0], sizes = [64, 128], strides = [1, 1]} : vector<80x128xf32> to vector<64x128xf32>
    %c2 = arith.constant 2 : index
    %c0_20 = arith.constant 0 : index
    %c0_21 = arith.constant 0 : index
    %28 = vector.load %arg4[%c2, %c0_20, %c0_21] : memref<10x64x1xf32, #tpu.memory_space<vmem>>, vector<1x64x1xf32>
    %29 = vector.shape_cast %28 : vector<1x64x1xf32> to vector<64x1xf32>
    %30 = vector.broadcast %29 : vector<64x1xf32> to vector<64x128xf32>
    %31 = arith.addf %27, %30 : vector<64x128xf32>
    %32 = arith.truncf %26 : vector<16x128xf32> to vector<16x128xbf16>
    %cst_22 = arith.constant dense<0.000000e+00> : vector<128x128xf32>
    %33 = tpu.matmul %32, %32, %cst_22 {dimension_numbers = #tpu.dot_dimension_numbers<[0], [0], [1], [1], [0, 1, 1, 1], [], []>} : vector<16x128xbf16>, vector<16x128xbf16>, vector<128x128xf32> -> vector<128x128xf32>
    %cst_23 = arith.constant dense<0xFF800000> : vector<128xf32>
    %34 = vector.multi_reduction <maximumf>, %33, %cst_23 [1] : vector<128x128xf32> to vector<128xf32>
    %35 = vector.shape_cast %34 : vector<128xf32> to vector<128x1xf32>
    %36 = vector.broadcast %35 : vector<128x1xf32> to vector<128x128xf32>
    %37 = arith.subf %33, %36 : vector<128x128xf32>
    %38 = math.exp %37 : vector<128x128xf32>
    %cst_24 = arith.constant dense<0.000000e+00> : vector<128xf32>
    %39 = vector.multi_reduction <add>, %38, %cst_24 [1] : vector<128x128xf32> to vector<128xf32>
    %40 = vector.shape_cast %39 : vector<128xf32> to vector<128x1xf32>
    %cst_25 = arith.constant 1.000000e+00 : f32
    %41 = vector.broadcast %cst_25 : f32 to vector<128x1xf32>
    %42 = arith.divf %41, %40 : vector<128x1xf32>
    %43 = vector.broadcast %42 : vector<128x1xf32> to vector<128x128xf32>
    %44 = arith.mulf %38, %43 : vector<128x128xf32>
    %cst_26 = arith.constant dense<0.000000e+00> : vector<128xf32>
    %45 = vector.multi_reduction <add>, %44, %cst_26 [0] : vector<128x128xf32> to vector<128xf32>
    %46 = vector.shape_cast %45 : vector<128xf32> to vector<1x128xf32>
    %cst_27 = arith.constant 9.99999971E-10 : f32
    %47 = vector.broadcast %cst_27 : f32 to vector<1x128xf32>
    %48 = arith.addf %47, %46 : vector<1x128xf32>
    %49 = tpu.reciprocal %48 {approx = true} : vector<1x128xf32> -> vector<1x128xf32>
    %50 = arith.truncf %31 : vector<64x128xf32> to vector<64x128xbf16>
    %51 = arith.truncf %44 : vector<128x128xf32> to vector<128x128xbf16>
    %cst_28 = arith.constant dense<0.000000e+00> : vector<64x128xf32>
    %52 = tpu.matmul %50, %51, %cst_28 {dimension_numbers = #tpu.dot_dimension_numbers<[1], [0], [0], [1], [0, 0, 1, 1], [], []>} : vector<64x128xbf16>, vector<128x128xbf16>, vector<64x128xf32> -> vector<64x128xf32>
    %53 = vector.broadcast %49 : vector<1x128xf32> to vector<64x128xf32>
    %54 = arith.mulf %52, %53 : vector<64x128xf32>
    %c2_29 = arith.constant 2 : index
    %c0_30 = arith.constant 0 : index
    %c0_31 = arith.constant 0 : index
    %55 = vector.load %arg2[%c2_29, %c0_30, %c0_31] : memref<6x64x64xbf16, #tpu.memory_space<vmem>>, vector<1x64x64xbf16>
    %56 = vector.shape_cast %55 : vector<1x64x64xbf16> to vector<64x64xbf16>
    %57 = arith.subf %21, %54 : vector<64x128xf32>
    %58 = arith.truncf %57 : vector<64x128xf32> to vector<64x128xbf16>
    %cst_32 = arith.constant dense<0.000000e+00> : vector<64x128xf32>
    %59 = tpu.matmul %56, %58, %cst_32 {dimension_numbers = #tpu.dot_dimension_numbers<[1], [0], [0], [1], [0, 0, 1, 1], [], []>} : vector<64x64xbf16>, vector<64x128xbf16>, vector<64x128xf32> -> vector<64x128xf32>
    %c6 = arith.constant 6 : index
    %c0_33 = arith.constant 0 : index
    %c0_34 = arith.constant 0 : index
    %60 = vector.load %arg4[%c6, %c0_33, %c0_34] : memref<10x64x1xf32, #tpu.memory_space<vmem>>, vector<1x64x1xf32>
    %61 = vector.shape_cast %60 : vector<1x64x1xf32> to vector<64x1xf32>
    %62 = vector.broadcast %61 : vector<64x1xf32> to vector<64x128xf32>
    %63 = arith.addf %59, %62 : vector<64x128xf32>
    %cst_35 = arith.constant 0.000000e+00 : f32
    %64 = vector.broadcast %cst_35 : f32 to vector<64x128xf32>
    %65 = arith.maximumf %63, %64 : vector<64x128xf32>
    %66 = arith.addf %21, %65 : vector<64x128xf32>
    %c0_36 = arith.constant 0 : index
    %c0_37 = arith.constant 0 : index
    %c0_38 = arith.constant 0 : index
    %c0_39 = arith.constant 0 : index
    %67 = vector.load %arg5[%c0_36, %c0_37, %c0_38, %c0_39] : memref<1x4x64x128xf32, #tpu.memory_space<vmem>>, vector<1x1x64x128xf32>
    %68 = vector.shape_cast %67 : vector<1x1x64x128xf32> to vector<64x128xf32>
    %69 = vector.shape_cast %66 : vector<64x128xf32> to vector<1x1x64x128xf32>
    tpu.vector_store %arg5[%c0_36, %c0_37, %c0_38, %c0_39], %69 {strides = array<i32>} : memref<1x4x64x128xf32, #tpu.memory_space<vmem>>, vector<1x1x64x128xf32>,
    %c1_40 = arith.constant 1 : index
    %c0_41 = arith.constant 0 : index
    %c0_42 = arith.constant 0 : index
    %70 = vector.load %arg3[%c1_40, %c0_41, %c0_42] : memref<4x80x64xbf16, #tpu.memory_space<vmem>>, vector<1x80x64xbf16>
    %71 = vector.shape_cast %70 : vector<1x80x64xbf16> to vector<80x64xbf16>
    %72 = arith.truncf %66 : vector<64x128xf32> to vector<64x128xbf16>
    %cst_43 = arith.constant dense<0.000000e+00> : vector<80x128xf32>
    %73 = tpu.matmul %71, %72, %cst_43 {dimension_numbers = #tpu.dot_dimension_numbers<[1], [0], [0], [1], [0, 0, 1, 1], [], []>} : vector<80x64xbf16>, vector<64x128xbf16>, vector<80x128xf32> -> vector<80x128xf32>
    %74 = vector.extract_strided_slice %73 {offsets = [0, 0], sizes = [16, 128], strides = [1, 1]} : vector<80x128xf32> to vector<16x128xf32>
    %75 = vector.extract_strided_slice %73 {offsets = [16, 0], sizes = [64, 128], strides = [1, 1]} : vector<80x128xf32> to vector<64x128xf32>
    %c3 = arith.constant 3 : index
    %c0_44 = arith.constant 0 : index
    %c0_45 = arith.constant 0 : index
    %76 = vector.load %arg4[%c3, %c0_44, %c0_45] : memref<10x64x1xf32, #tpu.memory_space<vmem>>, vector<1x64x1xf32>
    %77 = vector.shape_cast %76 : vector<1x64x1xf32> to vector<64x1xf32>
    %78 = vector.broadcast %77 : vector<64x1xf32> to vector<64x128xf32>
    %79 = arith.addf %75, %78 : vector<64x128xf32>
    %80 = arith.truncf %74 : vector<16x128xf32> to vector<16x128xbf16>
    %cst_46 = arith.constant dense<0.000000e+00> : vector<128x128xf32>
    %81 = tpu.matmul %80, %80, %cst_46 {dimension_numbers = #tpu.dot_dimension_numbers<[0], [0], [1], [1], [0, 1, 1, 1], [], []>} : vector<16x128xbf16>, vector<16x128xbf16>, vector<128x128xf32> -> vector<128x128xf32>
    %cst_47 = arith.constant dense<0xFF800000> : vector<128xf32>
    %82 = vector.multi_reduction <maximumf>, %81, %cst_47 [1] : vector<128x128xf32> to vector<128xf32>
    %83 = vector.shape_cast %82 : vector<128xf32> to vector<128x1xf32>
    %84 = vector.broadcast %83 : vector<128x1xf32> to vector<128x128xf32>
    %85 = arith.subf %81, %84 : vector<128x128xf32>
    %86 = math.exp %85 : vector<128x128xf32>
    %cst_48 = arith.constant dense<0.000000e+00> : vector<128xf32>
    %87 = vector.multi_reduction <add>, %86, %cst_48 [1] : vector<128x128xf32> to vector<128xf32>
    %88 = vector.shape_cast %87 : vector<128xf32> to vector<128x1xf32>
    %cst_49 = arith.constant 1.000000e+00 : f32
    %89 = vector.broadcast %cst_49 : f32 to vector<128x1xf32>
    %90 = arith.divf %89, %88 : vector<128x1xf32>
    %91 = vector.broadcast %90 : vector<128x1xf32> to vector<128x128xf32>
    %92 = arith.mulf %86, %91 : vector<128x128xf32>
    %cst_50 = arith.constant dense<0.000000e+00> : vector<128xf32>
    %93 = vector.multi_reduction <add>, %92, %cst_50 [0] : vector<128x128xf32> to vector<128xf32>
    %94 = vector.shape_cast %93 : vector<128xf32> to vector<1x128xf32>
    %cst_51 = arith.constant 9.99999971E-10 : f32
    %95 = vector.broadcast %cst_51 : f32 to vector<1x128xf32>
    %96 = arith.addf %95, %94 : vector<1x128xf32>
    %97 = tpu.reciprocal %96 {approx = true} : vector<1x128xf32> -> vector<1x128xf32>
    %98 = arith.truncf %79 : vector<64x128xf32> to vector<64x128xbf16>
    %99 = arith.truncf %92 : vector<128x128xf32> to vector<128x128xbf16>
    %cst_52 = arith.constant dense<0.000000e+00> : vector<64x128xf32>
    %100 = tpu.matmul %98, %99, %cst_52 {dimension_numbers = #tpu.dot_dimension_numbers<[1], [0], [0], [1], [0, 0, 1, 1], [], []>} : vector<64x128xbf16>, vector<128x128xbf16>, vector<64x128xf32> -> vector<64x128xf32>
    %101 = vector.broadcast %97 : vector<1x128xf32> to vector<64x128xf32>
    %102 = arith.mulf %100, %101 : vector<64x128xf32>
    %c3_53 = arith.constant 3 : index
    %c0_54 = arith.constant 0 : index
    %c0_55 = arith.constant 0 : index
    %103 = vector.load %arg2[%c3_53, %c0_54, %c0_55] : memref<6x64x64xbf16, #tpu.memory_space<vmem>>, vector<1x64x64xbf16>
    %104 = vector.shape_cast %103 : vector<1x64x64xbf16> to vector<64x64xbf16>
    %105 = arith.subf %66, %102 : vector<64x128xf32>
    %106 = arith.truncf %105 : vector<64x128xf32> to vector<64x128xbf16>
    %cst_56 = arith.constant dense<0.000000e+00> : vector<64x128xf32>
    %107 = tpu.matmul %104, %106, %cst_56 {dimension_numbers = #tpu.dot_dimension_numbers<[1], [0], [0], [1], [0, 0, 1, 1], [], []>} : vector<64x64xbf16>, vector<64x128xbf16>, vector<64x128xf32> -> vector<64x128xf32>
    %c7 = arith.constant 7 : index
    %c0_57 = arith.constant 0 : index
    %c0_58 = arith.constant 0 : index
    %108 = vector.load %arg4[%c7, %c0_57, %c0_58] : memref<10x64x1xf32, #tpu.memory_space<vmem>>, vector<1x64x1xf32>
    %109 = vector.shape_cast %108 : vector<1x64x1xf32> to vector<64x1xf32>
    %110 = vector.broadcast %109 : vector<64x1xf32> to vector<64x128xf32>
    %111 = arith.addf %107, %110 : vector<64x128xf32>
    %cst_59 = arith.constant 0.000000e+00 : f32
    %112 = vector.broadcast %cst_59 : f32 to vector<64x128xf32>
    %113 = arith.maximumf %111, %112 : vector<64x128xf32>
    %114 = arith.addf %66, %113 : vector<64x128xf32>
    %c0_60 = arith.constant 0 : index
    %c1_61 = arith.constant 1 : index
    %c0_62 = arith.constant 0 : index
    %c0_63 = arith.constant 0 : index
    %115 = vector.load %arg5[%c0_60, %c1_61, %c0_62, %c0_63] : memref<1x4x64x128xf32, #tpu.memory_space<vmem>>, vector<1x1x64x128xf32>
    %116 = vector.shape_cast %115 : vector<1x1x64x128xf32> to vector<64x128xf32>
    %117 = vector.shape_cast %114 : vector<64x128xf32> to vector<1x1x64x128xf32>
    tpu.vector_store %arg5[%c0_60, %c1_61, %c0_62, %c0_63], %117 {strides = array<i32>} : memref<1x4x64x128xf32, #tpu.memory_space<vmem>>, vector<1x1x64x128xf32>,
    %c2_64 = arith.constant 2 : index
    %c0_65 = arith.constant 0 : index
    %c0_66 = arith.constant 0 : index
    %118 = vector.load %arg3[%c2_64, %c0_65, %c0_66] : memref<4x80x64xbf16, #tpu.memory_space<vmem>>, vector<1x80x64xbf16>
    %119 = vector.shape_cast %118 : vector<1x80x64xbf16> to vector<80x64xbf16>
    %120 = arith.truncf %114 : vector<64x128xf32> to vector<64x128xbf16>
    %cst_67 = arith.constant dense<0.000000e+00> : vector<80x128xf32>
    %121 = tpu.matmul %119, %120, %cst_67 {dimension_numbers = #tpu.dot_dimension_numbers<[1], [0], [0], [1], [0, 0, 1, 1], [], []>} : vector<80x64xbf16>, vector<64x128xbf16>, vector<80x128xf32> -> vector<80x128xf32>
    %122 = vector.extract_strided_slice %121 {offsets = [0, 0], sizes = [16, 128], strides = [1, 1]} : vector<80x128xf32> to vector<16x128xf32>
    %123 = vector.extract_strided_slice %121 {offsets = [16, 0], sizes = [64, 128], strides = [1, 1]} : vector<80x128xf32> to vector<64x128xf32>
    %c4 = arith.constant 4 : index
    %c0_68 = arith.constant 0 : index
    %c0_69 = arith.constant 0 : index
    %124 = vector.load %arg4[%c4, %c0_68, %c0_69] : memref<10x64x1xf32, #tpu.memory_space<vmem>>, vector<1x64x1xf32>
    %125 = vector.shape_cast %124 : vector<1x64x1xf32> to vector<64x1xf32>
    %126 = vector.broadcast %125 : vector<64x1xf32> to vector<64x128xf32>
    %127 = arith.addf %123, %126 : vector<64x128xf32>
    %128 = arith.truncf %122 : vector<16x128xf32> to vector<16x128xbf16>
    %cst_70 = arith.constant dense<0.000000e+00> : vector<128x128xf32>
    %129 = tpu.matmul %128, %128, %cst_70 {dimension_numbers = #tpu.dot_dimension_numbers<[0], [0], [1], [1], [0, 1, 1, 1], [], []>} : vector<16x128xbf16>, vector<16x128xbf16>, vector<128x128xf32> -> vector<128x128xf32>
    %cst_71 = arith.constant dense<0xFF800000> : vector<128xf32>
    %130 = vector.multi_reduction <maximumf>, %129, %cst_71 [1] : vector<128x128xf32> to vector<128xf32>
    %131 = vector.shape_cast %130 : vector<128xf32> to vector<128x1xf32>
    %132 = vector.broadcast %131 : vector<128x1xf32> to vector<128x128xf32>
    %133 = arith.subf %129, %132 : vector<128x128xf32>
    %134 = math.exp %133 : vector<128x128xf32>
    %cst_72 = arith.constant dense<0.000000e+00> : vector<128xf32>
    %135 = vector.multi_reduction <add>, %134, %cst_72 [1] : vector<128x128xf32> to vector<128xf32>
    %136 = vector.shape_cast %135 : vector<128xf32> to vector<128x1xf32>
    %cst_73 = arith.constant 1.000000e+00 : f32
    %137 = vector.broadcast %cst_73 : f32 to vector<128x1xf32>
    %138 = arith.divf %137, %136 : vector<128x1xf32>
    %139 = vector.broadcast %138 : vector<128x1xf32> to vector<128x128xf32>
    %140 = arith.mulf %134, %139 : vector<128x128xf32>
    %cst_74 = arith.constant dense<0.000000e+00> : vector<128xf32>
    %141 = vector.multi_reduction <add>, %140, %cst_74 [0] : vector<128x128xf32> to vector<128xf32>
    %142 = vector.shape_cast %141 : vector<128xf32> to vector<1x128xf32>
    %cst_75 = arith.constant 9.99999971E-10 : f32
    %143 = vector.broadcast %cst_75 : f32 to vector<1x128xf32>
    %144 = arith.addf %143, %142 : vector<1x128xf32>
    %145 = tpu.reciprocal %144 {approx = true} : vector<1x128xf32> -> vector<1x128xf32>
    %146 = arith.truncf %127 : vector<64x128xf32> to vector<64x128xbf16>
    %147 = arith.truncf %140 : vector<128x128xf32> to vector<128x128xbf16>
    %cst_76 = arith.constant dense<0.000000e+00> : vector<64x128xf32>
    %148 = tpu.matmul %146, %147, %cst_76 {dimension_numbers = #tpu.dot_dimension_numbers<[1], [0], [0], [1], [0, 0, 1, 1], [], []>} : vector<64x128xbf16>, vector<128x128xbf16>, vector<64x128xf32> -> vector<64x128xf32>
    %149 = vector.broadcast %145 : vector<1x128xf32> to vector<64x128xf32>
    %150 = arith.mulf %148, %149 : vector<64x128xf32>
    %c4_77 = arith.constant 4 : index
    %c0_78 = arith.constant 0 : index
    %c0_79 = arith.constant 0 : index
    %151 = vector.load %arg2[%c4_77, %c0_78, %c0_79] : memref<6x64x64xbf16, #tpu.memory_space<vmem>>, vector<1x64x64xbf16>
    %152 = vector.shape_cast %151 : vector<1x64x64xbf16> to vector<64x64xbf16>
    %153 = arith.subf %114, %150 : vector<64x128xf32>
    %154 = arith.truncf %153 : vector<64x128xf32> to vector<64x128xbf16>
    %cst_80 = arith.constant dense<0.000000e+00> : vector<64x128xf32>
    %155 = tpu.matmul %152, %154, %cst_80 {dimension_numbers = #tpu.dot_dimension_numbers<[1], [0], [0], [1], [0, 0, 1, 1], [], []>} : vector<64x64xbf16>, vector<64x128xbf16>, vector<64x128xf32> -> vector<64x128xf32>
    %c8 = arith.constant 8 : index
    %c0_81 = arith.constant 0 : index
    %c0_82 = arith.constant 0 : index
    %156 = vector.load %arg4[%c8, %c0_81, %c0_82] : memref<10x64x1xf32, #tpu.memory_space<vmem>>, vector<1x64x1xf32>
    %157 = vector.shape_cast %156 : vector<1x64x1xf32> to vector<64x1xf32>
    %158 = vector.broadcast %157 : vector<64x1xf32> to vector<64x128xf32>
    %159 = arith.addf %155, %158 : vector<64x128xf32>
    %cst_83 = arith.constant 0.000000e+00 : f32
    %160 = vector.broadcast %cst_83 : f32 to vector<64x128xf32>
    %161 = arith.maximumf %159, %160 : vector<64x128xf32>
    %162 = arith.addf %114, %161 : vector<64x128xf32>
    %c0_84 = arith.constant 0 : index
    %c2_85 = arith.constant 2 : index
    %c0_86 = arith.constant 0 : index
    %c0_87 = arith.constant 0 : index
    %163 = vector.load %arg5[%c0_84, %c2_85, %c0_86, %c0_87] : memref<1x4x64x128xf32, #tpu.memory_space<vmem>>, vector<1x1x64x128xf32>
    %164 = vector.shape_cast %163 : vector<1x1x64x128xf32> to vector<64x128xf32>
    %165 = vector.shape_cast %162 : vector<64x128xf32> to vector<1x1x64x128xf32>
    tpu.vector_store %arg5[%c0_84, %c2_85, %c0_86, %c0_87], %165 {strides = array<i32>} : memref<1x4x64x128xf32, #tpu.memory_space<vmem>>, vector<1x1x64x128xf32>,
    %c3_88 = arith.constant 3 : index
    %c0_89 = arith.constant 0 : index
    %c0_90 = arith.constant 0 : index
    %166 = vector.load %arg3[%c3_88, %c0_89, %c0_90] : memref<4x80x64xbf16, #tpu.memory_space<vmem>>, vector<1x80x64xbf16>
    %167 = vector.shape_cast %166 : vector<1x80x64xbf16> to vector<80x64xbf16>
    %168 = arith.truncf %162 : vector<64x128xf32> to vector<64x128xbf16>
    %cst_91 = arith.constant dense<0.000000e+00> : vector<80x128xf32>
    %169 = tpu.matmul %167, %168, %cst_91 {dimension_numbers = #tpu.dot_dimension_numbers<[1], [0], [0], [1], [0, 0, 1, 1], [], []>} : vector<80x64xbf16>, vector<64x128xbf16>, vector<80x128xf32> -> vector<80x128xf32>
    %170 = vector.extract_strided_slice %169 {offsets = [0, 0], sizes = [16, 128], strides = [1, 1]} : vector<80x128xf32> to vector<16x128xf32>
    %171 = vector.extract_strided_slice %169 {offsets = [16, 0], sizes = [64, 128], strides = [1, 1]} : vector<80x128xf32> to vector<64x128xf32>
    %c5 = arith.constant 5 : index
    %c0_92 = arith.constant 0 : index
    %c0_93 = arith.constant 0 : index
    %172 = vector.load %arg4[%c5, %c0_92, %c0_93] : memref<10x64x1xf32, #tpu.memory_space<vmem>>, vector<1x64x1xf32>
    %173 = vector.shape_cast %172 : vector<1x64x1xf32> to vector<64x1xf32>
    %174 = vector.broadcast %173 : vector<64x1xf32> to vector<64x128xf32>
    %175 = arith.addf %171, %174 : vector<64x128xf32>
    %176 = arith.truncf %170 : vector<16x128xf32> to vector<16x128xbf16>
    %cst_94 = arith.constant dense<0.000000e+00> : vector<128x128xf32>
    %177 = tpu.matmul %176, %176, %cst_94 {dimension_numbers = #tpu.dot_dimension_numbers<[0], [0], [1], [1], [0, 1, 1, 1], [], []>} : vector<16x128xbf16>, vector<16x128xbf16>, vector<128x128xf32> -> vector<128x128xf32>
    %cst_95 = arith.constant dense<0xFF800000> : vector<128xf32>
    %178 = vector.multi_reduction <maximumf>, %177, %cst_95 [1] : vector<128x128xf32> to vector<128xf32>
    %179 = vector.shape_cast %178 : vector<128xf32> to vector<128x1xf32>
    %180 = vector.broadcast %179 : vector<128x1xf32> to vector<128x128xf32>
    %181 = arith.subf %177, %180 : vector<128x128xf32>
    %182 = math.exp %181 : vector<128x128xf32>
    %cst_96 = arith.constant dense<0.000000e+00> : vector<128xf32>
    %183 = vector.multi_reduction <add>, %182, %cst_96 [1] : vector<128x128xf32> to vector<128xf32>
    %184 = vector.shape_cast %183 : vector<128xf32> to vector<128x1xf32>
    %cst_97 = arith.constant 1.000000e+00 : f32
    %185 = vector.broadcast %cst_97 : f32 to vector<128x1xf32>
    %186 = arith.divf %185, %184 : vector<128x1xf32>
    %187 = vector.broadcast %186 : vector<128x1xf32> to vector<128x128xf32>
    %188 = arith.mulf %182, %187 : vector<128x128xf32>
    %cst_98 = arith.constant dense<0.000000e+00> : vector<128xf32>
    %189 = vector.multi_reduction <add>, %188, %cst_98 [0] : vector<128x128xf32> to vector<128xf32>
    %190 = vector.shape_cast %189 : vector<128xf32> to vector<1x128xf32>
    %cst_99 = arith.constant 9.99999971E-10 : f32
    %191 = vector.broadcast %cst_99 : f32 to vector<1x128xf32>
    %192 = arith.addf %191, %190 : vector<1x128xf32>
    %193 = tpu.reciprocal %192 {approx = true} : vector<1x128xf32> -> vector<1x128xf32>
    %194 = arith.truncf %175 : vector<64x128xf32> to vector<64x128xbf16>
    %195 = arith.truncf %188 : vector<128x128xf32> to vector<128x128xbf16>
    %cst_100 = arith.constant dense<0.000000e+00> : vector<64x128xf32>
    %196 = tpu.matmul %194, %195, %cst_100 {dimension_numbers = #tpu.dot_dimension_numbers<[1], [0], [0], [1], [0, 0, 1, 1], [], []>} : vector<64x128xbf16>, vector<128x128xbf16>, vector<64x128xf32> -> vector<64x128xf32>
    %197 = vector.broadcast %193 : vector<1x128xf32> to vector<64x128xf32>
    %198 = arith.mulf %196, %197 : vector<64x128xf32>
    %c5_101 = arith.constant 5 : index
    %c0_102 = arith.constant 0 : index
    %c0_103 = arith.constant 0 : index
    %199 = vector.load %arg2[%c5_101, %c0_102, %c0_103] : memref<6x64x64xbf16, #tpu.memory_space<vmem>>, vector<1x64x64xbf16>
    %200 = vector.shape_cast %199 : vector<1x64x64xbf16> to vector<64x64xbf16>
    %201 = arith.subf %162, %198 : vector<64x128xf32>
    %202 = arith.truncf %201 : vector<64x128xf32> to vector<64x128xbf16>
    %cst_104 = arith.constant dense<0.000000e+00> : vector<64x128xf32>
    %203 = tpu.matmul %200, %202, %cst_104 {dimension_numbers = #tpu.dot_dimension_numbers<[1], [0], [0], [1], [0, 0, 1, 1], [], []>} : vector<64x64xbf16>, vector<64x128xbf16>, vector<64x128xf32> -> vector<64x128xf32>
    %c9 = arith.constant 9 : index
    %c0_105 = arith.constant 0 : index
    %c0_106 = arith.constant 0 : index
    %204 = vector.load %arg4[%c9, %c0_105, %c0_106] : memref<10x64x1xf32, #tpu.memory_space<vmem>>, vector<1x64x1xf32>
    %205 = vector.shape_cast %204 : vector<1x64x1xf32> to vector<64x1xf32>
    %206 = vector.broadcast %205 : vector<64x1xf32> to vector<64x128xf32>
    %207 = arith.addf %203, %206 : vector<64x128xf32>
    %cst_107 = arith.constant 0.000000e+00 : f32
    %208 = vector.broadcast %cst_107 : f32 to vector<64x128xf32>
    %209 = arith.maximumf %207, %208 : vector<64x128xf32>
    %210 = arith.addf %162, %209 : vector<64x128xf32>
    %c0_108 = arith.constant 0 : index
    %c3_109 = arith.constant 3 : index
    %c0_110 = arith.constant 0 : index
    %c0_111 = arith.constant 0 : index
    %211 = vector.load %arg5[%c0_108, %c3_109, %c0_110, %c0_111] : memref<1x4x64x128xf32, #tpu.memory_space<vmem>>, vector<1x1x64x128xf32>
    %212 = vector.shape_cast %211 : vector<1x1x64x128xf32> to vector<64x128xf32>
    %213 = vector.shape_cast %210 : vector<64x128xf32> to vector<1x1x64x128xf32>
    tpu.vector_store %arg5[%c0_108, %c3_109, %c0_110, %c0_111], %213 {strides = array<i32>} : memref<1x4x64x128xf32, #tpu.memory_space<vmem>>, vector<1x1x64x128xf32>,
    return
  }
  func.func @transform_0(%arg0: i32) -> (i32, i32, i32) {
    %c0_i32 = arith.constant 0 : i32
    %c0_i32_0 = arith.constant 0 : i32
    %c0_i32_1 = arith.constant 0 : i32
    return %arg0, %c0_i32, %c0_i32_0 : i32, i32, i32
  }
  func.func @transform_1(%arg0: i32) -> (i32, i32, i32) {
    %c0_i32 = arith.constant 0 : i32
    %c0_i32_0 = arith.constant 0 : i32
    %c0_i32_1 = arith.constant 0 : i32
    %c0_i32_2 = arith.constant 0 : i32
    return %c0_i32, %c0_i32_0, %c0_i32_1 : i32, i32, i32
  }
  func.func @transform_2(%arg0: i32) -> (i32, i32, i32) {
    %c0_i32 = arith.constant 0 : i32
    %c0_i32_0 = arith.constant 0 : i32
    %c0_i32_1 = arith.constant 0 : i32
    %c0_i32_2 = arith.constant 0 : i32
    return %c0_i32, %c0_i32_0, %c0_i32_1 : i32, i32, i32
  }
  func.func @transform_3(%arg0: i32) -> (i32, i32, i32) {
    %c0_i32 = arith.constant 0 : i32
    %c0_i32_0 = arith.constant 0 : i32
    %c0_i32_1 = arith.constant 0 : i32
    %c0_i32_2 = arith.constant 0 : i32
    return %c0_i32, %c0_i32_0, %c0_i32_1 : i32, i32, i32
  }
  func.func @transform_4(%arg0: i32) -> (i32, i32, i32, i32) {
    %c0_i32 = arith.constant 0 : i32
    %c0_i32_0 = arith.constant 0 : i32
    %c0_i32_1 = arith.constant 0 : i32
    %c0_i32_2 = arith.constant 0 : i32
    return %arg0, %c0_i32, %c0_i32_0, %c0_i32_1 : i32, i32, i32, i32
  }
}

</mosaic_0001>

<llo_original>
// kernel: tpu_custom_call.1
$region0: #{tpu_custom_call.1}
  #allocation0 [shape = 'u32[]', space=smem, size = 0x4, offset = 0x4, fixed_abs, tag = 'smem constant byte address 0x4 - core index']
  #allocation1 [shape = 'u32[144,128]{1,0:T(1,128)}', space=vmem, size = 0x12000, scoped, tag = 'internal scratch']
  %s0 = inlined_call_operand.vmem [shape: f32[2,64,128], index: 0, kind: input, shape index: {}]
  %s1 = inlined_call_operand.vmem [shape: bf16[6,64,64], index: 1, kind: input, shape index: {}]
  %s2 = inlined_call_operand.vmem [shape: bf16[4,80,64], index: 2, kind: input, shape index: {}]
  %s3 = inlined_call_operand.vmem [shape: f32[10,64,1], index: 3, kind: input, shape index: {}]
  %s4 = inlined_call_operand.hbm [shape: f32[2,4,64,128], index: 4, kind: output, shape index: {}]
  %s5 = sld [smem:[#allocation0]]
  $region49: #{tpu_custom_call.1} parent=0
    _
  %s7 = ssub.s32 1, %s5
  %s8 = scalar_select 0, %s7, %s5
  $region1: #{tpu_custom_call.1} parent=0
    #allocation2 [shape = 'u8[262144]{0}', space=vmem, size = 0x40000, scoped, tag = 'output window, operand 0']
    #allocation3 [shape = 's32[2]{0}', space=sflag, size = 0x8, scoped, tag = 'scoped memory for tpu_custom_call.1']
    %9 = vsyncpa [#allocation3], 0
    %s10 = scalar_lea.sflag [#allocation3], 1
    %11 = vsyncpa %s10, 0
    loop: start=0, step=1, limit=4
    $region2: #{tpu_custom_call.1} parent=1 // loop_pre_header
      _
    $region3: #{tpu_custom_call.1} parent=1 // loop_header
      %s13 = sphi 0, %s17
      %p14 = scmp.ge.s32.totalorder %s13, 4
      %s23 = sphi 0, %s25
      %s26 = sphi 0, %s23
      %s27 = sphi 0, %s26
      %s43 = sphi 0, %s27
      %s47 = sphi 0, %s47
      %s49 = sphi 0, %s47
      %s50 = sphi 0, %s49
      %s64 = sphi 0, %s50
      %s68 = sphi 0, %s68
      %s70 = sphi 0, %s68
      %s71 = sphi 0, %s70
      %s85 = sphi 0, %s71
      %s89 = sphi 0, %s89
      %s91 = sphi 0, %s89
      %s92 = sphi 0, %s91
      %s106 = sphi 0, %s92
      %s112 = sphi 0, %s114
      %s115 = sphi 0, %s112
      %s116 = sphi 0, %s115
      %s132 = sphi 0, %s116
    $region4: #{tpu_custom_call.1} parent=1 // loop_header_branch
      %16 = sbr.rel (%p14) target = $region8
    $region5: #{tpu_custom_call.1} parent=1 // loop_body
      %s18 = ssub.s32 %s13, 1
      %s19 = ssub.s32 %s13, 2
      %s20 = sadd.s32 %s13, 1
      %s21 = ssub.s32 %s13, %s20
      %p22 = scmp.eq.s32.totalorder %s21, 0
      %s24 = sadd.s32 %s23, 1
      %s25 = scalar_select %p22, %s23, %s24
      %p28 = pneg %p22
      %p29 = scmp.eq.s32.totalorder %s13, 1
      %p30 = por %p28, %p29
      %p31 = scmp.ne.s32.totalorder %s23, %s26
      %p32 = scmp.eq.s32.totalorder %s13, 0
      %p33 = por %p31, %p32
      %p34 = scmp.ne.s32.totalorder %s23, %s26
      %p35 = scmp.eq.s32.totalorder %s18, 1
      %p36 = por %p34, %p35
      %p37 = scmp.ne.s32.totalorder %s26, %s27
      %p38 = scmp.eq.s32.totalorder %s18, 0
      %p39 = por %p37, %p38
      %p40 = scmp.ne.s32.totalorder %s26, %s27
      %p41 = scmp.eq.s32.totalorder %s19, 1
      %p42 = por %p40, %p41
      %p44 = scmp.ne.s32.totalorder %s27, %s43
      %p45 = scmp.eq.s32.totalorder %s19, 0
      %p46 = por %p44, %p45
      %s48 = sadd.s32 %s47, 1
      %p51 = scmp.eq.s32.totalorder %s13, 1
      %p52 = scmp.ne.s32.totalorder %s47, %s49
      %p53 = scmp.eq.s32.totalorder %s13, 0
      %p54 = por %p52, %p53
      %p55 = scmp.ne.s32.totalorder %s47, %s49
      %p56 = scmp.eq.s32.totalorder %s18, 1
      %p57 = por %p55, %p56
      %p58 = scmp.ne.s32.totalorder %s49, %s50
      %p59 = scmp.eq.s32.totalorder %s18, 0
      %p60 = por %p58, %p59
      %p61 = scmp.ne.s32.totalorder %s49, %s50
      %p62 = scmp.eq.s32.totalorder %s19, 1
      %p63 = por %p61, %p62
      %p65 = scmp.ne.s32.totalorder %s50, %s64
      %p66 = scmp.eq.s32.totalorder %s19, 0
      %p67 = por %p65, %p66
      %s69 = sadd.s32 %s68, 1
      %p72 = scmp.eq.s32.totalorder %s13, 1
      %p73 = scmp.ne.s32.totalorder %s68, %s70
      %p74 = scmp.eq.s32.totalorder %s13, 0
      %p75 = por %p73, %p74
      %p76 = scmp.ne.s32.totalorder %s68, %s70
      %p77 = scmp.eq.s32.totalorder %s18, 1
      %p78 = por %p76, %p77
      %p79 = scmp.ne.s32.totalorder %s70, %s71
      %p80 = scmp.eq.s32.totalorder %s18, 0
      %p81 = por %p79, %p80
      %p82 = scmp.ne.s32.totalorder %s70, %s71
      %p83 = scmp.eq.s32.totalorder %s19, 1
      %p84 = por %p82, %p83
      %p86 = scmp.ne.s32.totalorder %s71, %s85
      %p87 = scmp.eq.s32.totalorder %s19, 0
      %p88 = por %p86, %p87
      %s90 = sadd.s32 %s89, 1
      %p93 = scmp.eq.s32.totalorder %s13, 1
      %p94 = scmp.ne.s32.totalorder %s89, %s91
      %p95 = scmp.eq.s32.totalorder %s13, 0
      %p96 = por %p94, %p95
      %p97 = scmp.ne.s32.totalorder %s89, %s91
      %p98 = scmp.eq.s32.totalorder %s18, 1
      %p99 = por %p97, %p98
      %p100 = scmp.ne.s32.totalorder %s91, %s92
      %p101 = scmp.eq.s32.totalorder %s18, 0
      %p102 = por %p100, %p101
      %p103 = scmp.ne.s32.totalorder %s91, %s92
      %p104 = scmp.eq.s32.totalorder %s19, 1
      %p105 = por %p103, %p104
      %p107 = scmp.ne.s32.totalorder %s92, %s106
      %p108 = scmp.eq.s32.totalorder %s19, 0
      %p109 = por %p107, %p108
      %s110 = ssub.s32 %s13, %s20
      %p111 = scmp.eq.s32.totalorder %s110, 0
      %s113 = sadd.s32 %s112, 1
      %s114 = scalar_select %p111, %s112, %s113
      %p117 = pneg %p111
      %p118 = scmp.eq.s32.totalorder %s13, 1
      %p119 = por %p117, %p118
      %p120 = scmp.ne.s32.totalorder %s112, %s115
      %p121 = scmp.eq.s32.totalorder %s13, 0
      %p122 = por %p120, %p121
      %p123 = scmp.ne.s32.totalorder %s112, %s115
      %p124 = scmp.eq.s32.totalorder %s18, 1
      %p125 = por %p123, %p124
      %p126 = scmp.ne.s32.totalorder %s115, %s116
      %p127 = scmp.eq.s32.totalorder %s18, 0
      %p128 = por %p126, %p127
      %p129 = scmp.ne.s32.totalorder %s115, %s116
      %p130 = scmp.eq.s32.totalorder %s19, 1
      %p131 = por %p129, %p130
      %p133 = scmp.ne.s32.totalorder %s116, %s132
      %p134 = scmp.eq.s32.totalorder %s19, 0
      %p135 = por %p133, %p134
      %p136 = scmp.le.s32.totalorder 1, %s13
      %p137 = scmp.lt.s32.totalorder %s13, 3
      %p138 = pnand %p136, %p137
      %p139 = pneg %p138
      // Predicated region
      $region9: #{tpu_custom_call.1} parent=5 // pred_check
        _
      $region10: #{tpu_custom_call.1} parent=5 // pred_check_branch
        %141 = sbr.rel (%p138) target = $region12
      $region11: #{tpu_custom_call.1} parent=5 // pred_region
        %s142 = ssub.s32 %s13, 1
        // Predicated region
        $region13: #{tpu_custom_call.1} parent=11 // pred_check
          %p143 = pneg %p60
        $region14: #{tpu_custom_call.1} parent=11 // pred_check_branch
          %145 = sbr.rel (%p143) target = $region16
        $region15: #{tpu_custom_call.1} parent=11 // pred_region
          _
        $region16: #{tpu_custom_call.1} parent=11 // pred_fallthru
          _
        // Predicated region
        $region17: #{tpu_custom_call.1} parent=11 // pred_check
          %p146 = pneg %p81
        $region18: #{tpu_custom_call.1} parent=11 // pred_check_branch
          %148 = sbr.rel (%p146) target = $region20
        $region19: #{tpu_custom_call.1} parent=11 // pred_region
          _
        $region20: #{tpu_custom_call.1} parent=11 // pred_fallthru
          _
        // Predicated region
        $region21: #{tpu_custom_call.1} parent=11 // pred_check
          %p149 = pneg %p102
        $region22: #{tpu_custom_call.1} parent=11 // pred_check_branch
          %151 = sbr.rel (%p149) target = $region24
        $region23: #{tpu_custom_call.1} parent=11 // pred_region
          _
        $region24: #{tpu_custom_call.1} parent=11 // pred_fallthru
          _
      $region12: #{tpu_custom_call.1} parent=5 // pred_fallthru
        _
      %p152 = scmp.lt.s32.totalorder %s13, 2
      // Predicated region
      $region25: #{tpu_custom_call.1} parent=5 // pred_check
        %p153 = pneg %p152
      $region26: #{tpu_custom_call.1} parent=5 // pred_check_branch
        %155 = sbr.rel (%p153) target = $region28
      $region27: #{tpu_custom_call.1} parent=5 // pred_region
        // Predicated region
        $region29: #{tpu_custom_call.1} parent=27 // pred_check
          %p156 = pneg %p33
        $region30: #{tpu_custom_call.1} parent=27 // pred_check_branch
          %158 = sbr.rel (%p156) target = $region32
        $region31: #{tpu_custom_call.1} parent=27 // pred_region
          %p159 = scmp.lt.s32.totalorder %s13, 1
          %s160 = scalar_select %p159, %s13, 1
          %s161 = smul.addr %s160, 8
          %s162 = smul.addr %s161, 8
          %s163 = scalar_lea.vmem %s0, %s162
        $region32: #{tpu_custom_call.1} parent=27 // pred_fallthru
          _
      $region28: #{tpu_custom_call.1} parent=5 // pred_fallthru
        _
      %p164 = scmp.le.s32.totalorder 1, %s13
      %p165 = scmp.lt.s32.totalorder %s13, 3
      %p166 = pnand %p164, %p165
      %p167 = pneg %p166
      // Predicated region
      $region33: #{tpu_custom_call.1} parent=5 // pred_check
        _
      $region34: #{tpu_custom_call.1} parent=5 // pred_check_branch
        %169 = sbr.rel (%p166) target = $region36
      $region35: #{tpu_custom_call.1} parent=5 // pred_region
        %s170 = ssub.s32 %s13, 1
        %p171 = scmp.lt.s32.totalorder %s18, 1
        %s172 = scalar_select %p171, %s18, 1
        %s173 = smul.addr %s172, 8
        %s174 = smul.addr %s173, 8
        %s175 = scalar_lea.vmem %s0, %s174
        %p176 = pneg %p39
        %p177 = pneg %p36
        %p178 = pneg %p60
        %p179 = pneg %p57
        %p180 = pneg %p81
        %p181 = pneg %p78
        %p182 = pneg %p102
        %p183 = pneg %p99
        %p184 = pneg %p128
        %p185 = pneg %p125
        %s186 = sand.u32 %s115, 1
        %s187 = scalar_lea.sflag [#allocation3], %s186
        %s188 = sand.u32 %s115, 1
        %s189 = smul.addr %s188, 256
        %s190 = scalar_lea.vmem [#allocation2], %s189
        %p191 = scmp.lt.s32.totalorder %s18, 1
        %s192 = scalar_select %p191, %s18, 1
        %s193 = smul.addr %s192, 8
        %s194 = smul.addr %s193, 8
        %s195 = scalar_lea.vmem %s0, %s194
        %v197 = vld [vmem:[%s195] sm:$0xff]
        %v198 = vld [vmem:[%s195 + $0x8] sm:$0xff]
        %v199 = vld [vmem:[%s195 + $0x10] sm:$0xff]
        %v200 = vld [vmem:[%s195 + $0x18] sm:$0xff]
        %v201 = vld [vmem:[%s195 + $0x20] sm:$0xff]
        %v202 = vld [vmem:[%s195 + $0x28] sm:$0xff]
        %v203 = vld [vmem:[%s195 + $0x30] sm:$0xff]
        %v204 = vld [vmem:[%s195 + $0x38] sm:$0xff]
        %v205 = vld [vmem:[%s1] sm:$0xf]
        %v206 = vld [vmem:[%s1 + $0x4] sm:$0xf]
        %v207 = vld [vmem:[%s1 + $0x8] sm:$0xf]
        %v208 = vld [vmem:[%s1 + $0xc] sm:$0xf]
        %v209 = vld [vmem:[%s1 + $0x10] sm:$0xf]
        %v210 = vld [vmem:[%s1 + $0x14] sm:$0xf]
        %v211 = vld [vmem:[%s1 + $0x18] sm:$0xf]
        %v212 = vld [vmem:[%s1 + $0x1c] sm:$0xf]
        %v213 = vpack.c.bf16 %v198, %v197
        %v214 = vpack.c.bf16 %v200, %v199
        %v215 = vpack.c.bf16 %v202, %v201
        %v216 = vpack.c.bf16 %v204, %v203
        %v217 = vld [vmem:[%s3] sm:$0xff]
        %v218 = vld [vmem:[%s3 + $0x8] sm:$0xff]
        %v219 = vld [vmem:[%s3 + $0x10] sm:$0xff]
        %v220 = vld [vmem:[%s3 + $0x18] sm:$0xff]
        %v221 = vld [vmem:[%s3 + $0x20] sm:$0xff]
        %v222 = vld [vmem:[%s3 + $0x28] sm:$0xff]
        %v223 = vld [vmem:[%s3 + $0x30] sm:$0xff]
        %v224 = vld [vmem:[%s3 + $0x38] sm:$0xff]
        %226 = vset.pattern.permute.xlu0 0
        %227 = vperm.xlu0 %226, %v217
        %v228 = vpop.permute.xlu0 %227
        %231 = vset.pattern.permute.xlu0 0
        %232 = vperm.xlu0 %231, %v218
        %v233 = vpop.permute.xlu0 %232
        %236 = vset.pattern.permute.xlu0 0
        %237 = vperm.xlu0 %236, %v219
        %v238 = vpop.permute.xlu0 %237
        %241 = vset.pattern.permute.xlu0 0
        %242 = vperm.xlu0 %241, %v220
        %v243 = vpop.permute.xlu0 %242
        %246 = vset.pattern.permute.xlu0 0
        %247 = vperm.xlu0 %246, %v221
        %v248 = vpop.permute.xlu0 %247
        %251 = vset.pattern.permute.xlu0 0
        %252 = vperm.xlu0 %251, %v222
        %v253 = vpop.permute.xlu0 %252
        %256 = vset.pattern.permute.xlu0 0
        %257 = vperm.xlu0 %256, %v223
        %v258 = vpop.permute.xlu0 %257
        %261 = vset.pattern.permute.xlu0 0
        %262 = vperm.xlu0 %261, %v224
        %v263 = vpop.permute.xlu0 %262
        %v273 = vunpack.c.l.b16 %v205
        %v274 = vunpack.c.l.b16 %v206
        %v275 = vunpack.c.l.b16 %v207
        %v276 = vunpack.c.l.b16 %v208
        %v277 = vunpack.c.l.b16 %v209
        %v278 = vunpack.c.l.b16 %v210
        %v279 = vunpack.c.l.b16 %v211
        %v280 = vunpack.c.l.b16 %v212
        %v281 = vpack.c.b16 %v274, %v273
        %v282 = vpack.c.b16 %v276, %v275
        %v283 = vpack.c.b16 %v278, %v277
        %v284 = vpack.c.b16 %v280, %v279
        %vm285 = vcmask 523264
        %v287 = vsel %vm285, %v281, 0
        %v290 = vsel %vm285, %v282, 0
        %v293 = vsel %vm285, %v283, 0
        %v296 = vsel %vm285, %v284, 0
        %298 = vmatprep.subr.bf16.mxu0 0
        %299 = vmatpush1.bf16.msra.mxu0 %v213
        %300 = vmatprep.subr.bf16.mxu0 0
        %301 = vmatpush1.bf16.msra.mxu0 %v214
        %302 = vmatprep.subr.bf16.mxu0 0
        %303 = vmatpush1.bf16.msra.mxu0 %v215
        %304 = vmatprep.subr.bf16.mxu0 0
        %305 = vmatpush1.bf16.msra.mxu0 %v216
        %306 = vmatprep.subr.bf16.mxu0 0
        %307 = vmatpush1.bf16.msra.mxu0 0
        %308 = vmatprep.subr.bf16.mxu0 0
        %309 = vmatpush1.bf16.msra.mxu0 0
        %310 = vmatprep.subr.bf16.mxu0 0
        %311 = vmatpush1.bf16.msra.mxu0 0
        %312 = vmatprep.subr.bf16.mxu0 0
        %313 = vmatpush1.bf16.msra.mxu0 0
        %314 = vmatprep.subr.bf16.mxu0 0
        %315 = vmatpush1.bf16.msra.mxu0 0
        %316 = vmatprep.subr.bf16.mxu0 0
        %317 = vmatpush1.bf16.msra.mxu0 0
        %318 = vmatprep.subr.bf16.mxu0 0
        %319 = vmatpush1.bf16.msra.mxu0 0
        %320 = vmatprep.subr.bf16.mxu0 0
        %321 = vmatpush1.bf16.msra.mxu0 0
        %322 = vmatprep.subr.bf16.mxu0 0
        %323 = vmatpush1.bf16.msra.mxu0 0
        %324 = vmatprep.subr.bf16.mxu0 0
        %325 = vmatpush1.bf16.msra.mxu0 0
        %326 = vmatprep.subr.bf16.mxu0 0
        %327 = vmatpush1.bf16.msra.mxu0 0
        %328 = vmatprep.subr.bf16.mxu0 0
        %329 = vmatpush1.bf16.msra.mxu0 0
        %330 = vmatprep.mubr.bf16.mxu0 0
        %331 = vmatmul.mubr.bf16.gmra.mrb[0].mxu0 %v287
        %v332 = vpop.f32.mrb[0].mxu0
        %v333 = vadd.f32 %v228, %v332
        %v334 = vpop.f32.mrb[0].mxu0
        %v335 = vpop.f32.mrb[0].mxu0
        %v336 = vadd.f32 %v233, %v335
        %v337 = vpop.f32.mrb[0].mxu0
        %338 = vmatprep.mubr.bf16.mxu0 0
        %339 = vmatmul.mubr.bf16.gmra.mrb[0].mxu0 %v290
        %v340 = vpop.f32.mrb[0].mxu0
        %v341 = vadd.f32 %v238, %v340
        %v342 = vpop.f32.mrb[0].mxu0
        %v343 = vpop.f32.mrb[0].mxu0
        %v344 = vadd.f32 %v243, %v343
        %v345 = vpop.f32.mrb[0].mxu0
        %346 = vmatprep.mubr.bf16.mxu0 0
        %347 = vmatmul.mubr.bf16.gmra.mrb[0].mxu0 %v293
        %v348 = vpop.f32.mrb[0].mxu0
        %v349 = vadd.f32 %v248, %v348
        %v350 = vpop.f32.mrb[0].mxu0
        %v351 = vpop.f32.mrb[0].mxu0
        %v352 = vadd.f32 %v253, %v351
        %v353 = vpop.f32.mrb[0].mxu0
        %354 = vmatprep.mubr.bf16.mxu0 0
        %355 = vmatmul.mubr.bf16.gmra.mrb[0].mxu0 %v296
        %v356 = vpop.f32.mrb[0].mxu0
        %v357 = vadd.f32 %v258, %v356
        %v358 = vpop.f32.mrb[0].mxu0
        %v359 = vpop.f32.mrb[0].mxu0
        %v360 = vadd.f32 %v263, %v359
        %v361 = vpop.f32.mrb[0].mxu0
        %362 = vdwg.mxu0
        %v363 = vmax.f32 %v333, 0.0
        %v364 = vmax.f32 %v336, 0.0
        %v365 = vmax.f32 %v341, 0.0
        %v366 = vmax.f32 %v344, 0.0
        %v367 = vmax.f32 %v349, 0.0
        %v368 = vmax.f32 %v352, 0.0
        %v369 = vmax.f32 %v357, 0.0
        %v370 = vmax.f32 %v360, 0.0
        %s371 = scalar_lea.vmem %s1, 32
        %v372 = vld [vmem:[%s371] sm:$0xf]
        %v373 = vld [vmem:[%s371 + $0x4] sm:$0xf]
        %v374 = vld [vmem:[%s371 + $0x8] sm:$0xf]
        %v375 = vld [vmem:[%s371 + $0xc] sm:$0xf]
        %v376 = vld [vmem:[%s371 + $0x10] sm:$0xf]
        %v377 = vld [vmem:[%s371 + $0x14] sm:$0xf]
        %v378 = vld [vmem:[%s371 + $0x18] sm:$0xf]
        %v379 = vld [vmem:[%s371 + $0x1c] sm:$0xf]
        %v380 = vpack.c.bf16 %v364, %v363
        %v381 = vpack.c.bf16 %v366, %v365
        %v382 = vpack.c.bf16 %v368, %v367
        %v383 = vpack.c.bf16 %v370, %v369
        %s384 = scalar_lea.vmem %s3, 64
        %v385 = vld [vmem:[%s384] sm:$0xff]
        %v386 = vld [vmem:[%s384 + $0x8] sm:$0xff]
        %v387 = vld [vmem:[%s384 + $0x10] sm:$0xff]
        %v388 = vld [vmem:[%s384 + $0x18] sm:$0xff]
        %v389 = vld [vmem:[%s384 + $0x20] sm:$0xff]
        %v390 = vld [vmem:[%s384 + $0x28] sm:$0xff]
        %v391 = vld [vmem:[%s384 + $0x30] sm:$0xff]
        %v392 = vld [vmem:[%s384 + $0x38] sm:$0xff]
        %394 = vset.pattern.permute.xlu0 0
        %395 = vperm.xlu0 %394, %v385
        %v396 = vpop.permute.xlu0 %395
        %399 = vset.pattern.permute.xlu0 0
        %400 = vperm.xlu0 %399, %v386
        %v401 = vpop.permute.xlu0 %400
        %404 = vset.pattern.permute.xlu0 0
        %405 = vperm.xlu0 %404, %v387
        %v406 = vpop.permute.xlu0 %405
        %409 = vset.pattern.permute.xlu0 0
        %410 = vperm.xlu0 %409, %v388
        %v411 = vpop.permute.xlu0 %410
        %414 = vset.pattern.permute.xlu0 0
        %415 = vperm.xlu0 %414, %v389
        %v416 = vpop.permute.xlu0 %415
        %419 = vset.pattern.permute.xlu0 0
        %420 = vperm.xlu0 %419, %v390
        %v421 = vpop.permute.xlu0 %420
        %424 = vset.pattern.permute.xlu0 0
        %425 = vperm.xlu0 %424, %v391
        %v426 = vpop.permute.xlu0 %425
        %429 = vset.pattern.permute.xlu0 0
        %430 = vperm.xlu0 %429, %v392
        %v431 = vpop.permute.xlu0 %430
        %v441 = vunpack.c.l.b16 %v372
        %v442 = vunpack.c.l.b16 %v373
        %v443 = vunpack.c.l.b16 %v374
        %v444 = vunpack.c.l.b16 %v375
        %v445 = vunpack.c.l.b16 %v376
        %v446 = vunpack.c.l.b16 %v377
        %v447 = vunpack.c.l.b16 %v378
        %v448 = vunpack.c.l.b16 %v379
        %v449 = vpack.c.b16 %v442, %v441
        %v450 = vpack.c.b16 %v444, %v443
        %v451 = vpack.c.b16 %v446, %v445
        %v452 = vpack.c.b16 %v448, %v447
        %v454 = vsel %vm285, %v449, 0
        %v457 = vsel %vm285, %v450, 0
        %v460 = vsel %vm285, %v451, 0
        %v463 = vsel %vm285, %v452, 0
        %465 = vmatprep.subr.bf16.mxu0 0
        %466 = vmatpush1.bf16.msra.mxu0 %v380
        %467 = vmatprep.subr.bf16.mxu0 0
        %468 = vmatpush1.bf16.msra.mxu0 %v381
        %469 = vmatprep.subr.bf16.mxu0 0
        %470 = vmatpush1.bf16.msra.mxu0 %v382
        %471 = vmatprep.subr.bf16.mxu0 0
        %472 = vmatpush1.bf16.msra.mxu0 %v383
        %473 = vmatprep.subr.bf16.mxu0 0
        %474 = vmatpush1.bf16.msra.mxu0 0
        %475 = vmatprep.subr.bf16.mxu0 0
        %476 = vmatpush1.bf16.msra.mxu0 0
        %477 = vmatprep.subr.bf16.mxu0 0
        %478 = vmatpush1.bf16.msra.mxu0 0
        %479 = vmatprep.subr.bf16.mxu0 0
        %480 = vmatpush1.bf16.msra.mxu0 0
        %481 = vmatprep.subr.bf16.mxu0 0
        %482 = vmatpush1.bf16.msra.mxu0 0
        %483 = vmatprep.subr.bf16.mxu0 0
        %484 = vmatpush1.bf16.msra.mxu0 0
        %485 = vmatprep.subr.bf16.mxu0 0
        %486 = vmatpush1.bf16.msra.mxu0 0
        %487 = vmatprep.subr.bf16.mxu0 0
        %488 = vmatpush1.bf16.msra.mxu0 0
        %489 = vmatprep.subr.bf16.mxu0 0
        %490 = vmatpush1.bf16.msra.mxu0 0
        %491 = vmatprep.subr.bf16.mxu0 0
        %492 = vmatpush1.bf16.msra.mxu0 0
        %493 = vmatprep.subr.bf16.mxu0 0
        %494 = vmatpush1.bf16.msra.mxu0 0
        %495 = vmatprep.subr.bf16.mxu0 0
        %496 = vmatpush1.bf16.msra.mxu0 0
        %497 = vmatprep.mubr.bf16.mxu0 0
        %498 = vmatmul.mubr.bf16.gmra.mrb[0].mxu0 %v454
        %v499 = vpop.f32.mrb[0].mxu0
        %v500 = vadd.f32 %v396, %v499
        %v501 = vpop.f32.mrb[0].mxu0
        %v502 = vpop.f32.mrb[0].mxu0
        %v503 = vadd.f32 %v401, %v502
        %v504 = vpop.f32.mrb[0].mxu0
        %505 = vmatprep.mubr.bf16.mxu0 0
        %506 = vmatmul.mubr.bf16.gmra.mrb[0].mxu0 %v457
        %v507 = vpop.f32.mrb[0].mxu0
        %v508 = vadd.f32 %v406, %v507
        %v509 = vpop.f32.mrb[0].mxu0
        %v510 = vpop.f32.mrb[0].mxu0
        %v511 = vadd.f32 %v411, %v510
        %v512 = vpop.f32.mrb[0].mxu0
        %513 = vmatprep.mubr.bf16.mxu0 0
        %514 = vmatmul.mubr.bf16.gmra.mrb[0].mxu0 %v460
        %v515 = vpop.f32.mrb[0].mxu0
        %v516 = vadd.f32 %v416, %v515
        %v517 = vpop.f32.mrb[0].mxu0
        %v518 = vpop.f32.mrb[0].mxu0
        %v519 = vadd.f32 %v421, %v518
        %v520 = vpop.f32.mrb[0].mxu0
        %521 = vmatprep.mubr.bf16.mxu0 0
        %522 = vmatmul.mubr.bf16.gmra.mrb[0].mxu0 %v463
        %v523 = vpop.f32.mrb[0].mxu0
        %v524 = vadd.f32 %v426, %v523
        %v525 = vpop.f32.mrb[0].mxu0
        %v526 = vpop.f32.mrb[0].mxu0
        %v527 = vadd.f32 %v431, %v526
        %v528 = vpop.f32.mrb[0].mxu0
        %529 = vdwg.mxu0
        %v530 = vmax.f32 %v500, 0.0
        %v531 = vmax.f32 %v503, 0.0
        %v532 = vmax.f32 %v508, 0.0
        %v533 = vmax.f32 %v511, 0.0
        %v534 = vmax.f32 %v516, 0.0
        %v535 = vmax.f32 %v519, 0.0
        %v536 = vmax.f32 %v524, 0.0
        %v537 = vmax.f32 %v527, 0.0
        %v538 = vld [vmem:[%s2] sm:$0xf]
        %v539 = vld [vmem:[%s2 + $0x4] sm:$0xf]
        %v540 = vld [vmem:[%s2 + $0x8] sm:$0xf]
        %v541 = vld [vmem:[%s2 + $0xc] sm:$0xf]
        %v542 = vld [vmem:[%s2 + $0x10] sm:$0xf]
        %v543 = vld [vmem:[%s2 + $0x14] sm:$0xf]
        %v544 = vld [vmem:[%s2 + $0x18] sm:$0xf]
        %v545 = vld [vmem:[%s2 + $0x1c] sm:$0xf]
        %v546 = vld [vmem:[%s2 + $0x20] sm:$0xf]
        %v547 = vld [vmem:[%s2 + $0x24] sm:$0xf]
        %v548 = vpack.c.bf16 %v531, %v530
        %v549 = vpack.c.bf16 %v533, %v532
        %v550 = vpack.c.bf16 %v535, %v534
        %v551 = vpack.c.bf16 %v537, %v536
        %v562 = vunpack.c.l.b16 %v538
        %v563 = vunpack.c.l.b16 %v539
        %v564 = vunpack.c.l.b16 %v540
        %v565 = vunpack.c.l.b16 %v541
        %v566 = vunpack.c.l.b16 %v542
        %v567 = vunpack.c.l.b16 %v543
        %v568 = vunpack.c.l.b16 %v544
        %v569 = vunpack.c.l.b16 %v545
        %v570 = vunpack.c.l.b16 %v546
        %v571 = vunpack.c.l.b16 %v547
        %v572 = vpack.c.b16 %v563, %v562
        %v573 = vpack.c.b16 %v565, %v564
        %v574 = vpack.c.b16 %v567, %v566
        %v575 = vpack.c.b16 %v569, %v568
        %v576 = vpack.c.b16 %v571, %v570
        %v578 = vsel %vm285, %v572, 0
        %v581 = vsel %vm285, %v573, 0
        %v584 = vsel %vm285, %v574, 0
        %v587 = vsel %vm285, %v575, 0
        %v590 = vsel %vm285, %v576, 0
        %592 = vmatprep.subr.bf16.mxu0 0
        %593 = vmatpush1.bf16.msra.mxu0 %v548
        %594 = vmatprep.subr.bf16.mxu0 0
        %595 = vmatpush1.bf16.msra.mxu0 %v549
        %596 = vmatprep.subr.bf16.mxu0 0
        %597 = vmatpush1.bf16.msra.mxu0 %v550
        %598 = vmatprep.subr.bf16.mxu0 0
        %599 = vmatpush1.bf16.msra.mxu0 %v551
        %600 = vmatprep.subr.bf16.mxu0 0
        %601 = vmatpush1.bf16.msra.mxu0 0
        %602 = vmatprep.subr.bf16.mxu0 0
        %603 = vmatpush1.bf16.msra.mxu0 0
        %604 = vmatprep.subr.bf16.mxu0 0
        %605 = vmatpush1.bf16.msra.mxu0 0
        %606 = vmatprep.subr.bf16.mxu0 0
        %607 = vmatpush1.bf16.msra.mxu0 0
        %608 = vmatprep.subr.bf16.mxu0 0
        %609 = vmatpush1.bf16.msra.mxu0 0
        %610 = vmatprep.subr.bf16.mxu0 0
        %611 = vmatpush1.bf16.msra.mxu0 0
        %612 = vmatprep.subr.bf16.mxu0 0
        %613 = vmatpush1.bf16.msra.mxu0 0
        %614 = vmatprep.subr.bf16.mxu0 0
        %615 = vmatpush1.bf16.msra.mxu0 0
        %616 = vmatprep.subr.bf16.mxu0 0
        %617 = vmatpush1.bf16.msra.mxu0 0
        %618 = vmatprep.subr.bf16.mxu0 0
        %619 = vmatpush1.bf16.msra.mxu0 0
        %620 = vmatprep.subr.bf16.mxu0 0
        %621 = vmatpush1.bf16.msra.mxu0 0
        %622 = vmatprep.subr.bf16.mxu0 0
        %623 = vmatpush1.bf16.msra.mxu0 0
        %624 = vmatprep.mubr.bf16.mxu0 0
        %625 = vmatmul.mubr.bf16.gmra.mrb[0].mxu0 %v578
        %v626 = vpop.f32.mrb[0].mxu0
        %v627 = vadd.f32 0.0, %v626
        %v628 = vpop.f32.mrb[0].mxu0
        %v629 = vpop.f32.mrb[0].mxu0
        %v630 = vadd.f32 0.0, %v629
        %v631 = vpop.f32.mrb[0].mxu0
        %632 = vmatprep.mubr.bf16.mxu0 0
        %633 = vmatmul.mubr.bf16.gmra.mrb[0].mxu0 %v581
        %v634 = vpop.f32.mrb[0].mxu0
        %v635 = vadd.f32 0.0, %v634
        %v636 = vpop.f32.mrb[0].mxu0
        %v637 = vpop.f32.mrb[0].mxu0
        %v638 = vadd.f32 0.0, %v637
        %v639 = vpop.f32.mrb[0].mxu0
        %640 = vmatprep.mubr.bf16.mxu0 0
        %641 = vmatmul.mubr.bf16.gmra.mrb[0].mxu0 %v584
        %v642 = vpop.f32.mrb[0].mxu0
        %v643 = vadd.f32 0.0, %v642
        %v644 = vpop.f32.mrb[0].mxu0
        %v645 = vpop.f32.mrb[0].mxu0
        %v646 = vadd.f32 0.0, %v645
        %v647 = vpop.f32.mrb[0].mxu0
        %648 = vmatprep.mubr.bf16.mxu0 0
        %649 = vmatmul.mubr.bf16.gmra.mrb[0].mxu0 %v587
        %v650 = vpop.f32.mrb[0].mxu0
        %v651 = vadd.f32 0.0, %v650
        %v652 = vpop.f32.mrb[0].mxu0
        %v653 = vpop.f32.mrb[0].mxu0
        %v654 = vadd.f32 0.0, %v653
        %v655 = vpop.f32.mrb[0].mxu0
        %656 = vmatprep.mubr.bf16.mxu0 0
        %657 = vmatmul.mubr.bf16.gmra.mrb[0].mxu0 %v590
        %v658 = vpop.f32.mrb[0].mxu0
        %v659 = vadd.f32 0.0, %v658
        %v660 = vpop.f32.mrb[0].mxu0
        %v661 = vpop.f32.mrb[0].mxu0
        %v662 = vadd.f32 0.0, %v661
        %v663 = vpop.f32.mrb[0].mxu0
        %664 = vdwg.mxu0
        %s665 = scalar_lea.vmem %s3, 128
        %v666 = vld [vmem:[%s665] sm:$0xff]
        %v667 = vld [vmem:[%s665 + $0x8] sm:$0xff]
        %v668 = vld [vmem:[%s665 + $0x10] sm:$0xff]
        %v669 = vld [vmem:[%s665 + $0x18] sm:$0xff]
        %v670 = vld [vmem:[%s665 + $0x20] sm:$0xff]
        %v671 = vld [vmem:[%s665 + $0x28] sm:$0xff]
        %v672 = vld [vmem:[%s665 + $0x30] sm:$0xff]
        %v673 = vld [vmem:[%s665 + $0x38] sm:$0xff]
        %675 = vset.pattern.permute.xlu0 0
        %676 = vperm.xlu0 %675, %v666
        %v677 = vpop.permute.xlu0 %676
        %680 = vset.pattern.permute.xlu0 0
        %681 = vperm.xlu0 %680, %v667
        %v682 = vpop.permute.xlu0 %681
        %685 = vset.pattern.permute.xlu0 0
        %686 = vperm.xlu0 %685, %v668
        %v687 = vpop.permute.xlu0 %686
        %690 = vset.pattern.permute.xlu0 0
        %691 = vperm.xlu0 %690, %v669
        %v692 = vpop.permute.xlu0 %691
        %695 = vset.pattern.permute.xlu0 0
        %696 = vperm.xlu0 %695, %v670
        %v697 = vpop.permute.xlu0 %696
        %700 = vset.pattern.permute.xlu0 0
        %701 = vperm.xlu0 %700, %v671
        %v702 = vpop.permute.xlu0 %701
        %705 = vset.pattern.permute.xlu0 0
        %706 = vperm.xlu0 %705, %v672
        %v707 = vpop.permute.xlu0 %706
        %710 = vset.pattern.permute.xlu0 0
        %711 = vperm.xlu0 %710, %v673
        %v712 = vpop.permute.xlu0 %711
        %v714 = vadd.f32 %v635, %v677
        %v715 = vadd.f32 %v638, %v682
        %v716 = vadd.f32 %v643, %v687
        %v717 = vadd.f32 %v646, %v692
        %v718 = vadd.f32 %v651, %v697
        %v719 = vadd.f32 %v654, %v702
        %v720 = vadd.f32 %v659, %v707
        %v721 = vadd.f32 %v662, %v712
        %v722 = vpack.c.bf16 %v630, %v627
        %723 = vxpose.xlu0.c.b16.start [1/8] %v722, 128
        %724 = vxpose.xlu0.c.b16.cont [2/8] 0, 128
        %725 = vxpose.xlu0.c.b16.cont [3/8] 0, 128
        %726 = vxpose.xlu0.c.b16.cont [4/8] 0, 128
        %727 = vxpose.xlu0.c.b16.cont [5/8] 0, 128
        %728 = vxpose.xlu0.c.b16.cont [6/8] 0, 128
        %729 = vxpose.xlu0.c.b16.cont [7/8] 0, 128
        %730 = vxpose.xlu0.c.b16.end [8/8] 0, 128
        %v731 = vpop.trf.xlu0
        %v732 = vpop.trf.xlu0
        %v733 = vpop.trf.xlu0
        %v734 = vpop.trf.xlu0
        %v735 = vpop.trf.xlu0
        %v736 = vpop.trf.xlu0
        %v737 = vpop.trf.xlu0
        %v738 = vpop.trf.xlu0
        %vm739 = vcmask 130048
        %v741 = vsel %vm739, %v731, 0
        %v744 = vsel %vm739, %v732, 0
        %v747 = vsel %vm739, %v733, 0
        %v750 = vsel %vm739, %v734, 0
        %v753 = vsel %vm739, %v735, 0
        %v756 = vsel %vm739, %v736, 0
        %v759 = vsel %vm739, %v737, 0
        %v762 = vsel %vm739, %v738, 0
        %764 = vmatprep.subr.bf16.mxu0 0
        %765 = vmatpush1.bf16.msra.mxu0 %v722
        %766 = vmatprep.subr.bf16.mxu0 0
        %767 = vmatpush1.bf16.msra.mxu0 0
        %768 = vmatprep.subr.bf16.mxu0 0
        %769 = vmatpush1.bf16.msra.mxu0 0
        %770 = vmatprep.subr.bf16.mxu0 0
        %771 = vmatpush1.bf16.msra.mxu0 0
        %772 = vmatprep.subr.bf16.mxu0 0
        %773 = vmatpush1.bf16.msra.mxu0 0
        %774 = vmatprep.subr.bf16.mxu0 0
        %775 = vmatpush1.bf16.msra.mxu0 0
        %776 = vmatprep.subr.bf16.mxu0 0
        %777 = vmatpush1.bf16.msra.mxu0 0
        %778 = vmatprep.subr.bf16.mxu0 0
        %779 = vmatpush1.bf16.msra.mxu0 0
        %780 = vmatprep.subr.bf16.mxu0 0
        %781 = vmatpush1.bf16.msra.mxu0 0
        %782 = vmatprep.subr.bf16.mxu0 0
        %783 = vmatpush1.bf16.msra.mxu0 0
        %784 = vmatprep.subr.bf16.mxu0 0
        %785 = vmatpush1.bf16.msra.mxu0 0
        %786 = vmatprep.subr.bf16.mxu0 0
        %787 = vmatpush1.bf16.msra.mxu0 0
        %788 = vmatprep.subr.bf16.mxu0 0
        %789 = vmatpush1.bf16.msra.mxu0 0
        %790 = vmatprep.subr.bf16.mxu0 0
        %791 = vmatpush1.bf16.msra.mxu0 0
        %792 = vmatprep.subr.bf16.mxu0 0
        %793 = vmatpush1.bf16.msra.mxu0 0
        %794 = vmatprep.subr.bf16.mxu0 0
        %795 = vmatpush1.bf16.msra.mxu0 0
        %796 = vmatprep.mubr.bf16.mxu0 0
        %797 = vmatmul.mubr.bf16.gmra.mrb[0].mxu0 %v741
        %v798 = vpop.f32.mrb[0].mxu0
        %v799 = vadd.f32 0.0, %v798
        %v800 = vpop.f32.mrb[0].mxu0
        %v801 = vpop.f32.mrb[0].mxu0
        %v802 = vadd.f32 0.0, %v801
        %v803 = vpop.f32.mrb[0].mxu0
        %804 = vmatprep.mubr.bf16.mxu0 0
        %805 = vmatmul.mubr.bf16.gmra.mrb[0].mxu0 %v744
        %v806 = vpop.f32.mrb[0].mxu0
        %v807 = vadd.f32 0.0, %v806
        %v808 = vpop.f32.mrb[0].mxu0
        %v809 = vpop.f32.mrb[0].mxu0
        %v810 = vadd.f32 0.0, %v809
        %v811 = vpop.f32.mrb[0].mxu0
        %812 = vmatprep.mubr.bf16.mxu0 0
        %813 = vmatmul.mubr.bf16.gmra.mrb[0].mxu0 %v747
        %v814 = vpop.f32.mrb[0].mxu0
        %v815 = vadd.f32 0.0, %v814
        %v816 = vpop.f32.mrb[0].mxu0
        %v817 = vpop.f32.mrb[0].mxu0
        %v818 = vadd.f32 0.0, %v817
        %v819 = vpop.f32.mrb[0].mxu0
        %820 = vmatprep.mubr.bf16.mxu0 0
        %821 = vmatmul.mubr.bf16.gmra.mrb[0].mxu0 %v750
        %v822 = vpop.f32.mrb[0].mxu0
        %v823 = vadd.f32 0.0, %v822
        %v824 = vpop.f32.mrb[0].mxu0
        %v825 = vpop.f32.mrb[0].mxu0
        %v826 = vadd.f32 0.0, %v825
        %v827 = vpop.f32.mrb[0].mxu0
        %828 = vmatprep.mubr.bf16.mxu0 0
        %829 = vmatmul.mubr.bf16.gmra.mrb[0].mxu0 %v753
        %v830 = vpop.f32.mrb[0].mxu0
        %v831 = vadd.f32 0.0, %v830
        %v832 = vpop.f32.mrb[0].mxu0
        %v833 = vpop.f32.mrb[0].mxu0
        %v834 = vadd.f32 0.0, %v833
        %v835 = vpop.f32.mrb[0].mxu0
        %836 = vmatprep.mubr.bf16.mxu0 0
        %837 = vmatmul.mubr.bf16.gmra.mrb[0].mxu0 %v756
        %v838 = vpop.f32.mrb[0].mxu0
        %v839 = vadd.f32 0.0, %v838
        %v840 = vpop.f32.mrb[0].mxu0
        %v841 = vpop.f32.mrb[0].mxu0
        %v842 = vadd.f32 0.0, %v841
        %v843 = vpop.f32.mrb[0].mxu0
        %844 = vmatprep.mubr.bf16.mxu0 0
        %845 = vmatmul.mubr.bf16.gmra.mrb[0].mxu0 %v759
        %v846 = vpop.f32.mrb[0].mxu0
        %v847 = vadd.f32 0.0, %v846
        %v848 = vpop.f32.mrb[0].mxu0
        %v849 = vpop.f32.mrb[0].mxu0
        %v850 = vadd.f32 0.0, %v849
        %v851 = vpop.f32.mrb[0].mxu0
        %852 = vmatprep.mubr.bf16.mxu0 0
        %853 = vmatmul.mubr.bf16.gmra.mrb[0].mxu0 %v762
        %v854 = vpop.f32.mrb[0].mxu0
        %v855 = vadd.f32 0.0, %v854
        %v856 = vpop.f32.mrb[0].mxu0
        %v857 = vpop.f32.mrb[0].mxu0
        %v858 = vadd.f32 0.0, %v857
        %v859 = vpop.f32.mrb[0].mxu0
        %860 = vdwg.mxu0
        %861 = vmax.xlane.f32.xlu0 %v799
        %v862 = vpop.xlane.xlu0 %861
        %863 = vmax.xlane.f32.xlu0 %v802
        %v864 = vpop.xlane.xlu0 %863
        %865 = vmax.xlane.f32.xlu0 %v807
        %v866 = vpop.xlane.xlu0 %865
        %867 = vmax.xlane.f32.xlu0 %v810
        %v868 = vpop.xlane.xlu0 %867
        %869 = vmax.xlane.f32.xlu0 %v815
        %v870 = vpop.xlane.xlu0 %869
        %871 = vmax.xlane.f32.xlu0 %v818
        %v872 = vpop.xlane.xlu0 %871
        %873 = vmax.xlane.f32.xlu0 %v823
        %v874 = vpop.xlane.xlu0 %873
        %875 = vmax.xlane.f32.xlu0 %v826
        %v876 = vpop.xlane.xlu0 %875
        %877 = vmax.xlane.f32.xlu0 %v831
        %v878 = vpop.xlane.xlu0 %877
        %879 = vmax.xlane.f32.xlu0 %v834
        %v880 = vpop.xlane.xlu0 %879
        %881 = vmax.xlane.f32.xlu0 %v839
        %v882 = vpop.xlane.xlu0 %881
        %883 = vmax.xlane.f32.xlu0 %v842
        %v884 = vpop.xlane.xlu0 %883
        %885 = vmax.xlane.f32.xlu0 %v847
        %v886 = vpop.xlane.xlu0 %885
        %887 = vmax.xlane.f32.xlu0 %v850
        %v888 = vpop.xlane.xlu0 %887
        %889 = vmax.xlane.f32.xlu0 %v855
        %v890 = vpop.xlane.xlu0 %889
        %891 = vmax.xlane.f32.xlu0 %v858
        %v892 = vpop.xlane.xlu0 %891
        %v893 = vsub.f32 %v799, %v862
        %v894 = vsub.f32 %v802, %v864
        %v895 = vsub.f32 %v807, %v866
        %v896 = vsub.f32 %v810, %v868
        %v897 = vsub.f32 %v815, %v870
        %v898 = vsub.f32 %v818, %v872
        %v899 = vsub.f32 %v823, %v874
        %v900 = vsub.f32 %v826, %v876
        %v901 = vsub.f32 %v831, %v878
        %v902 = vsub.f32 %v834, %v880
        %v903 = vsub.f32 %v839, %v882
        %v904 = vsub.f32 %v842, %v884
        %v905 = vsub.f32 %v847, %v886
        %v906 = vsub.f32 %v850, %v888
        %v907 = vsub.f32 %v855, %v890
        %v908 = vsub.f32 %v858, %v892
        %v909 = vmul.f32 %v893, 1.442695
        %v910 = vpow.pop %v909
        %v911 = vmul.f32 %v894, 1.442695
        %v912 = vpow.pop %v911
        %v913 = vmul.f32 %v895, 1.442695
        %v914 = vpow.pop %v913
        %v915 = vmul.f32 %v896, 1.442695
        %v916 = vpow.pop %v915
        %v917 = vmul.f32 %v897, 1.442695
        %v918 = vpow.pop %v917
        %v919 = vmul.f32 %v898, 1.442695
        %v920 = vpow.pop %v919
        %v921 = vmul.f32 %v899, 1.442695
        %v922 = vpow.pop %v921
        %v923 = vmul.f32 %v900, 1.442695
        %v924 = vpow.pop %v923
        %v925 = vmul.f32 %v901, 1.442695
        %v926 = vpow.pop %v925
        %v927 = vmul.f32 %v902, 1.442695
        %v928 = vpow.pop %v927
        %v929 = vmul.f32 %v903, 1.442695
        %v930 = vpow.pop %v929
        %v931 = vmul.f32 %v904, 1.442695
        %v932 = vpow.pop %v931
        %v933 = vmul.f32 %v905, 1.442695
        %v934 = vpow.pop %v933
        %v935 = vmul.f32 %v906, 1.442695
        %v936 = vpow.pop %v935
        %v937 = vmul.f32 %v907, 1.442695
        %v938 = vpow.pop %v937
        %v939 = vmul.f32 %v908, 1.442695
        %v940 = vpow.pop %v939
        %941 = vadd.xlane.f32.xlu0 %v910
        %v942 = vpop.xlane.xlu0 %941
        %943 = vadd.xlane.f32.xlu0 %v912
        %v944 = vpop.xlane.xlu0 %943
        %945 = vadd.xlane.f32.xlu0 %v914
        %v946 = vpop.xlane.xlu0 %945
        %947 = vadd.xlane.f32.xlu0 %v916
        %v948 = vpop.xlane.xlu0 %947
        %949 = vadd.xlane.f32.xlu0 %v918
        %v950 = vpop.xlane.xlu0 %949
        %951 = vadd.xlane.f32.xlu0 %v920
        %v952 = vpop.xlane.xlu0 %951
        %953 = vadd.xlane.f32.xlu0 %v922
        %v954 = vpop.xlane.xlu0 %953
        %955 = vadd.xlane.f32.xlu0 %v924
        %v956 = vpop.xlane.xlu0 %955
        %957 = vadd.xlane.f32.xlu0 %v926
        %v958 = vpop.xlane.xlu0 %957
        %959 = vadd.xlane.f32.xlu0 %v928
        %v960 = vpop.xlane.xlu0 %959
        %961 = vadd.xlane.f32.xlu0 %v930
        %v962 = vpop.xlane.xlu0 %961
        %963 = vadd.xlane.f32.xlu0 %v932
        %v964 = vpop.xlane.xlu0 %963
        %965 = vadd.xlane.f32.xlu0 %v934
        %v966 = vpop.xlane.xlu0 %965
        %967 = vadd.xlane.f32.xlu0 %v936
        %v968 = vpop.xlane.xlu0 %967
        %969 = vadd.xlane.f32.xlu0 %v938
        %v970 = vpop.xlane.xlu0 %969
        %971 = vadd.xlane.f32.xlu0 %v940
        %v972 = vpop.xlane.xlu0 %971
        %v973 = vrcp.pop %v942
        %v974 = vmul.f32 1.0, %v973
        %v975 = vrcp.pop %v944
        %v976 = vmul.f32 1.0, %v975
        %v977 = vrcp.pop %v946
        %v978 = vmul.f32 1.0, %v977
        %v979 = vrcp.pop %v948
        %v980 = vmul.f32 1.0, %v979
        %v981 = vrcp.pop %v950
        %v982 = vmul.f32 1.0, %v981
        %v983 = vrcp.pop %v952
        %v984 = vmul.f32 1.0, %v983
        %v985 = vrcp.pop %v954
        %v986 = vmul.f32 1.0, %v985
        %v987 = vrcp.pop %v956
        %v988 = vmul.f32 1.0, %v987
        %v989 = vrcp.pop %v958
        %v990 = vmul.f32 1.0, %v989
        %v991 = vrcp.pop %v960
        %v992 = vmul.f32 1.0, %v991
        %v993 = vrcp.pop %v962
        %v994 = vmul.f32 1.0, %v993
        %v995 = vrcp.pop %v964
        %v996 = vmul.f32 1.0, %v995
        %v997 = vrcp.pop %v966
        %v998 = vmul.f32 1.0, %v997
        %v999 = vrcp.pop %v968
        %v1000 = vmul.f32 1.0, %v999
        %v1001 = vrcp.pop %v970
        %v1002 = vmul.f32 1.0, %v1001
        %v1003 = vrcp.pop %v972
        %v1004 = vmul.f32 1.0, %v1003
        %v1005 = vmul.f32 %v910, %v974
        %v1006 = vmul.f32 %v912, %v976
        %v1007 = vmul.f32 %v914, %v978
        %v1008 = vmul.f32 %v916, %v980
        %v1009 = vmul.f32 %v918, %v982
        %v1010 = vmul.f32 %v920, %v984
        %v1011 = vmul.f32 %v922, %v986
        %v1012 = vmul.f32 %v924, %v988
        %v1013 = vmul.f32 %v926, %v990
        %v1014 = vmul.f32 %v928, %v992
        %v1015 = vmul.f32 %v930, %v994
        %v1016 = vmul.f32 %v932, %v996
        %v1017 = vmul.f32 %v934, %v998
        %v1018 = vmul.f32 %v936, %v1000
        %v1019 = vmul.f32 %v938, %v1002
        %v1020 = vmul.f32 %v940, %v1004
        %v1021 = vadd.f32 %v1005, %v1006
        %v1022 = vadd.f32 %v1021, %v1007
        %v1023 = vadd.f32 %v1022, %v1008
        %v1024 = vadd.f32 %v1023, %v1009
        %v1025 = vadd.f32 %v1024, %v1010
        %v1026 = vadd.f32 %v1025, %v1011
        %v1027 = vadd.f32 %v1026, %v1012
        %v1028 = vadd.f32 %v1027, %v1013
        %v1029 = vadd.f32 %v1028, %v1014
        %v1030 = vadd.f32 %v1029, %v1015
        %v1031 = vadd.f32 %v1030, %v1016
        %v1032 = vadd.f32 %v1031, %v1017
        %v1033 = vadd.f32 %v1032, %v1018
        %v1034 = vadd.f32 %v1033, %v1019
        %v1035 = vadd.f32 %v1034, %v1020
        %v1036 = vrot.slane %v1035, 4
        %v1037 = vadd.f32 %v1035, %v1036
        %v1038 = vrot.slane %v1037, 2
        %v1039 = vadd.f32 %v1037, %v1038
        %v1040 = vrot.slane %v1039, 1
        %v1041 = vadd.f32 %v1039, %v1040
        %v1042 = vadd.f32 %v1041, 1e-09
        %v1043 = vrcp.pop %v1042
        %v1044 = vpack.c.bf16 %v715, %v714
        %v1045 = vpack.c.bf16 %v717, %v716
        %v1046 = vpack.c.bf16 %v719, %v718
        %v1047 = vpack.c.bf16 %v721, %v720
        %v1048 = vpack.c.bf16 %v1006, %v1005
        %v1049 = vpack.c.bf16 %v1008, %v1007
        %v1050 = vpack.c.bf16 %v1010, %v1009
        %v1051 = vpack.c.bf16 %v1012, %v1011
        %v1052 = vpack.c.bf16 %v1014, %v1013
        %v1053 = vpack.c.bf16 %v1016, %v1015
        %v1054 = vpack.c.bf16 %v1018, %v1017
        %v1055 = vpack.c.bf16 %v1020, %v1019
        %1056 = vmatprep.subr.bf16.mxu0 0
        %1057 = vmatpush1.bf16.msra.mxu0 %v1048
        %1058 = vmatprep.subr.bf16.mxu0 0
        %1059 = vmatpush1.bf16.msra.mxu0 %v1049
        %1060 = vmatprep.subr.bf16.mxu0 0
        %1061 = vmatpush1.bf16.msra.mxu0 %v1050
        %1062 = vmatprep.subr.bf16.mxu0 0
        %1063 = vmatpush1.bf16.msra.mxu0 %v1051
        %1064 = vmatprep.subr.bf16.mxu0 0
        %1065 = vmatpush1.bf16.msra.mxu0 %v1052
        %1066 = vmatprep.subr.bf16.mxu0 0
        %1067 = vmatpush1.bf16.msra.mxu0 %v1053
        %1068 = vmatprep.subr.bf16.mxu0 0
        %1069 = vmatpush1.bf16.msra.mxu0 %v1054
        %1070 = vmatprep.subr.bf16.mxu0 0
        %1071 = vmatpush1.bf16.msra.mxu0 %v1055
        %1072 = vmatprep.subr.bf16.mxu0 0
        %1073 = vmatpush1.bf16.msra.mxu0 0
        %1074 = vmatprep.subr.bf16.mxu0 0
        %1075 = vmatpush1.bf16.msra.mxu0 0
        %1076 = vmatprep.subr.bf16.mxu0 0
        %1077 = vmatpush1.bf16.msra.mxu0 0
        %1078 = vmatprep.subr.bf16.mxu0 0
        %1079 = vmatpush1.bf16.msra.mxu0 0
        %1080 = vmatprep.subr.bf16.mxu0 0
        %1081 = vmatpush1.bf16.msra.mxu0 0
        %1082 = vmatprep.subr.bf16.mxu0 0
        %1083 = vmatpush1.bf16.msra.mxu0 0
        %1084 = vmatprep.subr.bf16.mxu0 0
        %1085 = vmatpush1.bf16.msra.mxu0 0
        %1086 = vmatprep.subr.bf16.mxu0 0
        %1087 = vmatpush1.bf16.msra.mxu0 0
        %1088 = vmatprep.mubr.bf16.mxu0 0
        %1089 = vmatmul.mubr.bf16.gmra.mrb[0].mxu0 %v1044
        %v1090 = vpop.f32.mrb[0].mxu0
        %v1091 = vadd.f32 0.0, %v1090
        %v1092 = vpop.f32.mrb[0].mxu0
        %v1093 = vpop.f32.mrb[0].mxu0
        %v1094 = vadd.f32 0.0, %v1093
        %v1095 = vpop.f32.mrb[0].mxu0
        %1096 = vmatprep.mubr.bf16.mxu0 0
        %1097 = vmatmul.mubr.bf16.gmra.mrb[0].mxu0 %v1045
        %v1098 = vpop.f32.mrb[0].mxu0
        %v1099 = vadd.f32 0.0, %v1098
        %v1100 = vpop.f32.mrb[0].mxu0
        %v1101 = vpop.f32.mrb[0].mxu0
        %v1102 = vadd.f32 0.0, %v1101
        %v1103 = vpop.f32.mrb[0].mxu0
        %1104 = vmatprep.mubr.bf16.mxu0 0
        %1105 = vmatmul.mubr.bf16.gmra.mrb[0].mxu0 %v1046
        %v1106 = vpop.f32.mrb[0].mxu0
        %v1107 = vadd.f32 0.0, %v1106
        %v1108 = vpop.f32.mrb[0].mxu0
        %v1109 = vpop.f32.mrb[0].mxu0
        %v1110 = vadd.f32 0.0, %v1109
        %v1111 = vpop.f32.mrb[0].mxu0
        %1112 = vmatprep.mubr.bf16.mxu0 0
        %1113 = vmatmul.mubr.bf16.gmra.mrb[0].mxu0 %v1047
        %v1114 = vpop.f32.mrb[0].mxu0
        %v1115 = vadd.f32 0.0, %v1114
        %v1116 = vpop.f32.mrb[0].mxu0
        %v1117 = vpop.f32.mrb[0].mxu0
        %v1118 = vadd.f32 0.0, %v1117
        %v1119 = vpop.f32.mrb[0].mxu0
        %1120 = vdwg.mxu0
        %v1121 = vmul.f32 %v1091, %v1043
        %v1122 = vmul.f32 %v1094, %v1043
        %v1123 = vmul.f32 %v1099, %v1043
        %v1124 = vmul.f32 %v1102, %v1043
        %v1125 = vmul.f32 %v1107, %v1043
        %v1126 = vmul.f32 %v1110, %v1043
        %v1127 = vmul.f32 %v1115, %v1043
        %v1128 = vmul.f32 %v1118, %v1043
        %s1129 = scalar_lea.vmem %s1, 64
        %v1130 = vld [vmem:[%s1129] sm:$0xf]
        %v1131 = vld [vmem:[%s1129 + $0x4] sm:$0xf]
        %v1132 = vld [vmem:[%s1129 + $0x8] sm:$0xf]
        %v1133 = vld [vmem:[%s1129 + $0xc] sm:$0xf]
        %v1134 = vld [vmem:[%s1129 + $0x10] sm:$0xf]
        %v1135 = vld [vmem:[%s1129 + $0x14] sm:$0xf]
        %v1136 = vld [vmem:[%s1129 + $0x18] sm:$0xf]
        %v1137 = vld [vmem:[%s1129 + $0x1c] sm:$0xf]
        %v1138 = vsub.f32 %v530, %v1121
        %v1139 = vsub.f32 %v531, %v1122
        %v1140 = vsub.f32 %v532, %v1123
        %v1141 = vsub.f32 %v533, %v1124
        %v1142 = vsub.f32 %v534, %v1125
        %v1143 = vsub.f32 %v535, %v1126
        %v1144 = vsub.f32 %v536, %v1127
        %v1145 = vsub.f32 %v537, %v1128
        %v1146 = vpack.c.bf16 %v1139, %v1138
        %v1147 = vpack.c.bf16 %v1141, %v1140
        %v1148 = vpack.c.bf16 %v1143, %v1142
        %v1149 = vpack.c.bf16 %v1145, %v1144
        %s1150 = scalar_lea.vmem %s3, 384
        %v1151 = vld [vmem:[%s1150] sm:$0xff]
        %v1152 = vld [vmem:[%s1150 + $0x8] sm:$0xff]
        %v1153 = vld [vmem:[%s1150 + $0x10] sm:$0xff]
        %v1154 = vld [vmem:[%s1150 + $0x18] sm:$0xff]
        %v1155 = vld [vmem:[%s1150 + $0x20] sm:$0xff]
        %v1156 = vld [vmem:[%s1150 + $0x28] sm:$0xff]
        %v1157 = vld [vmem:[%s1150 + $0x30] sm:$0xff]
        %v1158 = vld [vmem:[%s1150 + $0x38] sm:$0xff]
        %1160 = vset.pattern.permute.xlu0 0
        %1161 = vperm.xlu0 %1160, %v1151
        %v1162 = vpop.permute.xlu0 %1161
        %1165 = vset.pattern.permute.xlu0 0
        %1166 = vperm.xlu0 %1165, %v1152
        %v1167 = vpop.permute.xlu0 %1166
        %1170 = vset.pattern.permute.xlu0 0
        %1171 = vperm.xlu0 %1170, %v1153
        %v1172 = vpop.permute.xlu0 %1171
        %1175 = vset.pattern.permute.xlu0 0
        %1176 = vperm.xlu0 %1175, %v1154
        %v1177 = vpop.permute.xlu0 %1176
        %1180 = vset.pattern.permute.xlu0 0
        %1181 = vperm.xlu0 %1180, %v1155
        %v1182 = vpop.permute.xlu0 %1181
        %1185 = vset.pattern.permute.xlu0 0
        %1186 = vperm.xlu0 %1185, %v1156
        %v1187 = vpop.permute.xlu0 %1186
        %1190 = vset.pattern.permute.xlu0 0
        %1191 = vperm.xlu0 %1190, %v1157
        %v1192 = vpop.permute.xlu0 %1191
        %1195 = vset.pattern.permute.xlu0 0
        %1196 = vperm.xlu0 %1195, %v1158
        %v1197 = vpop.permute.xlu0 %1196
        %v1207 = vunpack.c.l.b16 %v1130
        %v1208 = vunpack.c.l.b16 %v1131
        %v1209 = vunpack.c.l.b16 %v1132
        %v1210 = vunpack.c.l.b16 %v1133
        %v1211 = vunpack.c.l.b16 %v1134
        %v1212 = vunpack.c.l.b16 %v1135
        %v1213 = vunpack.c.l.b16 %v1136
        %v1214 = vunpack.c.l.b16 %v1137
        %v1215 = vpack.c.b16 %v1208, %v1207
        %v1216 = vpack.c.b16 %v1210, %v1209
        %v1217 = vpack.c.b16 %v1212, %v1211
        %v1218 = vpack.c.b16 %v1214, %v1213
        %v1220 = vsel %vm285, %v1215, 0
        %v1223 = vsel %vm285, %v1216, 0
        %v1226 = vsel %vm285, %v1217, 0
        %v1229 = vsel %vm285, %v1218, 0
        %1231 = vmatprep.subr.bf16.mxu0 0
        %1232 = vmatpush1.bf16.msra.mxu0 %v1146
        %1233 = vmatprep.subr.bf16.mxu0 0
        %1234 = vmatpush1.bf16.msra.mxu0 %v1147
        %1235 = vmatprep.subr.bf16.mxu0 0
        %1236 = vmatpush1.bf16.msra.mxu0 %v1148
        %1237 = vmatprep.subr.bf16.mxu0 0
        %1238 = vmatpush1.bf16.msra.mxu0 %v1149
        %1239 = vmatprep.subr.bf16.mxu0 0
        %1240 = vmatpush1.bf16.msra.mxu0 0
        %1241 = vmatprep.subr.bf16.mxu0 0
        %1242 = vmatpush1.bf16.msra.mxu0 0
        %1243 = vmatprep.subr.bf16.mxu0 0
        %1244 = vmatpush1.bf16.msra.mxu0 0
        %1245 = vmatprep.subr.bf16.mxu0 0
        %1246 = vmatpush1.bf16.msra.mxu0 0
        %1247 = vmatprep.subr.bf16.mxu0 0
        %1248 = vmatpush1.bf16.msra.mxu0 0
        %1249 = vmatprep.subr.bf16.mxu0 0
        %1250 = vmatpush1.bf16.msra.mxu0 0
        %1251 = vmatprep.subr.bf16.mxu0 0
        %1252 = vmatpush1.bf16.msra.mxu0 0
        %1253 = vmatprep.subr.bf16.mxu0 0
        %1254 = vmatpush1.bf16.msra.mxu0 0
        %1255 = vmatprep.subr.bf16.mxu0 0
        %1256 = vmatpush1.bf16.msra.mxu0 0
        %1257 = vmatprep.subr.bf16.mxu0 0
        %1258 = vmatpush1.bf16.msra.mxu0 0
        %1259 = vmatprep.subr.bf16.mxu0 0
        %1260 = vmatpush1.bf16.msra.mxu0 0
        %1261 = vmatprep.subr.bf16.mxu0 0
        %1262 = vmatpush1.bf16.msra.mxu0 0
        %1263 = vmatprep.mubr.bf16.mxu0 0
        %1264 = vmatmul.mubr.bf16.gmra.mrb[0].mxu0 %v1220
        %v1265 = vpop.f32.mrb[0].mxu0
        %v1266 = vadd.f32 %v1162, %v1265
        %v1267 = vpop.f32.mrb[0].mxu0
        %v1268 = vpop.f32.mrb[0].mxu0
        %v1269 = vadd.f32 %v1167, %v1268
        %v1270 = vpop.f32.mrb[0].mxu0
        %1271 = vmatprep.mubr.bf16.mxu0 0
        %1272 = vmatmul.mubr.bf16.gmra.mrb[0].mxu0 %v1223
        %v1273 = vpop.f32.mrb[0].mxu0
        %v1274 = vadd.f32 %v1172, %v1273
        %v1275 = vpop.f32.mrb[0].mxu0
        %v1276 = vpop.f32.mrb[0].mxu0
        %v1277 = vadd.f32 %v1177, %v1276
        %v1278 = vpop.f32.mrb[0].mxu0
        %1279 = vmatprep.mubr.bf16.mxu0 0
        %1280 = vmatmul.mubr.bf16.gmra.mrb[0].mxu0 %v1226
        %v1281 = vpop.f32.mrb[0].mxu0
        %v1282 = vadd.f32 %v1182, %v1281
        %v1283 = vpop.f32.mrb[0].mxu0
        %v1284 = vpop.f32.mrb[0].mxu0
        %v1285 = vadd.f32 %v1187, %v1284
        %v1286 = vpop.f32.mrb[0].mxu0
        %1287 = vmatprep.mubr.bf16.mxu0 0
        %1288 = vmatmul.mubr.bf16.gmra.mrb[0].mxu0 %v1229
        %v1289 = vpop.f32.mrb[0].mxu0
        %v1290 = vadd.f32 %v1192, %v1289
        %v1291 = vpop.f32.mrb[0].mxu0
        %v1292 = vpop.f32.mrb[0].mxu0
        %v1293 = vadd.f32 %v1197, %v1292
        %v1294 = vpop.f32.mrb[0].mxu0
        %1295 = vdwg.mxu0
        %v1296 = vmax.f32 %v1266, 0.0
        %v1297 = vmax.f32 %v1269, 0.0
        %v1298 = vmax.f32 %v1274, 0.0
        %v1299 = vmax.f32 %v1277, 0.0
        %v1300 = vmax.f32 %v1282, 0.0
        %v1301 = vmax.f32 %v1285, 0.0
        %v1302 = vmax.f32 %v1290, 0.0
        %v1303 = vmax.f32 %v1293, 0.0
        %v1304 = vadd.f32 %v530, %v1296
        %v1305 = vadd.f32 %v531, %v1297
        %v1306 = vadd.f32 %v532, %v1298
        %v1307 = vadd.f32 %v533, %v1299
        %v1308 = vadd.f32 %v534, %v1300
        %v1309 = vadd.f32 %v535, %v1301
        %v1310 = vadd.f32 %v536, %v1302
        %v1311 = vadd.f32 %v537, %v1303
        %1312 = vst [vmem:[%s190] sm:$0xff] %v1304
        %1313 = vst [vmem:[%s190 + $0x8] sm:$0xff] %v1305
        %1314 = vst [vmem:[%s190 + $0x10] sm:$0xff] %v1306
        %1315 = vst [vmem:[%s190 + $0x18] sm:$0xff] %v1307
        %1316 = vst [vmem:[%s190 + $0x20] sm:$0xff] %v1308
        %1317 = vst [vmem:[%s190 + $0x28] sm:$0xff] %v1309
        %1318 = vst [vmem:[%s190 + $0x30] sm:$0xff] %v1310
        %1319 = vst [vmem:[%s190 + $0x38] sm:$0xff] %v1311
        %s1320 = scalar_lea.vmem %s2, 40
        %v1321 = vld [vmem:[%s1320] sm:$0xf]
        %v1322 = vld [vmem:[%s1320 + $0x4] sm:$0xf]
        %v1323 = vld [vmem:[%s1320 + $0x8] sm:$0xf]
        %v1324 = vld [vmem:[%s1320 + $0xc] sm:$0xf]
        %v1325 = vld [vmem:[%s1320 + $0x10] sm:$0xf]
        %v1326 = vld [vmem:[%s1320 + $0x14] sm:$0xf]
        %v1327 = vld [vmem:[%s1320 + $0x18] sm:$0xf]
        %v1328 = vld [vmem:[%s1320 + $0x1c] sm:$0xf]
        %v1329 = vld [vmem:[%s1320 + $0x20] sm:$0xf]
        %v1330 = vld [vmem:[%s1320 + $0x24] sm:$0xf]
        %v1331 = vpack.c.bf16 %v1305, %v1304
        %v1332 = vpack.c.bf16 %v1307, %v1306
        %v1333 = vpack.c.bf16 %v1309, %v1308
        %v1334 = vpack.c.bf16 %v1311, %v1310
        %v1345 = vunpack.c.l.b16 %v1321
        %v1346 = vunpack.c.l.b16 %v1322
        %v1347 = vunpack.c.l.b16 %v1323
        %v1348 = vunpack.c.l.b16 %v1324
        %v1349 = vunpack.c.l.b16 %v1325
        %v1350 = vunpack.c.l.b16 %v1326
        %v1351 = vunpack.c.l.b16 %v1327
        %v1352 = vunpack.c.l.b16 %v1328
        %v1353 = vunpack.c.l.b16 %v1329
        %v1354 = vunpack.c.l.b16 %v1330
        %v1355 = vpack.c.b16 %v1346, %v1345
        %v1356 = vpack.c.b16 %v1348, %v1347
        %v1357 = vpack.c.b16 %v1350, %v1349
        %v1358 = vpack.c.b16 %v1352, %v1351
        %v1359 = vpack.c.b16 %v1354, %v1353
        %v1361 = vsel %vm285, %v1355, 0
        %v1364 = vsel %vm285, %v1356, 0
        %v1367 = vsel %vm285, %v1357, 0
        %v1370 = vsel %vm285, %v1358, 0
        %v1373 = vsel %vm285, %v1359, 0
        %1375 = vmatprep.subr.bf16.mxu0 0
        %1376 = vmatpush1.bf16.msra.mxu0 %v1331
        %1377 = vmatprep.subr.bf16.mxu0 0
        %1378 = vmatpush1.bf16.msra.mxu0 %v1332
        %1379 = vmatprep.subr.bf16.mxu0 0
        %1380 = vmatpush1.bf16.msra.mxu0 %v1333
        %1381 = vmatprep.subr.bf16.mxu0 0
        %1382 = vmatpush1.bf16.msra.mxu0 %v1334
        %1383 = vmatprep.subr.bf16.mxu0 0
        %1384 = vmatpush1.bf16.msra.mxu0 0
        %1385 = vmatprep.subr.bf16.mxu0 0
        %1386 = vmatpush1.bf16.msra.mxu0 0
        %1387 = vmatprep.subr.bf16.mxu0 0
        %1388 = vmatpush1.bf16.msra.mxu0 0
        %1389 = vmatprep.subr.bf16.mxu0 0
        %1390 = vmatpush1.bf16.msra.mxu0 0
        %1391 = vmatprep.subr.bf16.mxu0 0
        %1392 = vmatpush1.bf16.msra.mxu0 0
        %1393 = vmatprep.subr.bf16.mxu0 0
        %1394 = vmatpush1.bf16.msra.mxu0 0
        %1395 = vmatprep.subr.bf16.mxu0 0
        %1396 = vmatpush1.bf16.msra.mxu0 0
        %1397 = vmatprep.subr.bf16.mxu0 0
        %1398 = vmatpush1.bf16.msra.mxu0 0
        %1399 = vmatprep.subr.bf16.mxu0 0
        %1400 = vmatpush1.bf16.msra.mxu0 0
        %1401 = vmatprep.subr.bf16.mxu0 0
        %1402 = vmatpush1.bf16.msra.mxu0 0
        %1403 = vmatprep.subr.bf16.mxu0 0
        %1404 = vmatpush1.bf16.msra.mxu0 0
        %1405 = vmatprep.subr.bf16.mxu0 0
        %1406 = vmatpush1.bf16.msra.mxu0 0
        %1407 = vmatprep.mubr.bf16.mxu0 0
        %1408 = vmatmul.mubr.bf16.gmra.mrb[0].mxu0 %v1361
        %v1409 = vpop.f32.mrb[0].mxu0
        %v1410 = vadd.f32 0.0, %v1409
        %v1411 = vpop.f32.mrb[0].mxu0
        %v1412 = vpop.f32.mrb[0].mxu0
        %v1413 = vadd.f32 0.0, %v1412
        %v1414 = vpop.f32.mrb[0].mxu0
        %1415 = vmatprep.mubr.bf16.mxu0 0
        %1416 = vmatmul.mubr.bf16.gmra.mrb[0].mxu0 %v1364
        %v1417 = vpop.f32.mrb[0].mxu0
        %v1418 = vadd.f32 0.0, %v1417
        %v1419 = vpop.f32.mrb[0].mxu0
        %v1420 = vpop.f32.mrb[0].mxu0
        %v1421 = vadd.f32 0.0, %v1420
        %v1422 = vpop.f32.mrb[0].mxu0
        %1423 = vmatprep.mubr.bf16.mxu0 0
        %1424 = vmatmul.mubr.bf16.gmra.mrb[0].mxu0 %v1367
        %v1425 = vpop.f32.mrb[0].mxu0
        %v1426 = vadd.f32 0.0, %v1425
        %v1427 = vpop.f32.mrb[0].mxu0
        %v1428 = vpop.f32.mrb[0].mxu0
        %v1429 = vadd.f32 0.0, %v1428
        %v1430 = vpop.f32.mrb[0].mxu0
        %1431 = vmatprep.mubr.bf16.mxu0 0
        %1432 = vmatmul.mubr.bf16.gmra.mrb[0].mxu0 %v1370
        %v1433 = vpop.f32.mrb[0].mxu0
        %v1434 = vadd.f32 0.0, %v1433
        %v1435 = vpop.f32.mrb[0].mxu0
        %v1436 = vpop.f32.mrb[0].mxu0
        %v1437 = vadd.f32 0.0, %v1436
        %v1438 = vpop.f32.mrb[0].mxu0
        %1439 = vmatprep.mubr.bf16.mxu0 0
        %1440 = vmatmul.mubr.bf16.gmra.mrb[0].mxu0 %v1373
        %v1441 = vpop.f32.mrb[0].mxu0
        %v1442 = vadd.f32 0.0, %v1441
        %v1443 = vpop.f32.mrb[0].mxu0
        %v1444 = vpop.f32.mrb[0].mxu0
        %v1445 = vadd.f32 0.0, %v1444
        %v1446 = vpop.f32.mrb[0].mxu0
        %1447 = vdwg.mxu0
        %s1448 = scalar_lea.vmem %s3, 192
        %v1449 = vld [vmem:[%s1448] sm:$0xff]
        %v1450 = vld [vmem:[%s1448 + $0x8] sm:$0xff]
        %v1451 = vld [vmem:[%s1448 + $0x10] sm:$0xff]
        %v1452 = vld [vmem:[%s1448 + $0x18] sm:$0xff]
        %v1453 = vld [vmem:[%s1448 + $0x20] sm:$0xff]
        %v1454 = vld [vmem:[%s1448 + $0x28] sm:$0xff]
        %v1455 = vld [vmem:[%s1448 + $0x30] sm:$0xff]
        %v1456 = vld [vmem:[%s1448 + $0x38] sm:$0xff]
        %1458 = vset.pattern.permute.xlu0 0
        %1459 = vperm.xlu0 %1458, %v1449
        %v1460 = vpop.permute.xlu0 %1459
        %1463 = vset.pattern.permute.xlu0 0
        %1464 = vperm.xlu0 %1463, %v1450
        %v1465 = vpop.permute.xlu0 %1464
        %1468 = vset.pattern.permute.xlu0 0
        %1469 = vperm.xlu0 %1468, %v1451
        %v1470 = vpop.permute.xlu0 %1469
        %1473 = vset.pattern.permute.xlu0 0
        %1474 = vperm.xlu0 %1473, %v1452
        %v1475 = vpop.permute.xlu0 %1474
        %1478 = vset.pattern.permute.xlu0 0
        %1479 = vperm.xlu0 %1478, %v1453
        %v1480 = vpop.permute.xlu0 %1479
        %1483 = vset.pattern.permute.xlu0 0
        %1484 = vperm.xlu0 %1483, %v1454
        %v1485 = vpop.permute.xlu0 %1484
        %1488 = vset.pattern.permute.xlu0 0
        %1489 = vperm.xlu0 %1488, %v1455
        %v1490 = vpop.permute.xlu0 %1489
        %1493 = vset.pattern.permute.xlu0 0
        %1494 = vperm.xlu0 %1493, %v1456
        %v1495 = vpop.permute.xlu0 %1494
        %v1497 = vadd.f32 %v1418, %v1460
        %v1498 = vadd.f32 %v1421, %v1465
        %v1499 = vadd.f32 %v1426, %v1470
        %v1500 = vadd.f32 %v1429, %v1475
        %v1501 = vadd.f32 %v1434, %v1480
        %v1502 = vadd.f32 %v1437, %v1485
        %v1503 = vadd.f32 %v1442, %v1490
        %v1504 = vadd.f32 %v1445, %v1495
        %v1505 = vpack.c.bf16 %v1413, %v1410
        %1506 = vxpose.xlu0.c.b16.start [1/8] %v1505, 128
        %1507 = vxpose.xlu0.c.b16.cont [2/8] 0, 128
        %1508 = vxpose.xlu0.c.b16.cont [3/8] 0, 128
        %1509 = vxpose.xlu0.c.b16.cont [4/8] 0, 128
        %1510 = vxpose.xlu0.c.b16.cont [5/8] 0, 128
        %1511 = vxpose.xlu0.c.b16.cont [6/8] 0, 128
        %1512 = vxpose.xlu0.c.b16.cont [7/8] 0, 128
        %1513 = vxpose.xlu0.c.b16.end [8/8] 0, 128
        %v1514 = vpop.trf.xlu0
        %v1515 = vpop.trf.xlu0
        %v1516 = vpop.trf.xlu0
        %v1517 = vpop.trf.xlu0
        %v1518 = vpop.trf.xlu0
        %v1519 = vpop.trf.xlu0
        %v1520 = vpop.trf.xlu0
        %v1521 = vpop.trf.xlu0
        %v1523 = vsel %vm739, %v1514, 0
        %v1526 = vsel %vm739, %v1515, 0
        %v1529 = vsel %vm739, %v1516, 0
        %v1532 = vsel %vm739, %v1517, 0
        %v1535 = vsel %vm739, %v1518, 0
        %v1538 = vsel %vm739, %v1519, 0
        %v1541 = vsel %vm739, %v1520, 0
        %v1544 = vsel %vm739, %v1521, 0
        %1546 = vmatprep.subr.bf16.mxu0 0
        %1547 = vmatpush1.bf16.msra.mxu0 %v1505
        %1548 = vmatprep.subr.bf16.mxu0 0
        %1549 = vmatpush1.bf16.msra.mxu0 0
        %1550 = vmatprep.subr.bf16.mxu0 0
        %1551 = vmatpush1.bf16.msra.mxu0 0
        %1552 = vmatprep.subr.bf16.mxu0 0
        %1553 = vmatpush1.bf16.msra.mxu0 0
        %1554 = vmatprep.subr.bf16.mxu0 0
        %1555 = vmatpush1.bf16.msra.mxu0 0
        %1556 = vmatprep.subr.bf16.mxu0 0
        %1557 = vmatpush1.bf16.msra.mxu0 0
        %1558 = vmatprep.subr.bf16.mxu0 0
        %1559 = vmatpush1.bf16.msra.mxu0 0
        %1560 = vmatprep.subr.bf16.mxu0 0
        %1561 = vmatpush1.bf16.msra.mxu0 0
        %1562 = vmatprep.subr.bf16.mxu0 0
        %1563 = vmatpush1.bf16.msra.mxu0 0
        %1564 = vmatprep.subr.bf16.mxu0 0
        %1565 = vmatpush1.bf16.msra.mxu0 0
        %1566 = vmatprep.subr.bf16.mxu0 0
        %1567 = vmatpush1.bf16.msra.mxu0 0
        %1568 = vmatprep.subr.bf16.mxu0 0
        %1569 = vmatpush1.bf16.msra.mxu0 0
        %1570 = vmatprep.subr.bf16.mxu0 0
        %1571 = vmatpush1.bf16.msra.mxu0 0
        %1572 = vmatprep.subr.bf16.mxu0 0
        %1573 = vmatpush1.bf16.msra.mxu0 0
        %1574 = vmatprep.subr.bf16.mxu0 0
        %1575 = vmatpush1.bf16.msra.mxu0 0
        %1576 = vmatprep.subr.bf16.mxu0 0
        %1577 = vmatpush1.bf16.msra.mxu0 0
        %1578 = vmatprep.mubr.bf16.mxu0 0
        %1579 = vmatmul.mubr.bf16.gmra.mrb[0].mxu0 %v1523
        %v1580 = vpop.f32.mrb[0].mxu0
        %v1581 = vadd.f32 0.0, %v1580
        %v1582 = vpop.f32.mrb[0].mxu0
        %v1583 = vpop.f32.mrb[0].mxu0
        %v1584 = vadd.f32 0.0, %v1583
        %v1585 = vpop.f32.mrb[0].mxu0
        %1586 = vmatprep.mubr.bf16.mxu0 0
        %1587 = vmatmul.mubr.bf16.gmra.mrb[0].mxu0 %v1526
        %v1588 = vpop.f32.mrb[0].mxu0
        %v1589 = vadd.f32 0.0, %v1588
        %v1590 = vpop.f32.mrb[0].mxu0
        %v1591 = vpop.f32.mrb[0].mxu0
        %v1592 = vadd.f32 0.0, %v1591
        %v1593 = vpop.f32.mrb[0].mxu0
        %1594 = vmatprep.mubr.bf16.mxu0 0
        %1595 = vmatmul.mubr.bf16.gmra.mrb[0].mxu0 %v1529
        %v1596 = vpop.f32.mrb[0].mxu0
        %v1597 = vadd.f32 0.0, %v1596
        %v1598 = vpop.f32.mrb[0].mxu0
        %v1599 = vpop.f32.mrb[0].mxu0
        %v1600 = vadd.f32 0.0, %v1599
        %v1601 = vpop.f32.mrb[0].mxu0
        %1602 = vmatprep.mubr.bf16.mxu0 0
        %1603 = vmatmul.mubr.bf16.gmra.mrb[0].mxu0 %v1532
        %v1604 = vpop.f32.mrb[0].mxu0
        %v1605 = vadd.f32 0.0, %v1604
        %v1606 = vpop.f32.mrb[0].mxu0
        %v1607 = vpop.f32.mrb[0].mxu0
        %v1608 = vadd.f32 0.0, %v1607
        %v1609 = vpop.f32.mrb[0].mxu0
        %1610 = vmatprep.mubr.bf16.mxu0 0
        %1611 = vmatmul.mubr.bf16.gmra.mrb[0].mxu0 %v1535
        %v1612 = vpop.f32.mrb[0].mxu0
        %v1613 = vadd.f32 0.0, %v1612
        %v1614 = vpop.f32.mrb[0].mxu0
        %v1615 = vpop.f32.mrb[0].mxu0
        %v1616 = vadd.f32 0.0, %v1615
        %v1617 = vpop.f32.mrb[0].mxu0
        %1618 = vmatprep.mubr.bf16.mxu0 0
        %1619 = vmatmul.mubr.bf16.gmra.mrb[0].mxu0 %v1538
        %v1620 = vpop.f32.mrb[0].mxu0
        %v1621 = vadd.f32 0.0, %v1620
        %v1622 = vpop.f32.mrb[0].mxu0
        %v1623 = vpop.f32.mrb[0].mxu0
        %v1624 = vadd.f32 0.0, %v1623
        %v1625 = vpop.f32.mrb[0].mxu0
        %1626 = vmatprep.mubr.bf16.mxu0 0
        %1627 = vmatmul.mubr.bf16.gmra.mrb[0].mxu0 %v1541
        %v1628 = vpop.f32.mrb[0].mxu0
        %v1629 = vadd.f32 0.0, %v1628
        %v1630 = vpop.f32.mrb[0].mxu0
        %v1631 = vpop.f32.mrb[0].mxu0
        %v1632 = vadd.f32 0.0, %v1631
        %v1633 = vpop.f32.mrb[0].mxu0
        %1634 = vmatprep.mubr.bf16.mxu0 0
        %1635 = vmatmul.mubr.bf16.gmra.mrb[0].mxu0 %v1544
        %v1636 = vpop.f32.mrb[0].mxu0
        %v1637 = vadd.f32 0.0, %v1636
        %v1638 = vpop.f32.mrb[0].mxu0
        %v1639 = vpop.f32.mrb[0].mxu0
        %v1640 = vadd.f32 0.0, %v1639
        %v1641 = vpop.f32.mrb[0].mxu0
        %1642 = vdwg.mxu0
        %1643 = vmax.xlane.f32.xlu0 %v1581
        %v1644 = vpop.xlane.xlu0 %1643
        %1645 = vmax.xlane.f32.xlu0 %v1584
        %v1646 = vpop.xlane.xlu0 %1645
        %1647 = vmax.xlane.f32.xlu0 %v1589
        %v1648 = vpop.xlane.xlu0 %1647
        %1649 = vmax.xlane.f32.xlu0 %v1592
        %v1650 = vpop.xlane.xlu0 %1649
        %1651 = vmax.xlane.f32.xlu0 %v1597
        %v1652 = vpop.xlane.xlu0 %1651
        %1653 = vmax.xlane.f32.xlu0 %v1600
        %v1654 = vpop.xlane.xlu0 %1653
        %1655 = vmax.xlane.f32.xlu0 %v1605
        %v1656 = vpop.xlane.xlu0 %1655
        %1657 = vmax.xlane.f32.xlu0 %v1608
        %v1658 = vpop.xlane.xlu0 %1657
        %1659 = vmax.xlane.f32.xlu0 %v1613
        %v1660 = vpop.xlane.xlu0 %1659
        %1661 = vmax.xlane.f32.xlu0 %v1616
        %v1662 = vpop.xlane.xlu0 %1661
        %1663 = vmax.xlane.f32.xlu0 %v1621
        %v1664 = vpop.xlane.xlu0 %1663
        %1665 = vmax.xlane.f32.xlu0 %v1624
        %v1666 = vpop.xlane.xlu0 %1665
        %1667 = vmax.xlane.f32.xlu0 %v1629
        %v1668 = vpop.xlane.xlu0 %1667
        %1669 = vmax.xlane.f32.xlu0 %v1632
        %v1670 = vpop.xlane.xlu0 %1669
        %1671 = vmax.xlane.f32.xlu0 %v1637
        %v1672 = vpop.xlane.xlu0 %1671
        %1673 = vmax.xlane.f32.xlu0 %v1640
        %v1674 = vpop.xlane.xlu0 %1673
        %v1675 = vsub.f32 %v1581, %v1644
        %v1676 = vsub.f32 %v1584, %v1646
        %v1677 = vsub.f32 %v1589, %v1648
        %v1678 = vsub.f32 %v1592, %v1650
        %v1679 = vsub.f32 %v1597, %v1652
        %v1680 = vsub.f32 %v1600, %v1654
        %v1681 = vsub.f32 %v1605, %v1656
        %v1682 = vsub.f32 %v1608, %v1658
        %v1683 = vsub.f32 %v1613, %v1660
        %v1684 = vsub.f32 %v1616, %v1662
        %v1685 = vsub.f32 %v1621, %v1664
        %v1686 = vsub.f32 %v1624, %v1666
        %v1687 = vsub.f32 %v1629, %v1668
        %v1688 = vsub.f32 %v1632, %v1670
        %v1689 = vsub.f32 %v1637, %v1672
        %v1690 = vsub.f32 %v1640, %v1674
        %v1691 = vmul.f32 %v1675, 1.442695
        %v1692 = vpow.pop %v1691
        %v1693 = vmul.f32 %v1676, 1.442695
        %v1694 = vpow.pop %v1693
        %v1695 = vmul.f32 %v1677, 1.442695
        %v1696 = vpow.pop %v1695
        %v1697 = vmul.f32 %v1678, 1.442695
        %v1698 = vpow.pop %v1697
        %v1699 = vmul.f32 %v1679, 1.442695
        %v1700 = vpow.pop %v1699
        %v1701 = vmul.f32 %v1680, 1.442695
        %v1702 = vpow.pop %v1701
        %v1703 = vmul.f32 %v1681, 1.442695
        %v1704 = vpow.pop %v1703
        %v1705 = vmul.f32 %v1682, 1.442695
        %v1706 = vpow.pop %v1705
        %v1707 = vmul.f32 %v1683, 1.442695
        %v1708 = vpow.pop %v1707
        %v1709 = vmul.f32 %v1684, 1.442695
        %v1710 = vpow.pop %v1709
        %v1711 = vmul.f32 %v1685, 1.442695
        %v1712 = vpow.pop %v1711
        %v1713 = vmul.f32 %v1686, 1.442695
        %v1714 = vpow.pop %v1713
        %v1715 = vmul.f32 %v1687, 1.442695
        %v1716 = vpow.pop %v1715
        %v1717 = vmul.f32 %v1688, 1.442695
        %v1718 = vpow.pop %v1717
        %v1719 = vmul.f32 %v1689, 1.442695
        %v1720 = vpow.pop %v1719
        %v1721 = vmul.f32 %v1690, 1.442695
        %v1722 = vpow.pop %v1721
        %1723 = vadd.xlane.f32.xlu0 %v1692
        %v1724 = vpop.xlane.xlu0 %1723
        %1725 = vadd.xlane.f32.xlu0 %v1694
        %v1726 = vpop.xlane.xlu0 %1725
        %1727 = vadd.xlane.f32.xlu0 %v1696
        %v1728 = vpop.xlane.xlu0 %1727
        %1729 = vadd.xlane.f32.xlu0 %v1698
        %v1730 = vpop.xlane.xlu0 %1729
        %1731 = vadd.xlane.f32.xlu0 %v1700
        %v1732 = vpop.xlane.xlu0 %1731
        %1733 = vadd.xlane.f32.xlu0 %v1702
        %v1734 = vpop.xlane.xlu0 %1733
        %1735 = vadd.xlane.f32.xlu0 %v1704
        %v1736 = vpop.xlane.xlu0 %1735
        %1737 = vadd.xlane.f32.xlu0 %v1706
        %v1738 = vpop.xlane.xlu0 %1737
        %1739 = vadd.xlane.f32.xlu0 %v1708
        %v1740 = vpop.xlane.xlu0 %1739
        %1741 = vadd.xlane.f32.xlu0 %v1710
        %v1742 = vpop.xlane.xlu0 %1741
        %1743 = vadd.xlane.f32.xlu0 %v1712
        %v1744 = vpop.xlane.xlu0 %1743
        %1745 = vadd.xlane.f32.xlu0 %v1714
        %v1746 = vpop.xlane.xlu0 %1745
        %1747 = vadd.xlane.f32.xlu0 %v1716
        %v1748 = vpop.xlane.xlu0 %1747
        %1749 = vadd.xlane.f32.xlu0 %v1718
        %v1750 = vpop.xlane.xlu0 %1749
        %1751 = vadd.xlane.f32.xlu0 %v1720
        %v1752 = vpop.xlane.xlu0 %1751
        %1753 = vadd.xlane.f32.xlu0 %v1722
        %v1754 = vpop.xlane.xlu0 %1753
        %v1755 = vrcp.pop %v1724
        %v1756 = vmul.f32 1.0, %v1755
        %v1757 = vrcp.pop %v1726
        %v1758 = vmul.f32 1.0, %v1757
        %v1759 = vrcp.pop %v1728
        %v1760 = vmul.f32 1.0, %v1759
        %v1761 = vrcp.pop %v1730
        %v1762 = vmul.f32 1.0, %v1761
        %v1763 = vrcp.pop %v1732
        %v1764 = vmul.f32 1.0, %v1763
        %v1765 = vrcp.pop %v1734
        %v1766 = vmul.f32 1.0, %v1765
        %v1767 = vrcp.pop %v1736
        %v1768 = vmul.f32 1.0, %v1767
        %v1769 = vrcp.pop %v1738
        %v1770 = vmul.f32 1.0, %v1769
        %v1771 = vrcp.pop %v1740
        %v1772 = vmul.f32 1.0, %v1771
        %v1773 = vrcp.pop %v1742
        %v1774 = vmul.f32 1.0, %v1773
        %v1775 = vrcp.pop %v1744
        %v1776 = vmul.f32 1.0, %v1775
        %v1777 = vrcp.pop %v1746
        %v1778 = vmul.f32 1.0, %v1777
        %v1779 = vrcp.pop %v1748
        %v1780 = vmul.f32 1.0, %v1779
        %v1781 = vrcp.pop %v1750
        %v1782 = vmul.f32 1.0, %v1781
        %v1783 = vrcp.pop %v1752
        %v1784 = vmul.f32 1.0, %v1783
        %v1785 = vrcp.pop %v1754
        %v1786 = vmul.f32 1.0, %v1785
        %v1787 = vmul.f32 %v1692, %v1756
        %v1788 = vmul.f32 %v1694, %v1758
        %v1789 = vmul.f32 %v1696, %v1760
        %v1790 = vmul.f32 %v1698, %v1762
        %v1791 = vmul.f32 %v1700, %v1764
        %v1792 = vmul.f32 %v1702, %v1766
        %v1793 = vmul.f32 %v1704, %v1768
        %v1794 = vmul.f32 %v1706, %v1770
        %v1795 = vmul.f32 %v1708, %v1772
        %v1796 = vmul.f32 %v1710, %v1774
        %v1797 = vmul.f32 %v1712, %v1776
        %v1798 = vmul.f32 %v1714, %v1778
        %v1799 = vmul.f32 %v1716, %v1780
        %v1800 = vmul.f32 %v1718, %v1782
        %v1801 = vmul.f32 %v1720, %v1784
        %v1802 = vmul.f32 %v1722, %v1786
        %v1803 = vadd.f32 %v1787, %v1788
        %v1804 = vadd.f32 %v1803, %v1789
        %v1805 = vadd.f32 %v1804, %v1790
        %v1806 = vadd.f32 %v1805, %v1791
        %v1807 = vadd.f32 %v1806, %v1792
        %v1808 = vadd.f32 %v1807, %v1793
        %v1809 = vadd.f32 %v1808, %v1794
        %v1810 = vadd.f32 %v1809, %v1795
        %v1811 = vadd.f32 %v1810, %v1796
        %v1812 = vadd.f32 %v1811, %v1797
        %v1813 = vadd.f32 %v1812, %v1798
        %v1814 = vadd.f32 %v1813, %v1799
        %v1815 = vadd.f32 %v1814, %v1800
        %v1816 = vadd.f32 %v1815, %v1801
        %v1817 = vadd.f32 %v1816, %v1802
        %v1818 = vrot.slane %v1817, 4
        %v1819 = vadd.f32 %v1817, %v1818
        %v1820 = vrot.slane %v1819, 2
        %v1821 = vadd.f32 %v1819, %v1820
        %v1822 = vrot.slane %v1821, 1
        %v1823 = vadd.f32 %v1821, %v1822
        %v1824 = vadd.f32 %v1823, 1e-09
        %v1825 = vrcp.pop %v1824
        %v1826 = vpack.c.bf16 %v1498, %v1497
        %v1827 = vpack.c.bf16 %v1500, %v1499
        %v1828 = vpack.c.bf16 %v1502, %v1501
        %v1829 = vpack.c.bf16 %v1504, %v1503
        %v1830 = vpack.c.bf16 %v1788, %v1787
        %v1831 = vpack.c.bf16 %v1790, %v1789
        %v1832 = vpack.c.bf16 %v1792, %v1791
        %v1833 = vpack.c.bf16 %v1794, %v1793
        %v1834 = vpack.c.bf16 %v1796, %v1795
        %v1835 = vpack.c.bf16 %v1798, %v1797
        %v1836 = vpack.c.bf16 %v1800, %v1799
        %v1837 = vpack.c.bf16 %v1802, %v1801
        %1838 = vmatprep.subr.bf16.mxu0 0
        %1839 = vmatpush1.bf16.msra.mxu0 %v1830
        %1840 = vmatprep.subr.bf16.mxu0 0
        %1841 = vmatpush1.bf16.msra.mxu0 %v1831
        %1842 = vmatprep.subr.bf16.mxu0 0
        %1843 = vmatpush1.bf16.msra.mxu0 %v1832
        %1844 = vmatprep.subr.bf16.mxu0 0
        %1845 = vmatpush1.bf16.msra.mxu0 %v1833
        %1846 = vmatprep.subr.bf16.mxu0 0
        %1847 = vmatpush1.bf16.msra.mxu0 %v1834
        %1848 = vmatprep.subr.bf16.mxu0 0
        %1849 = vmatpush1.bf16.msra.mxu0 %v1835
        %1850 = vmatprep.subr.bf16.mxu0 0
        %1851 = vmatpush1.bf16.msra.mxu0 %v1836
        %1852 = vmatprep.subr.bf16.mxu0 0
        %1853 = vmatpush1.bf16.msra.mxu0 %v1837
        %1854 = vmatprep.subr.bf16.mxu0 0
        %1855 = vmatpush1.bf16.msra.mxu0 0
        %1856 = vmatprep.subr.bf16.mxu0 0
        %1857 = vmatpush1.bf16.msra.mxu0 0
        %1858 = vmatprep.subr.bf16.mxu0 0
        %1859 = vmatpush1.bf16.msra.mxu0 0
        %1860 = vmatprep.subr.bf16.mxu0 0
        %1861 = vmatpush1.bf16.msra.mxu0 0
        %1862 = vmatprep.subr.bf16.mxu0 0
        %1863 = vmatpush1.bf16.msra.mxu0 0
        %1864 = vmatprep.subr.bf16.mxu0 0
        %1865 = vmatpush1.bf16.msra.mxu0 0
        %1866 = vmatprep.subr.bf16.mxu0 0
        %1867 = vmatpush1.bf16.msra.mxu0 0
        %1868 = vmatprep.subr.bf16.mxu0 0
        %1869 = vmatpush1.bf16.msra.mxu0 0
        %1870 = vmatprep.mubr.bf16.mxu0 0
        %1871 = vmatmul.mubr.bf16.gmra.mrb[0].mxu0 %v1826
        %v1872 = vpop.f32.mrb[0].mxu0
        %v1873 = vadd.f32 0.0, %v1872
        %v1874 = vpop.f32.mrb[0].mxu0
        %v1875 = vpop.f32.mrb[0].mxu0
        %v1876 = vadd.f32 0.0, %v1875
        %v1877 = vpop.f32.mrb[0].mxu0
        %1878 = vmatprep.mubr.bf16.mxu0 0
        %1879 = vmatmul.mubr.bf16.gmra.mrb[0].mxu0 %v1827
        %v1880 = vpop.f32.mrb[0].mxu0
        %v1881 = vadd.f32 0.0, %v1880
        %v1882 = vpop.f32.mrb[0].mxu0
        %v1883 = vpop.f32.mrb[0].mxu0
        %v1884 = vadd.f32 0.0, %v1883
        %v1885 = vpop.f32.mrb[0].mxu0
        %1886 = vmatprep.mubr.bf16.mxu0 0
        %1887 = vmatmul.mubr.bf16.gmra.mrb[0].mxu0 %v1828
        %v1888 = vpop.f32.mrb[0].mxu0
        %v1889 = vadd.f32 0.0, %v1888
        %v1890 = vpop.f32.mrb[0].mxu0
        %v1891 = vpop.f32.mrb[0].mxu0
        %v1892 = vadd.f32 0.0, %v1891
        %v1893 = vpop.f32.mrb[0].mxu0
        %1894 = vmatprep.mubr.bf16.mxu0 0
        %1895 = vmatmul.mubr.bf16.gmra.mrb[0].mxu0 %v1829
        %v1896 = vpop.f32.mrb[0].mxu0
        %v1897 = vadd.f32 0.0, %v1896
        %v1898 = vpop.f32.mrb[0].mxu0
        %v1899 = vpop.f32.mrb[0].mxu0
        %v1900 = vadd.f32 0.0, %v1899
        %v1901 = vpop.f32.mrb[0].mxu0
        %1902 = vdwg.mxu0
        %v1903 = vmul.f32 %v1873, %v1825
        %v1904 = vmul.f32 %v1876, %v1825
        %v1905 = vmul.f32 %v1881, %v1825
        %v1906 = vmul.f32 %v1884, %v1825
        %v1907 = vmul.f32 %v1889, %v1825
        %v1908 = vmul.f32 %v1892, %v1825
        %v1909 = vmul.f32 %v1897, %v1825
        %v1910 = vmul.f32 %v1900, %v1825
        %s1911 = scalar_lea.vmem %s1, 96
        %v1912 = vld [vmem:[%s1911] sm:$0xf]
        %v1913 = vld [vmem:[%s1911 + $0x4] sm:$0xf]
        %v1914 = vld [vmem:[%s1911 + $0x8] sm:$0xf]
        %v1915 = vld [vmem:[%s1911 + $0xc] sm:$0xf]
        %v1916 = vld [vmem:[%s1911 + $0x10] sm:$0xf]
        %v1917 = vld [vmem:[%s1911 + $0x14] sm:$0xf]
        %v1918 = vld [vmem:[%s1911 + $0x18] sm:$0xf]
        %v1919 = vld [vmem:[%s1911 + $0x1c] sm:$0xf]
        %v1920 = vsub.f32 %v1304, %v1903
        %v1921 = vsub.f32 %v1305, %v1904
        %v1922 = vsub.f32 %v1306, %v1905
        %v1923 = vsub.f32 %v1307, %v1906
        %v1924 = vsub.f32 %v1308, %v1907
        %v1925 = vsub.f32 %v1309, %v1908
        %v1926 = vsub.f32 %v1310, %v1909
        %v1927 = vsub.f32 %v1311, %v1910
        %v1928 = vpack.c.bf16 %v1921, %v1920
        %v1929 = vpack.c.bf16 %v1923, %v1922
        %v1930 = vpack.c.bf16 %v1925, %v1924
        %v1931 = vpack.c.bf16 %v1927, %v1926
        %s1932 = scalar_lea.vmem %s3, 448
        %v1933 = vld [vmem:[%s1932] sm:$0xff]
        %v1934 = vld [vmem:[%s1932 + $0x8] sm:$0xff]
        %v1935 = vld [vmem:[%s1932 + $0x10] sm:$0xff]
        %v1936 = vld [vmem:[%s1932 + $0x18] sm:$0xff]
        %v1937 = vld [vmem:[%s1932 + $0x20] sm:$0xff]
        %v1938 = vld [vmem:[%s1932 + $0x28] sm:$0xff]
        %v1939 = vld [vmem:[%s1932 + $0x30] sm:$0xff]
        %v1940 = vld [vmem:[%s1932 + $0x38] sm:$0xff]
        %1942 = vset.pattern.permute.xlu0 0
        %1943 = vperm.xlu0 %1942, %v1933
        %v1944 = vpop.permute.xlu0 %1943
        %1947 = vset.pattern.permute.xlu0 0
        %1948 = vperm.xlu0 %1947, %v1934
        %v1949 = vpop.permute.xlu0 %1948
        %1952 = vset.pattern.permute.xlu0 0
        %1953 = vperm.xlu0 %1952, %v1935
        %v1954 = vpop.permute.xlu0 %1953
        %1957 = vset.pattern.permute.xlu0 0
        %1958 = vperm.xlu0 %1957, %v1936
        %v1959 = vpop.permute.xlu0 %1958
        %1962 = vset.pattern.permute.xlu0 0
        %1963 = vperm.xlu0 %1962, %v1937
        %v1964 = vpop.permute.xlu0 %1963
        %1967 = vset.pattern.permute.xlu0 0
        %1968 = vperm.xlu0 %1967, %v1938
        %v1969 = vpop.permute.xlu0 %1968
        %1972 = vset.pattern.permute.xlu0 0
        %1973 = vperm.xlu0 %1972, %v1939
        %v1974 = vpop.permute.xlu0 %1973
        %1977 = vset.pattern.permute.xlu0 0
        %1978 = vperm.xlu0 %1977, %v1940
        %v1979 = vpop.permute.xlu0 %1978
        %v1989 = vunpack.c.l.b16 %v1912
        %v1990 = vunpack.c.l.b16 %v1913
        %v1991 = vunpack.c.l.b16 %v1914
        %v1992 = vunpack.c.l.b16 %v1915
        %v1993 = vunpack.c.l.b16 %v1916
        %v1994 = vunpack.c.l.b16 %v1917
        %v1995 = vunpack.c.l.b16 %v1918
        %v1996 = vunpack.c.l.b16 %v1919
        %v1997 = vpack.c.b16 %v1990, %v1989
        %v1998 = vpack.c.b16 %v1992, %v1991
        %v1999 = vpack.c.b16 %v1994, %v1993
        %v2000 = vpack.c.b16 %v1996, %v1995
        %v2002 = vsel %vm285, %v1997, 0
        %v2005 = vsel %vm285, %v1998, 0
        %v2008 = vsel %vm285, %v1999, 0
        %v2011 = vsel %vm285, %v2000, 0
        %2013 = vmatprep.subr.bf16.mxu0 0
        %2014 = vmatpush1.bf16.msra.mxu0 %v1928
        %2015 = vmatprep.subr.bf16.mxu0 0
        %2016 = vmatpush1.bf16.msra.mxu0 %v1929
        %2017 = vmatprep.subr.bf16.mxu0 0
        %2018 = vmatpush1.bf16.msra.mxu0 %v1930
        %2019 = vmatprep.subr.bf16.mxu0 0
        %2020 = vmatpush1.bf16.msra.mxu0 %v1931
        %2021 = vmatprep.subr.bf16.mxu0 0
        %2022 = vmatpush1.bf16.msra.mxu0 0
        %2023 = vmatprep.subr.bf16.mxu0 0
        %2024 = vmatpush1.bf16.msra.mxu0 0
        %2025 = vmatprep.subr.bf16.mxu0 0
        %2026 = vmatpush1.bf16.msra.mxu0 0
        %2027 = vmatprep.subr.bf16.mxu0 0
        %2028 = vmatpush1.bf16.msra.mxu0 0
        %2029 = vmatprep.subr.bf16.mxu0 0
        %2030 = vmatpush1.bf16.msra.mxu0 0
        %2031 = vmatprep.subr.bf16.mxu0 0
        %2032 = vmatpush1.bf16.msra.mxu0 0
        %2033 = vmatprep.subr.bf16.mxu0 0
        %2034 = vmatpush1.bf16.msra.mxu0 0
        %2035 = vmatprep.subr.bf16.mxu0 0
        %2036 = vmatpush1.bf16.msra.mxu0 0
        %2037 = vmatprep.subr.bf16.mxu0 0
        %2038 = vmatpush1.bf16.msra.mxu0 0
        %2039 = vmatprep.subr.bf16.mxu0 0
        %2040 = vmatpush1.bf16.msra.mxu0 0
        %2041 = vmatprep.subr.bf16.mxu0 0
        %2042 = vmatpush1.bf16.msra.mxu0 0
        %2043 = vmatprep.subr.bf16.mxu0 0
        %2044 = vmatpush1.bf16.msra.mxu0 0
        %2045 = vmatprep.mubr.bf16.mxu0 0
        %2046 = vmatmul.mubr.bf16.gmra.mrb[0].mxu0 %v2002
        %v2047 = vpop.f32.mrb[0].mxu0
        %v2048 = vadd.f32 %v1944, %v2047
        %v2049 = vpop.f32.mrb[0].mxu0
        %v2050 = vpop.f32.mrb[0].mxu0
        %v2051 = vadd.f32 %v1949, %v2050
        %v2052 = vpop.f32.mrb[0].mxu0
        %2053 = vmatprep.mubr.bf16.mxu0 0
        %2054 = vmatmul.mubr.bf16.gmra.mrb[0].mxu0 %v2005
        %v2055 = vpop.f32.mrb[0].mxu0
        %v2056 = vadd.f32 %v1954, %v2055
        %v2057 = vpop.f32.mrb[0].mxu0
        %v2058 = vpop.f32.mrb[0].mxu0
        %v2059 = vadd.f32 %v1959, %v2058
        %v2060 = vpop.f32.mrb[0].mxu0
        %2061 = vmatprep.mubr.bf16.mxu0 0
        %2062 = vmatmul.mubr.bf16.gmra.mrb[0].mxu0 %v2008
        %v2063 = vpop.f32.mrb[0].mxu0
        %v2064 = vadd.f32 %v1964, %v2063
        %v2065 = vpop.f32.mrb[0].mxu0
        %v2066 = vpop.f32.mrb[0].mxu0
        %v2067 = vadd.f32 %v1969, %v2066
        %v2068 = vpop.f32.mrb[0].mxu0
        %2069 = vmatprep.mubr.bf16.mxu0 0
        %2070 = vmatmul.mubr.bf16.gmra.mrb[0].mxu0 %v2011
        %v2071 = vpop.f32.mrb[0].mxu0
        %v2072 = vadd.f32 %v1974, %v2071
        %v2073 = vpop.f32.mrb[0].mxu0
        %v2074 = vpop.f32.mrb[0].mxu0
        %v2075 = vadd.f32 %v1979, %v2074
        %v2076 = vpop.f32.mrb[0].mxu0
        %2077 = vdwg.mxu0
        %v2078 = vmax.f32 %v2048, 0.0
        %v2079 = vmax.f32 %v2051, 0.0
        %v2080 = vmax.f32 %v2056, 0.0
        %v2081 = vmax.f32 %v2059, 0.0
        %v2082 = vmax.f32 %v2064, 0.0
        %v2083 = vmax.f32 %v2067, 0.0
        %v2084 = vmax.f32 %v2072, 0.0
        %v2085 = vmax.f32 %v2075, 0.0
        %v2086 = vadd.f32 %v1304, %v2078
        %v2087 = vadd.f32 %v1305, %v2079
        %v2088 = vadd.f32 %v1306, %v2080
        %v2089 = vadd.f32 %v1307, %v2081
        %v2090 = vadd.f32 %v1308, %v2082
        %v2091 = vadd.f32 %v1309, %v2083
        %v2092 = vadd.f32 %v1310, %v2084
        %v2093 = vadd.f32 %v1311, %v2085
        %s2094 = scalar_lea.vmem %s190, 64 [#allocation2]
        %2095 = vst [vmem:[%s2094] sm:$0xff] %v2086
        %2096 = vst [vmem:[%s2094 + $0x8] sm:$0xff] %v2087
        %2097 = vst [vmem:[%s2094 + $0x10] sm:$0xff] %v2088
        %2098 = vst [vmem:[%s2094 + $0x18] sm:$0xff] %v2089
        %2099 = vst [vmem:[%s2094 + $0x20] sm:$0xff] %v2090
        %2100 = vst [vmem:[%s2094 + $0x28] sm:$0xff] %v2091
        %2101 = vst [vmem:[%s2094 + $0x30] sm:$0xff] %v2092
        %2102 = vst [vmem:[%s2094 + $0x38] sm:$0xff] %v2093
        %s2103 = scalar_lea.vmem %s2, 80
        %v2104 = vld [vmem:[%s2103] sm:$0xf]
        %v2105 = vld [vmem:[%s2103 + $0x4] sm:$0xf]
        %v2106 = vld [vmem:[%s2103 + $0x8] sm:$0xf]
        %v2107 = vld [vmem:[%s2103 + $0xc] sm:$0xf]
        %v2108 = vld [vmem:[%s2103 + $0x10] sm:$0xf]
        %v2109 = vld [vmem:[%s2103 + $0x14] sm:$0xf]
        %v2110 = vld [vmem:[%s2103 + $0x18] sm:$0xf]
        %v2111 = vld [vmem:[%s2103 + $0x1c] sm:$0xf]
        %v2112 = vld [vmem:[%s2103 + $0x20] sm:$0xf]
        %v2113 = vld [vmem:[%s2103 + $0x24] sm:$0xf]
        %v2114 = vpack.c.bf16 %v2087, %v2086
        %v2115 = vpack.c.bf16 %v2089, %v2088
        %v2116 = vpack.c.bf16 %v2091, %v2090
        %v2117 = vpack.c.bf16 %v2093, %v2092
        %v2128 = vunpack.c.l.b16 %v2104
        %v2129 = vunpack.c.l.b16 %v2105
        %v2130 = vunpack.c.l.b16 %v2106
        %v2131 = vunpack.c.l.b16 %v2107
        %v2132 = vunpack.c.l.b16 %v2108
        %v2133 = vunpack.c.l.b16 %v2109
        %v2134 = vunpack.c.l.b16 %v2110
        %v2135 = vunpack.c.l.b16 %v2111
        %v2136 = vunpack.c.l.b16 %v2112
        %v2137 = vunpack.c.l.b16 %v2113
        %v2138 = vpack.c.b16 %v2129, %v2128
        %v2139 = vpack.c.b16 %v2131, %v2130
        %v2140 = vpack.c.b16 %v2133, %v2132
        %v2141 = vpack.c.b16 %v2135, %v2134
        %v2142 = vpack.c.b16 %v2137, %v2136
        %v2144 = vsel %vm285, %v2138, 0
        %v2147 = vsel %vm285, %v2139, 0
        %v2150 = vsel %vm285, %v2140, 0
        %v2153 = vsel %vm285, %v2141, 0
        %v2156 = vsel %vm285, %v2142, 0
        %2158 = vmatprep.subr.bf16.mxu0 0
        %2159 = vmatpush1.bf16.msra.mxu0 %v2114
        %2160 = vmatprep.subr.bf16.mxu0 0
        %2161 = vmatpush1.bf16.msra.mxu0 %v2115
        %2162 = vmatprep.subr.bf16.mxu0 0
        %2163 = vmatpush1.bf16.msra.mxu0 %v2116
        %2164 = vmatprep.subr.bf16.mxu0 0
        %2165 = vmatpush1.bf16.msra.mxu0 %v2117
        %2166 = vmatprep.subr.bf16.mxu0 0
        %2167 = vmatpush1.bf16.msra.mxu0 0
        %2168 = vmatprep.subr.bf16.mxu0 0
        %2169 = vmatpush1.bf16.msra.mxu0 0
        %2170 = vmatprep.subr.bf16.mxu0 0
        %2171 = vmatpush1.bf16.msra.mxu0 0
        %2172 = vmatprep.subr.bf16.mxu0 0
        %2173 = vmatpush1.bf16.msra.mxu0 0
        %2174 = vmatprep.subr.bf16.mxu0 0
        %2175 = vmatpush1.bf16.msra.mxu0 0
        %2176 = vmatprep.subr.bf16.mxu0 0
        %2177 = vmatpush1.bf16.msra.mxu0 0
        %2178 = vmatprep.subr.bf16.mxu0 0
        %2179 = vmatpush1.bf16.msra.mxu0 0
        %2180 = vmatprep.subr.bf16.mxu0 0
        %2181 = vmatpush1.bf16.msra.mxu0 0
        %2182 = vmatprep.subr.bf16.mxu0 0
        %2183 = vmatpush1.bf16.msra.mxu0 0
        %2184 = vmatprep.subr.bf16.mxu0 0
        %2185 = vmatpush1.bf16.msra.mxu0 0
        %2186 = vmatprep.subr.bf16.mxu0 0
        %2187 = vmatpush1.bf16.msra.mxu0 0
        %2188 = vmatprep.subr.bf16.mxu0 0
        %2189 = vmatpush1.bf16.msra.mxu0 0
        %2190 = vmatprep.mubr.bf16.mxu0 0
        %2191 = vmatmul.mubr.bf16.gmra.mrb[0].mxu0 %v2144
        %v2192 = vpop.f32.mrb[0].mxu0
        %v2193 = vadd.f32 0.0, %v2192
        %v2194 = vpop.f32.mrb[0].mxu0
        %v2195 = vpop.f32.mrb[0].mxu0
        %v2196 = vadd.f32 0.0, %v2195
        %v2197 = vpop.f32.mrb[0].mxu0
        %2198 = vmatprep.mubr.bf16.mxu0 0
        %2199 = vmatmul.mubr.bf16.gmra.mrb[0].mxu0 %v2147
        %v2200 = vpop.f32.mrb[0].mxu0
        %v2201 = vadd.f32 0.0, %v2200
        %v2202 = vpop.f32.mrb[0].mxu0
        %v2203 = vpop.f32.mrb[0].mxu0
        %v2204 = vadd.f32 0.0, %v2203
        %v2205 = vpop.f32.mrb[0].mxu0
        %2206 = vmatprep.mubr.bf16.mxu0 0
        %2207 = vmatmul.mubr.bf16.gmra.mrb[0].mxu0 %v2150
        %v2208 = vpop.f32.mrb[0].mxu0
        %v2209 = vadd.f32 0.0, %v2208
        %v2210 = vpop.f32.mrb[0].mxu0
        %v2211 = vpop.f32.mrb[0].mxu0
        %v2212 = vadd.f32 0.0, %v2211
        %v2213 = vpop.f32.mrb[0].mxu0
        %2214 = vmatprep.mubr.bf16.mxu0 0
        %2215 = vmatmul.mubr.bf16.gmra.mrb[0].mxu0 %v2153
        %v2216 = vpop.f32.mrb[0].mxu0
        %v2217 = vadd.f32 0.0, %v2216
        %v2218 = vpop.f32.mrb[0].mxu0
        %v2219 = vpop.f32.mrb[0].mxu0
        %v2220 = vadd.f32 0.0, %v2219
        %v2221 = vpop.f32.mrb[0].mxu0
        %2222 = vmatprep.mubr.bf16.mxu0 0
        %2223 = vmatmul.mubr.bf16.gmra.mrb[0].mxu0 %v2156
        %v2224 = vpop.f32.mrb[0].mxu0
        %v2225 = vadd.f32 0.0, %v2224
        %v2226 = vpop.f32.mrb[0].mxu0
        %v2227 = vpop.f32.mrb[0].mxu0
        %v2228 = vadd.f32 0.0, %v2227
        %v2229 = vpop.f32.mrb[0].mxu0
        %2230 = vdwg.mxu0
        %s2231 = scalar_lea.vmem %s3, 256
        %v2232 = vld [vmem:[%s2231] sm:$0xff]
        %v2233 = vld [vmem:[%s2231 + $0x8] sm:$0xff]
        %v2234 = vld [vmem:[%s2231 + $0x10] sm:$0xff]
        %v2235 = vld [vmem:[%s2231 + $0x18] sm:$0xff]
        %v2236 = vld [vmem:[%s2231 + $0x20] sm:$0xff]
        %v2237 = vld [vmem:[%s2231 + $0x28] sm:$0xff]
        %v2238 = vld [vmem:[%s2231 + $0x30] sm:$0xff]
        %v2239 = vld [vmem:[%s2231 + $0x38] sm:$0xff]
        %2241 = vset.pattern.permute.xlu0 0
        %2242 = vperm.xlu0 %2241, %v2232
        %v2243 = vpop.permute.xlu0 %2242
        %2246 = vset.pattern.permute.xlu0 0
        %2247 = vperm.xlu0 %2246, %v2233
        %v2248 = vpop.permute.xlu0 %2247
        %2251 = vset.pattern.permute.xlu0 0
        %2252 = vperm.xlu0 %2251, %v2234
        %v2253 = vpop.permute.xlu0 %2252
        %2256 = vset.pattern.permute.xlu0 0
        %2257 = vperm.xlu0 %2256, %v2235
        %v2258 = vpop.permute.xlu0 %2257
        %2261 = vset.pattern.permute.xlu0 0
        %2262 = vperm.xlu0 %2261, %v2236
        %v2263 = vpop.permute.xlu0 %2262
        %2266 = vset.pattern.permute.xlu0 0
        %2267 = vperm.xlu0 %2266, %v2237
        %v2268 = vpop.permute.xlu0 %2267
        %2271 = vset.pattern.permute.xlu0 0
        %2272 = vperm.xlu0 %2271, %v2238
        %v2273 = vpop.permute.xlu0 %2272
        %2276 = vset.pattern.permute.xlu0 0
        %2277 = vperm.xlu0 %2276, %v2239
        %v2278 = vpop.permute.xlu0 %2277
        %v2280 = vadd.f32 %v2201, %v2243
        %v2281 = vadd.f32 %v2204, %v2248
        %v2282 = vadd.f32 %v2209, %v2253
        %v2283 = vadd.f32 %v2212, %v2258
        %v2284 = vadd.f32 %v2217, %v2263
        %v2285 = vadd.f32 %v2220, %v2268
        %v2286 = vadd.f32 %v2225, %v2273
        %v2287 = vadd.f32 %v2228, %v2278
        %v2288 = vpack.c.bf16 %v2196, %v2193
        %2289 = vxpose.xlu0.c.b16.start [1/8] %v2288, 128
        %2290 = vxpose.xlu0.c.b16.cont [2/8] 0, 128
        %2291 = vxpose.xlu0.c.b16.cont [3/8] 0, 128
        %2292 = vxpose.xlu0.c.b16.cont [4/8] 0, 128
        %2293 = vxpose.xlu0.c.b16.cont [5/8] 0, 128
        %2294 = vxpose.xlu0.c.b16.cont [6/8] 0, 128
        %2295 = vxpose.xlu0.c.b16.cont [7/8] 0, 128
        %2296 = vxpose.xlu0.c.b16.end [8/8] 0, 128
        %v2297 = vpop.trf.xlu0
        %v2298 = vpop.trf.xlu0
        %v2299 = vpop.trf.xlu0
        %v2300 = vpop.trf.xlu0
        %v2301 = vpop.trf.xlu0
        %v2302 = vpop.trf.xlu0
        %v2303 = vpop.trf.xlu0
        %v2304 = vpop.trf.xlu0
        %v2306 = vsel %vm739, %v2297, 0
        %v2309 = vsel %vm739, %v2298, 0
        %v2312 = vsel %vm739, %v2299, 0
        %v2315 = vsel %vm739, %v2300, 0
        %v2318 = vsel %vm739, %v2301, 0
        %v2321 = vsel %vm739, %v2302, 0
        %v2324 = vsel %vm739, %v2303, 0
        %v2327 = vsel %vm739, %v2304, 0
        %2329 = vmatprep.subr.bf16.mxu0 0
        %2330 = vmatpush1.bf16.msra.mxu0 %v2288
        %2331 = vmatprep.subr.bf16.mxu0 0
        %2332 = vmatpush1.bf16.msra.mxu0 0
        %2333 = vmatprep.subr.bf16.mxu0 0
        %2334 = vmatpush1.bf16.msra.mxu0 0
        %2335 = vmatprep.subr.bf16.mxu0 0
        %2336 = vmatpush1.bf16.msra.mxu0 0
        %2337 = vmatprep.subr.bf16.mxu0 0
        %2338 = vmatpush1.bf16.msra.mxu0 0
        %2339 = vmatprep.subr.bf16.mxu0 0
        %2340 = vmatpush1.bf16.msra.mxu0 0
        %2341 = vmatprep.subr.bf16.mxu0 0
        %2342 = vmatpush1.bf16.msra.mxu0 0
        %2343 = vmatprep.subr.bf16.mxu0 0
        %2344 = vmatpush1.bf16.msra.mxu0 0
        %2345 = vmatprep.subr.bf16.mxu0 0
        %2346 = vmatpush1.bf16.msra.mxu0 0
        %2347 = vmatprep.subr.bf16.mxu0 0
        %2348 = vmatpush1.bf16.msra.mxu0 0
        %2349 = vmatprep.subr.bf16.mxu0 0
        %2350 = vmatpush1.bf16.msra.mxu0 0
        %2351 = vmatprep.subr.bf16.mxu0 0
        %2352 = vmatpush1.bf16.msra.mxu0 0
        %2353 = vmatprep.subr.bf16.mxu0 0
        %2354 = vmatpush1.bf16.msra.mxu0 0
        %2355 = vmatprep.subr.bf16.mxu0 0
        %2356 = vmatpush1.bf16.msra.mxu0 0
        %2357 = vmatprep.subr.bf16.mxu0 0
        %2358 = vmatpush1.bf16.msra.mxu0 0
        %2359 = vmatprep.subr.bf16.mxu0 0
        %2360 = vmatpush1.bf16.msra.mxu0 0
        %2361 = vmatprep.mubr.bf16.mxu0 0
        %2362 = vmatmul.mubr.bf16.gmra.mrb[0].mxu0 %v2306
        %v2363 = vpop.f32.mrb[0].mxu0
        %v2364 = vadd.f32 0.0, %v2363
        %v2365 = vpop.f32.mrb[0].mxu0
        %v2366 = vpop.f32.mrb[0].mxu0
        %v2367 = vadd.f32 0.0, %v2366
        %v2368 = vpop.f32.mrb[0].mxu0
        %2369 = vmatprep.mubr.bf16.mxu0 0
        %2370 = vmatmul.mubr.bf16.gmra.mrb[0].mxu0 %v2309
        %v2371 = vpop.f32.mrb[0].mxu0
        %v2372 = vadd.f32 0.0, %v2371
        %v2373 = vpop.f32.mrb[0].mxu0
        %v2374 = vpop.f32.mrb[0].mxu0
        %v2375 = vadd.f32 0.0, %v2374
        %v2376 = vpop.f32.mrb[0].mxu0
        %2377 = vmatprep.mubr.bf16.mxu0 0
        %2378 = vmatmul.mubr.bf16.gmra.mrb[0].mxu0 %v2312
        %v2379 = vpop.f32.mrb[0].mxu0
        %v2380 = vadd.f32 0.0, %v2379
        %v2381 = vpop.f32.mrb[0].mxu0
        %v2382 = vpop.f32.mrb[0].mxu0
        %v2383 = vadd.f32 0.0, %v2382
        %v2384 = vpop.f32.mrb[0].mxu0
        %2385 = vmatprep.mubr.bf16.mxu0 0
        %2386 = vmatmul.mubr.bf16.gmra.mrb[0].mxu0 %v2315
        %v2387 = vpop.f32.mrb[0].mxu0
        %v2388 = vadd.f32 0.0, %v2387
        %v2389 = vpop.f32.mrb[0].mxu0
        %v2390 = vpop.f32.mrb[0].mxu0
        %v2391 = vadd.f32 0.0, %v2390
        %v2392 = vpop.f32.mrb[0].mxu0
        %2393 = vmatprep.mubr.bf16.mxu0 0
        %2394 = vmatmul.mubr.bf16.gmra.mrb[0].mxu0 %v2318
        %v2395 = vpop.f32.mrb[0].mxu0
        %v2396 = vadd.f32 0.0, %v2395
        %v2397 = vpop.f32.mrb[0].mxu0
        %v2398 = vpop.f32.mrb[0].mxu0
        %v2399 = vadd.f32 0.0, %v2398
        %v2400 = vpop.f32.mrb[0].mxu0
        %2401 = vmatprep.mubr.bf16.mxu0 0
        %2402 = vmatmul.mubr.bf16.gmra.mrb[0].mxu0 %v2321
        %v2403 = vpop.f32.mrb[0].mxu0
        %v2404 = vadd.f32 0.0, %v2403
        %v2405 = vpop.f32.mrb[0].mxu0
        %v2406 = vpop.f32.mrb[0].mxu0
        %v2407 = vadd.f32 0.0, %v2406
        %v2408 = vpop.f32.mrb[0].mxu0
        %2409 = vmatprep.mubr.bf16.mxu0 0
        %2410 = vmatmul.mubr.bf16.gmra.mrb[0].mxu0 %v2324
        %v2411 = vpop.f32.mrb[0].mxu0
        %v2412 = vadd.f32 0.0, %v2411
        %v2413 = vpop.f32.mrb[0].mxu0
        %v2414 = vpop.f32.mrb[0].mxu0
        %v2415 = vadd.f32 0.0, %v2414
        %v2416 = vpop.f32.mrb[0].mxu0
        %2417 = vmatprep.mubr.bf16.mxu0 0
        %2418 = vmatmul.mubr.bf16.gmra.mrb[0].mxu0 %v2327
        %v2419 = vpop.f32.mrb[0].mxu0
        %v2420 = vadd.f32 0.0, %v2419
        %v2421 = vpop.f32.mrb[0].mxu0
        %v2422 = vpop.f32.mrb[0].mxu0
        %v2423 = vadd.f32 0.0, %v2422
        %v2424 = vpop.f32.mrb[0].mxu0
        %2425 = vdwg.mxu0
        %2426 = vmax.xlane.f32.xlu0 %v2364
        %v2427 = vpop.xlane.xlu0 %2426
        %2428 = vmax.xlane.f32.xlu0 %v2367
        %v2429 = vpop.xlane.xlu0 %2428
        %2430 = vmax.xlane.f32.xlu0 %v2372
        %v2431 = vpop.xlane.xlu0 %2430
        %2432 = vmax.xlane.f32.xlu0 %v2375
        %v2433 = vpop.xlane.xlu0 %2432
        %2434 = vmax.xlane.f32.xlu0 %v2380
        %v2435 = vpop.xlane.xlu0 %2434
        %2436 = vmax.xlane.f32.xlu0 %v2383
        %v2437 = vpop.xlane.xlu0 %2436
        %2438 = vmax.xlane.f32.xlu0 %v2388
        %v2439 = vpop.xlane.xlu0 %2438
        %2440 = vmax.xlane.f32.xlu0 %v2391
        %v2441 = vpop.xlane.xlu0 %2440
        %2442 = vmax.xlane.f32.xlu0 %v2396
        %v2443 = vpop.xlane.xlu0 %2442
        %2444 = vmax.xlane.f32.xlu0 %v2399
        %v2445 = vpop.xlane.xlu0 %2444
        %2446 = vmax.xlane.f32.xlu0 %v2404
        %v2447 = vpop.xlane.xlu0 %2446
        %2448 = vmax.xlane.f32.xlu0 %v2407
        %v2449 = vpop.xlane.xlu0 %2448
        %2450 = vmax.xlane.f32.xlu0 %v2412
        %v2451 = vpop.xlane.xlu0 %2450
        %2452 = vmax.xlane.f32.xlu0 %v2415
        %v2453 = vpop.xlane.xlu0 %2452
        %2454 = vmax.xlane.f32.xlu0 %v2420
        %v2455 = vpop.xlane.xlu0 %2454
        %2456 = vmax.xlane.f32.xlu0 %v2423
        %v2457 = vpop.xlane.xlu0 %2456
        %v2458 = vsub.f32 %v2364, %v2427
        %v2459 = vsub.f32 %v2367, %v2429
        %v2460 = vsub.f32 %v2372, %v2431
        %v2461 = vsub.f32 %v2375, %v2433
        %v2462 = vsub.f32 %v2380, %v2435
        %v2463 = vsub.f32 %v2383, %v2437
        %v2464 = vsub.f32 %v2388, %v2439
        %v2465 = vsub.f32 %v2391, %v2441
        %v2466 = vsub.f32 %v2396, %v2443
        %v2467 = vsub.f32 %v2399, %v2445
        %v2468 = vsub.f32 %v2404, %v2447
        %v2469 = vsub.f32 %v2407, %v2449
        %v2470 = vsub.f32 %v2412, %v2451
        %v2471 = vsub.f32 %v2415, %v2453
        %v2472 = vsub.f32 %v2420, %v2455
        %v2473 = vsub.f32 %v2423, %v2457
        %v2474 = vmul.f32 %v2458, 1.442695
        %v2475 = vpow.pop %v2474
        %v2476 = vmul.f32 %v2459, 1.442695
        %v2477 = vpow.pop %v2476
        %v2478 = vmul.f32 %v2460, 1.442695
        %v2479 = vpow.pop %v2478
        %v2480 = vmul.f32 %v2461, 1.442695
        %v2481 = vpow.pop %v2480
        %v2482 = vmul.f32 %v2462, 1.442695
        %v2483 = vpow.pop %v2482
        %v2484 = vmul.f32 %v2463, 1.442695
        %v2485 = vpow.pop %v2484
        %v2486 = vmul.f32 %v2464, 1.442695
        %v2487 = vpow.pop %v2486
        %v2488 = vmul.f32 %v2465, 1.442695
        %v2489 = vpow.pop %v2488
        %v2490 = vmul.f32 %v2466, 1.442695
        %v2491 = vpow.pop %v2490
        %v2492 = vmul.f32 %v2467, 1.442695
        %v2493 = vpow.pop %v2492
        %v2494 = vmul.f32 %v2468, 1.442695
        %v2495 = vpow.pop %v2494
        %v2496 = vmul.f32 %v2469, 1.442695
        %v2497 = vpow.pop %v2496
        %v2498 = vmul.f32 %v2470, 1.442695
        %v2499 = vpow.pop %v2498
        %v2500 = vmul.f32 %v2471, 1.442695
        %v2501 = vpow.pop %v2500
        %v2502 = vmul.f32 %v2472, 1.442695
        %v2503 = vpow.pop %v2502
        %v2504 = vmul.f32 %v2473, 1.442695
        %v2505 = vpow.pop %v2504
        %2506 = vadd.xlane.f32.xlu0 %v2475
        %v2507 = vpop.xlane.xlu0 %2506
        %2508 = vadd.xlane.f32.xlu0 %v2477
        %v2509 = vpop.xlane.xlu0 %2508
        %2510 = vadd.xlane.f32.xlu0 %v2479
        %v2511 = vpop.xlane.xlu0 %2510
        %2512 = vadd.xlane.f32.xlu0 %v2481
        %v2513 = vpop.xlane.xlu0 %2512
        %2514 = vadd.xlane.f32.xlu0 %v2483
        %v2515 = vpop.xlane.xlu0 %2514
        %2516 = vadd.xlane.f32.xlu0 %v2485
        %v2517 = vpop.xlane.xlu0 %2516
        %2518 = vadd.xlane.f32.xlu0 %v2487
        %v2519 = vpop.xlane.xlu0 %2518
        %2520 = vadd.xlane.f32.xlu0 %v2489
        %v2521 = vpop.xlane.xlu0 %2520
        %2522 = vadd.xlane.f32.xlu0 %v2491
        %v2523 = vpop.xlane.xlu0 %2522
        %2524 = vadd.xlane.f32.xlu0 %v2493
        %v2525 = vpop.xlane.xlu0 %2524
        %2526 = vadd.xlane.f32.xlu0 %v2495
        %v2527 = vpop.xlane.xlu0 %2526
        %2528 = vadd.xlane.f32.xlu0 %v2497
        %v2529 = vpop.xlane.xlu0 %2528
        %2530 = vadd.xlane.f32.xlu0 %v2499
        %v2531 = vpop.xlane.xlu0 %2530
        %2532 = vadd.xlane.f32.xlu0 %v2501
        %v2533 = vpop.xlane.xlu0 %2532
        %2534 = vadd.xlane.f32.xlu0 %v2503
        %v2535 = vpop.xlane.xlu0 %2534
        %2536 = vadd.xlane.f32.xlu0 %v2505
        %v2537 = vpop.xlane.xlu0 %2536
        %v2538 = vrcp.pop %v2507
        %v2539 = vmul.f32 1.0, %v2538
        %v2540 = vrcp.pop %v2509
        %v2541 = vmul.f32 1.0, %v2540
        %v2542 = vrcp.pop %v2511
        %v2543 = vmul.f32 1.0, %v2542
        %v2544 = vrcp.pop %v2513
        %v2545 = vmul.f32 1.0, %v2544
        %v2546 = vrcp.pop %v2515
        %v2547 = vmul.f32 1.0, %v2546
        %v2548 = vrcp.pop %v2517
        %v2549 = vmul.f32 1.0, %v2548
        %v2550 = vrcp.pop %v2519
        %v2551 = vmul.f32 1.0, %v2550
        %v2552 = vrcp.pop %v2521
        %v2553 = vmul.f32 1.0, %v2552
        %v2554 = vrcp.pop %v2523
        %v2555 = vmul.f32 1.0, %v2554
        %v2556 = vrcp.pop %v2525
        %v2557 = vmul.f32 1.0, %v2556
        %v2558 = vrcp.pop %v2527
        %v2559 = vmul.f32 1.0, %v2558
        %v2560 = vrcp.pop %v2529
        %v2561 = vmul.f32 1.0, %v2560
        %v2562 = vrcp.pop %v2531
        %v2563 = vmul.f32 1.0, %v2562
        %v2564 = vrcp.pop %v2533
        %v2565 = vmul.f32 1.0, %v2564
        %v2566 = vrcp.pop %v2535
        %v2567 = vmul.f32 1.0, %v2566
        %v2568 = vrcp.pop %v2537
        %v2569 = vmul.f32 1.0, %v2568
        %v2570 = vmul.f32 %v2475, %v2539
        %v2571 = vmul.f32 %v2477, %v2541
        %v2572 = vmul.f32 %v2479, %v2543
        %v2573 = vmul.f32 %v2481, %v2545
        %v2574 = vmul.f32 %v2483, %v2547
        %v2575 = vmul.f32 %v2485, %v2549
        %v2576 = vmul.f32 %v2487, %v2551
        %v2577 = vmul.f32 %v2489, %v2553
        %v2578 = vmul.f32 %v2491, %v2555
        %v2579 = vmul.f32 %v2493, %v2557
        %v2580 = vmul.f32 %v2495, %v2559
        %v2581 = vmul.f32 %v2497, %v2561
        %v2582 = vmul.f32 %v2499, %v2563
        %v2583 = vmul.f32 %v2501, %v2565
        %v2584 = vmul.f32 %v2503, %v2567
        %v2585 = vmul.f32 %v2505, %v2569
        %v2586 = vadd.f32 %v2570, %v2571
        %v2587 = vadd.f32 %v2586, %v2572
        %v2588 = vadd.f32 %v2587, %v2573
        %v2589 = vadd.f32 %v2588, %v2574
        %v2590 = vadd.f32 %v2589, %v2575
        %v2591 = vadd.f32 %v2590, %v2576
        %v2592 = vadd.f32 %v2591, %v2577
        %v2593 = vadd.f32 %v2592, %v2578
        %v2594 = vadd.f32 %v2593, %v2579
        %v2595 = vadd.f32 %v2594, %v2580
        %v2596 = vadd.f32 %v2595, %v2581
        %v2597 = vadd.f32 %v2596, %v2582
        %v2598 = vadd.f32 %v2597, %v2583
        %v2599 = vadd.f32 %v2598, %v2584
        %v2600 = vadd.f32 %v2599, %v2585
        %v2601 = vrot.slane %v2600, 4
        %v2602 = vadd.f32 %v2600, %v2601
        %v2603 = vrot.slane %v2602, 2
        %v2604 = vadd.f32 %v2602, %v2603
        %v2605 = vrot.slane %v2604, 1
        %v2606 = vadd.f32 %v2604, %v2605
        %v2607 = vadd.f32 %v2606, 1e-09
        %v2608 = vrcp.pop %v2607
        %v2609 = vpack.c.bf16 %v2281, %v2280
        %v2610 = vpack.c.bf16 %v2283, %v2282
        %v2611 = vpack.c.bf16 %v2285, %v2284
        %v2612 = vpack.c.bf16 %v2287, %v2286
        %v2613 = vpack.c.bf16 %v2571, %v2570
        %v2614 = vpack.c.bf16 %v2573, %v2572
        %v2615 = vpack.c.bf16 %v2575, %v2574
        %v2616 = vpack.c.bf16 %v2577, %v2576
        %v2617 = vpack.c.bf16 %v2579, %v2578
        %v2618 = vpack.c.bf16 %v2581, %v2580
        %v2619 = vpack.c.bf16 %v2583, %v2582
        %v2620 = vpack.c.bf16 %v2585, %v2584
        %2621 = vmatprep.subr.bf16.mxu0 0
        %2622 = vmatpush1.bf16.msra.mxu0 %v2613
        %2623 = vmatprep.subr.bf16.mxu0 0
        %2624 = vmatpush1.bf16.msra.mxu0 %v2614
        %2625 = vmatprep.subr.bf16.mxu0 0
        %2626 = vmatpush1.bf16.msra.mxu0 %v2615
        %2627 = vmatprep.subr.bf16.mxu0 0
        %2628 = vmatpush1.bf16.msra.mxu0 %v2616
        %2629 = vmatprep.subr.bf16.mxu0 0
        %2630 = vmatpush1.bf16.msra.mxu0 %v2617
        %2631 = vmatprep.subr.bf16.mxu0 0
        %2632 = vmatpush1.bf16.msra.mxu0 %v2618
        %2633 = vmatprep.subr.bf16.mxu0 0
        %2634 = vmatpush1.bf16.msra.mxu0 %v2619
        %2635 = vmatprep.subr.bf16.mxu0 0
        %2636 = vmatpush1.bf16.msra.mxu0 %v2620
        %2637 = vmatprep.subr.bf16.mxu0 0
        %2638 = vmatpush1.bf16.msra.mxu0 0
        %2639 = vmatprep.subr.bf16.mxu0 0
        %2640 = vmatpush1.bf16.msra.mxu0 0
        %2641 = vmatprep.subr.bf16.mxu0 0
        %2642 = vmatpush1.bf16.msra.mxu0 0
        %2643 = vmatprep.subr.bf16.mxu0 0
        %2644 = vmatpush1.bf16.msra.mxu0 0
        %2645 = vmatprep.subr.bf16.mxu0 0
        %2646 = vmatpush1.bf16.msra.mxu0 0
        %2647 = vmatprep.subr.bf16.mxu0 0
        %2648 = vmatpush1.bf16.msra.mxu0 0
        %2649 = vmatprep.subr.bf16.mxu0 0
        %2650 = vmatpush1.bf16.msra.mxu0 0
        %2651 = vmatprep.subr.bf16.mxu0 0
        %2652 = vmatpush1.bf16.msra.mxu0 0
        %2653 = vmatprep.mubr.bf16.mxu0 0
        %2654 = vmatmul.mubr.bf16.gmra.mrb[0].mxu0 %v2609
        %v2655 = vpop.f32.mrb[0].mxu0
        %v2656 = vadd.f32 0.0, %v2655
        %v2657 = vpop.f32.mrb[0].mxu0
        %v2658 = vpop.f32.mrb[0].mxu0
        %v2659 = vadd.f32 0.0, %v2658
        %v2660 = vpop.f32.mrb[0].mxu0
        %2661 = vmatprep.mubr.bf16.mxu0 0
        %2662 = vmatmul.mubr.bf16.gmra.mrb[0].mxu0 %v2610
        %v2663 = vpop.f32.mrb[0].mxu0
        %v2664 = vadd.f32 0.0, %v2663
        %v2665 = vpop.f32.mrb[0].mxu0
        %v2666 = vpop.f32.mrb[0].mxu0
        %v2667 = vadd.f32 0.0, %v2666
        %v2668 = vpop.f32.mrb[0].mxu0
        %2669 = vmatprep.mubr.bf16.mxu0 0
        %2670 = vmatmul.mubr.bf16.gmra.mrb[0].mxu0 %v2611
        %v2671 = vpop.f32.mrb[0].mxu0
        %v2672 = vadd.f32 0.0, %v2671
        %v2673 = vpop.f32.mrb[0].mxu0
        %v2674 = vpop.f32.mrb[0].mxu0
        %v2675 = vadd.f32 0.0, %v2674
        %v2676 = vpop.f32.mrb[0].mxu0
        %2677 = vmatprep.mubr.bf16.mxu0 0
        %2678 = vmatmul.mubr.bf16.gmra.mrb[0].mxu0 %v2612
        %v2679 = vpop.f32.mrb[0].mxu0
        %v2680 = vadd.f32 0.0, %v2679
        %v2681 = vpop.f32.mrb[0].mxu0
        %v2682 = vpop.f32.mrb[0].mxu0
        %v2683 = vadd.f32 0.0, %v2682
        %v2684 = vpop.f32.mrb[0].mxu0
        %2685 = vdwg.mxu0
        %v2686 = vmul.f32 %v2656, %v2608
        %v2687 = vmul.f32 %v2659, %v2608
        %v2688 = vmul.f32 %v2664, %v2608
        %v2689 = vmul.f32 %v2667, %v2608
        %v2690 = vmul.f32 %v2672, %v2608
        %v2691 = vmul.f32 %v2675, %v2608
        %v2692 = vmul.f32 %v2680, %v2608
        %v2693 = vmul.f32 %v2683, %v2608
        %s2694 = scalar_lea.vmem %s1, 128
        %v2695 = vld [vmem:[%s2694] sm:$0xf]
        %v2696 = vld [vmem:[%s2694 + $0x4] sm:$0xf]
        %v2697 = vld [vmem:[%s2694 + $0x8] sm:$0xf]
        %v2698 = vld [vmem:[%s2694 + $0xc] sm:$0xf]
        %v2699 = vld [vmem:[%s2694 + $0x10] sm:$0xf]
        %v2700 = vld [vmem:[%s2694 + $0x14] sm:$0xf]
        %v2701 = vld [vmem:[%s2694 + $0x18] sm:$0xf]
        %v2702 = vld [vmem:[%s2694 + $0x1c] sm:$0xf]
        %v2703 = vsub.f32 %v2086, %v2686
        %v2704 = vsub.f32 %v2087, %v2687
        %v2705 = vsub.f32 %v2088, %v2688
        %v2706 = vsub.f32 %v2089, %v2689
        %v2707 = vsub.f32 %v2090, %v2690
        %v2708 = vsub.f32 %v2091, %v2691
        %v2709 = vsub.f32 %v2092, %v2692
        %v2710 = vsub.f32 %v2093, %v2693
        %v2711 = vpack.c.bf16 %v2704, %v2703
        %v2712 = vpack.c.bf16 %v2706, %v2705
        %v2713 = vpack.c.bf16 %v2708, %v2707
        %v2714 = vpack.c.bf16 %v2710, %v2709
        %s2715 = scalar_lea.vmem %s3, 512
        %v2716 = vld [vmem:[%s2715] sm:$0xff]
        %v2717 = vld [vmem:[%s2715 + $0x8] sm:$0xff]
        %v2718 = vld [vmem:[%s2715 + $0x10] sm:$0xff]
        %v2719 = vld [vmem:[%s2715 + $0x18] sm:$0xff]
        %v2720 = vld [vmem:[%s2715 + $0x20] sm:$0xff]
        %v2721 = vld [vmem:[%s2715 + $0x28] sm:$0xff]
        %v2722 = vld [vmem:[%s2715 + $0x30] sm:$0xff]
        %v2723 = vld [vmem:[%s2715 + $0x38] sm:$0xff]
        %2725 = vset.pattern.permute.xlu0 0
        %2726 = vperm.xlu0 %2725, %v2716
        %v2727 = vpop.permute.xlu0 %2726
        %2730 = vset.pattern.permute.xlu0 0
        %2731 = vperm.xlu0 %2730, %v2717
        %v2732 = vpop.permute.xlu0 %2731
        %2735 = vset.pattern.permute.xlu0 0
        %2736 = vperm.xlu0 %2735, %v2718
        %v2737 = vpop.permute.xlu0 %2736
        %2740 = vset.pattern.permute.xlu0 0
        %2741 = vperm.xlu0 %2740, %v2719
        %v2742 = vpop.permute.xlu0 %2741
        %2745 = vset.pattern.permute.xlu0 0
        %2746 = vperm.xlu0 %2745, %v2720
        %v2747 = vpop.permute.xlu0 %2746
        %2750 = vset.pattern.permute.xlu0 0
        %2751 = vperm.xlu0 %2750, %v2721
        %v2752 = vpop.permute.xlu0 %2751
        %2755 = vset.pattern.permute.xlu0 0
        %2756 = vperm.xlu0 %2755, %v2722
        %v2757 = vpop.permute.xlu0 %2756
        %2760 = vset.pattern.permute.xlu0 0
        %2761 = vperm.xlu0 %2760, %v2723
        %v2762 = vpop.permute.xlu0 %2761
        %v2772 = vunpack.c.l.b16 %v2695
        %v2773 = vunpack.c.l.b16 %v2696
        %v2774 = vunpack.c.l.b16 %v2697
        %v2775 = vunpack.c.l.b16 %v2698
        %v2776 = vunpack.c.l.b16 %v2699
        %v2777 = vunpack.c.l.b16 %v2700
        %v2778 = vunpack.c.l.b16 %v2701
        %v2779 = vunpack.c.l.b16 %v2702
        %v2780 = vpack.c.b16 %v2773, %v2772
        %v2781 = vpack.c.b16 %v2775, %v2774
        %v2782 = vpack.c.b16 %v2777, %v2776
        %v2783 = vpack.c.b16 %v2779, %v2778
        %v2785 = vsel %vm285, %v2780, 0
        %v2788 = vsel %vm285, %v2781, 0
        %v2791 = vsel %vm285, %v2782, 0
        %v2794 = vsel %vm285, %v2783, 0
        %2796 = vmatprep.subr.bf16.mxu0 0
        %2797 = vmatpush1.bf16.msra.mxu0 %v2711
        %2798 = vmatprep.subr.bf16.mxu0 0
        %2799 = vmatpush1.bf16.msra.mxu0 %v2712
        %2800 = vmatprep.subr.bf16.mxu0 0
        %2801 = vmatpush1.bf16.msra.mxu0 %v2713
        %2802 = vmatprep.subr.bf16.mxu0 0
        %2803 = vmatpush1.bf16.msra.mxu0 %v2714
        %2804 = vmatprep.subr.bf16.mxu0 0
        %2805 = vmatpush1.bf16.msra.mxu0 0
        %2806 = vmatprep.subr.bf16.mxu0 0
        %2807 = vmatpush1.bf16.msra.mxu0 0
        %2808 = vmatprep.subr.bf16.mxu0 0
        %2809 = vmatpush1.bf16.msra.mxu0 0
        %2810 = vmatprep.subr.bf16.mxu0 0
        %2811 = vmatpush1.bf16.msra.mxu0 0
        %2812 = vmatprep.subr.bf16.mxu0 0
        %2813 = vmatpush1.bf16.msra.mxu0 0
        %2814 = vmatprep.subr.bf16.mxu0 0
        %2815 = vmatpush1.bf16.msra.mxu0 0
        %2816 = vmatprep.subr.bf16.mxu0 0
        %2817 = vmatpush1.bf16.msra.mxu0 0
        %2818 = vmatprep.subr.bf16.mxu0 0
        %2819 = vmatpush1.bf16.msra.mxu0 0
        %2820 = vmatprep.subr.bf16.mxu0 0
        %2821 = vmatpush1.bf16.msra.mxu0 0
        %2822 = vmatprep.subr.bf16.mxu0 0
        %2823 = vmatpush1.bf16.msra.mxu0 0
        %2824 = vmatprep.subr.bf16.mxu0 0
        %2825 = vmatpush1.bf16.msra.mxu0 0
        %2826 = vmatprep.subr.bf16.mxu0 0
        %2827 = vmatpush1.bf16.msra.mxu0 0
        %2828 = vmatprep.mubr.bf16.mxu0 0
        %2829 = vmatmul.mubr.bf16.gmra.mrb[0].mxu0 %v2785
        %v2830 = vpop.f32.mrb[0].mxu0
        %v2831 = vadd.f32 %v2727, %v2830
        %v2832 = vpop.f32.mrb[0].mxu0
        %v2833 = vpop.f32.mrb[0].mxu0
        %v2834 = vadd.f32 %v2732, %v2833
        %v2835 = vpop.f32.mrb[0].mxu0
        %2836 = vmatprep.mubr.bf16.mxu0 0
        %2837 = vmatmul.mubr.bf16.gmra.mrb[0].mxu0 %v2788
        %v2838 = vpop.f32.mrb[0].mxu0
        %v2839 = vadd.f32 %v2737, %v2838
        %v2840 = vpop.f32.mrb[0].mxu0
        %v2841 = vpop.f32.mrb[0].mxu0
        %v2842 = vadd.f32 %v2742, %v2841
        %v2843 = vpop.f32.mrb[0].mxu0
        %2844 = vmatprep.mubr.bf16.mxu0 0
        %2845 = vmatmul.mubr.bf16.gmra.mrb[0].mxu0 %v2791
        %v2846 = vpop.f32.mrb[0].mxu0
        %v2847 = vadd.f32 %v2747, %v2846
        %v2848 = vpop.f32.mrb[0].mxu0
        %v2849 = vpop.f32.mrb[0].mxu0
        %v2850 = vadd.f32 %v2752, %v2849
        %v2851 = vpop.f32.mrb[0].mxu0
        %2852 = vmatprep.mubr.bf16.mxu0 0
        %2853 = vmatmul.mubr.bf16.gmra.mrb[0].mxu0 %v2794
        %v2854 = vpop.f32.mrb[0].mxu0
        %v2855 = vadd.f32 %v2757, %v2854
        %v2856 = vpop.f32.mrb[0].mxu0
        %v2857 = vpop.f32.mrb[0].mxu0
        %v2858 = vadd.f32 %v2762, %v2857
        %v2859 = vpop.f32.mrb[0].mxu0
        %2860 = vdwg.mxu0
        %v2861 = vmax.f32 %v2831, 0.0
        %v2862 = vmax.f32 %v2834, 0.0
        %v2863 = vmax.f32 %v2839, 0.0
        %v2864 = vmax.f32 %v2842, 0.0
        %v2865 = vmax.f32 %v2847, 0.0
        %v2866 = vmax.f32 %v2850, 0.0
        %v2867 = vmax.f32 %v2855, 0.0
        %v2868 = vmax.f32 %v2858, 0.0
        %v2869 = vadd.f32 %v2086, %v2861
        %v2870 = vadd.f32 %v2087, %v2862
        %v2871 = vadd.f32 %v2088, %v2863
        %v2872 = vadd.f32 %v2089, %v2864
        %v2873 = vadd.f32 %v2090, %v2865
        %v2874 = vadd.f32 %v2091, %v2866
        %v2875 = vadd.f32 %v2092, %v2867
        %v2876 = vadd.f32 %v2093, %v2868
        %s2877 = scalar_lea.vmem %s190, 128 [#allocation2]
        %2878 = vst [vmem:[%s2877] sm:$0xff] %v2869
        %2879 = vst [vmem:[%s2877 + $0x8] sm:$0xff] %v2870
        %2880 = vst [vmem:[%s2877 + $0x10] sm:$0xff] %v2871
        %2881 = vst [vmem:[%s2877 + $0x18] sm:$0xff] %v2872
        %2882 = vst [vmem:[%s2877 + $0x20] sm:$0xff] %v2873
        %2883 = vst [vmem:[%s2877 + $0x28] sm:$0xff] %v2874
        %2884 = vst [vmem:[%s2877 + $0x30] sm:$0xff] %v2875
        %2885 = vst [vmem:[%s2877 + $0x38] sm:$0xff] %v2876
        %s2886 = scalar_lea.vmem %s2, 120
        %v2887 = vld [vmem:[%s2886] sm:$0xf]
        %v2888 = vld [vmem:[%s2886 + $0x4] sm:$0xf]
        %v2889 = vld [vmem:[%s2886 + $0x8] sm:$0xf]
        %v2890 = vld [vmem:[%s2886 + $0xc] sm:$0xf]
        %v2891 = vld [vmem:[%s2886 + $0x10] sm:$0xf]
        %v2892 = vld [vmem:[%s2886 + $0x14] sm:$0xf]
        %v2893 = vld [vmem:[%s2886 + $0x18] sm:$0xf]
        %v2894 = vld [vmem:[%s2886 + $0x1c] sm:$0xf]
        %v2895 = vld [vmem:[%s2886 + $0x20] sm:$0xf]
        %v2896 = vld [vmem:[%s2886 + $0x24] sm:$0xf]
        %v2897 = vpack.c.bf16 %v2870, %v2869
        %v2898 = vpack.c.bf16 %v2872, %v2871
        %v2899 = vpack.c.bf16 %v2874, %v2873
        %v2900 = vpack.c.bf16 %v2876, %v2875
        %v2911 = vunpack.c.l.b16 %v2887
        %v2912 = vunpack.c.l.b16 %v2888
        %v2913 = vunpack.c.l.b16 %v2889
        %v2914 = vunpack.c.l.b16 %v2890
        %v2915 = vunpack.c.l.b16 %v2891
        %v2916 = vunpack.c.l.b16 %v2892
        %v2917 = vunpack.c.l.b16 %v2893
        %v2918 = vunpack.c.l.b16 %v2894
        %v2919 = vunpack.c.l.b16 %v2895
        %v2920 = vunpack.c.l.b16 %v2896
        %v2921 = vpack.c.b16 %v2912, %v2911
        %v2922 = vpack.c.b16 %v2914, %v2913
        %v2923 = vpack.c.b16 %v2916, %v2915
        %v2924 = vpack.c.b16 %v2918, %v2917
        %v2925 = vpack.c.b16 %v2920, %v2919
        %v2927 = vsel %vm285, %v2921, 0
        %v2930 = vsel %vm285, %v2922, 0
        %v2933 = vsel %vm285, %v2923, 0
        %v2936 = vsel %vm285, %v2924, 0
        %v2939 = vsel %vm285, %v2925, 0
        %2941 = vmatprep.subr.bf16.mxu0 0
        %2942 = vmatpush1.bf16.msra.mxu0 %v2897
        %2943 = vmatprep.subr.bf16.mxu0 0
        %2944 = vmatpush1.bf16.msra.mxu0 %v2898
        %2945 = vmatprep.subr.bf16.mxu0 0
        %2946 = vmatpush1.bf16.msra.mxu0 %v2899
        %2947 = vmatprep.subr.bf16.mxu0 0
        %2948 = vmatpush1.bf16.msra.mxu0 %v2900
        %2949 = vmatprep.subr.bf16.mxu0 0
        %2950 = vmatpush1.bf16.msra.mxu0 0
        %2951 = vmatprep.subr.bf16.mxu0 0
        %2952 = vmatpush1.bf16.msra.mxu0 0
        %2953 = vmatprep.subr.bf16.mxu0 0
        %2954 = vmatpush1.bf16.msra.mxu0 0
        %2955 = vmatprep.subr.bf16.mxu0 0
        %2956 = vmatpush1.bf16.msra.mxu0 0
        %2957 = vmatprep.subr.bf16.mxu0 0
        %2958 = vmatpush1.bf16.msra.mxu0 0
        %2959 = vmatprep.subr.bf16.mxu0 0
        %2960 = vmatpush1.bf16.msra.mxu0 0
        %2961 = vmatprep.subr.bf16.mxu0 0
        %2962 = vmatpush1.bf16.msra.mxu0 0
        %2963 = vmatprep.subr.bf16.mxu0 0
        %2964 = vmatpush1.bf16.msra.mxu0 0
        %2965 = vmatprep.subr.bf16.mxu0 0
        %2966 = vmatpush1.bf16.msra.mxu0 0
        %2967 = vmatprep.subr.bf16.mxu0 0
        %2968 = vmatpush1.bf16.msra.mxu0 0
        %2969 = vmatprep.subr.bf16.mxu0 0
        %2970 = vmatpush1.bf16.msra.mxu0 0
        %2971 = vmatprep.subr.bf16.mxu0 0
        %2972 = vmatpush1.bf16.msra.mxu0 0
        %2973 = vmatprep.mubr.bf16.mxu0 0
        %2974 = vmatmul.mubr.bf16.gmra.mrb[0].mxu0 %v2927
        %v2975 = vpop.f32.mrb[0].mxu0
        %v2976 = vadd.f32 0.0, %v2975
        %v2977 = vpop.f32.mrb[0].mxu0
        %v2978 = vpop.f32.mrb[0].mxu0
        %v2979 = vadd.f32 0.0, %v2978
        %v2980 = vpop.f32.mrb[0].mxu0
        %2981 = vmatprep.mubr.bf16.mxu0 0
        %2982 = vmatmul.mubr.bf16.gmra.mrb[0].mxu0 %v2930
        %v2983 = vpop.f32.mrb[0].mxu0
        %v2984 = vadd.f32 0.0, %v2983
        %v2985 = vpop.f32.mrb[0].mxu0
        %v2986 = vpop.f32.mrb[0].mxu0
        %v2987 = vadd.f32 0.0, %v2986
        %v2988 = vpop.f32.mrb[0].mxu0
        %2989 = vmatprep.mubr.bf16.mxu0 0
        %2990 = vmatmul.mubr.bf16.gmra.mrb[0].mxu0 %v2933
        %v2991 = vpop.f32.mrb[0].mxu0
        %v2992 = vadd.f32 0.0, %v2991
        %v2993 = vpop.f32.mrb[0].mxu0
        %v2994 = vpop.f32.mrb[0].mxu0
        %v2995 = vadd.f32 0.0, %v2994
        %v2996 = vpop.f32.mrb[0].mxu0
        %2997 = vmatprep.mubr.bf16.mxu0 0
        %2998 = vmatmul.mubr.bf16.gmra.mrb[0].mxu0 %v2936
        %v2999 = vpop.f32.mrb[0].mxu0
        %v3000 = vadd.f32 0.0, %v2999
        %v3001 = vpop.f32.mrb[0].mxu0
        %v3002 = vpop.f32.mrb[0].mxu0
        %v3003 = vadd.f32 0.0, %v3002
        %v3004 = vpop.f32.mrb[0].mxu0
        %3005 = vmatprep.mubr.bf16.mxu0 0
        %3006 = vmatmul.mubr.bf16.gmra.mrb[0].mxu0 %v2939
        %v3007 = vpop.f32.mrb[0].mxu0
        %v3008 = vadd.f32 0.0, %v3007
        %v3009 = vpop.f32.mrb[0].mxu0
        %v3010 = vpop.f32.mrb[0].mxu0
        %v3011 = vadd.f32 0.0, %v3010
        %v3012 = vpop.f32.mrb[0].mxu0
        %3013 = vdwg.mxu0
        %s3014 = scalar_lea.vmem %s3, 320
        %v3015 = vld [vmem:[%s3014] sm:$0xff]
        %v3016 = vld [vmem:[%s3014 + $0x8] sm:$0xff]
        %v3017 = vld [vmem:[%s3014 + $0x10] sm:$0xff]
        %v3018 = vld [vmem:[%s3014 + $0x18] sm:$0xff]
        %v3019 = vld [vmem:[%s3014 + $0x20] sm:$0xff]
        %v3020 = vld [vmem:[%s3014 + $0x28] sm:$0xff]
        %v3021 = vld [vmem:[%s3014 + $0x30] sm:$0xff]
        %v3022 = vld [vmem:[%s3014 + $0x38] sm:$0xff]
        %3024 = vset.pattern.permute.xlu0 0
        %3025 = vperm.xlu0 %3024, %v3015
        %v3026 = vpop.permute.xlu0 %3025
        %3029 = vset.pattern.permute.xlu0 0
        %3030 = vperm.xlu0 %3029, %v3016
        %v3031 = vpop.permute.xlu0 %3030
        %3034 = vset.pattern.permute.xlu0 0
        %3035 = vperm.xlu0 %3034, %v3017
        %v3036 = vpop.permute.xlu0 %3035
        %3039 = vset.pattern.permute.xlu0 0
        %3040 = vperm.xlu0 %3039, %v3018
        %v3041 = vpop.permute.xlu0 %3040
        %3044 = vset.pattern.permute.xlu0 0
        %3045 = vperm.xlu0 %3044, %v3019
        %v3046 = vpop.permute.xlu0 %3045
        %3049 = vset.pattern.permute.xlu0 0
        %3050 = vperm.xlu0 %3049, %v3020
        %v3051 = vpop.permute.xlu0 %3050
        %3054 = vset.pattern.permute.xlu0 0
        %3055 = vperm.xlu0 %3054, %v3021
        %v3056 = vpop.permute.xlu0 %3055
        %3059 = vset.pattern.permute.xlu0 0
        %3060 = vperm.xlu0 %3059, %v3022
        %v3061 = vpop.permute.xlu0 %3060
        %v3063 = vadd.f32 %v2984, %v3026
        %v3064 = vadd.f32 %v2987, %v3031
        %v3065 = vadd.f32 %v2992, %v3036
        %v3066 = vadd.f32 %v2995, %v3041
        %v3067 = vadd.f32 %v3000, %v3046
        %v3068 = vadd.f32 %v3003, %v3051
        %v3069 = vadd.f32 %v3008, %v3056
        %v3070 = vadd.f32 %v3011, %v3061
        %v3071 = vpack.c.bf16 %v2979, %v2976
        %3072 = vxpose.xlu0.c.b16.start [1/8] %v3071, 128
        %3073 = vxpose.xlu0.c.b16.cont [2/8] 0, 128
        %3074 = vxpose.xlu0.c.b16.cont [3/8] 0, 128
        %3075 = vxpose.xlu0.c.b16.cont [4/8] 0, 128
        %3076 = vxpose.xlu0.c.b16.cont [5/8] 0, 128
        %3077 = vxpose.xlu0.c.b16.cont [6/8] 0, 128
        %3078 = vxpose.xlu0.c.b16.cont [7/8] 0, 128
        %3079 = vxpose.xlu0.c.b16.end [8/8] 0, 128
        %v3080 = vpop.trf.xlu0
        %v3081 = vpop.trf.xlu0
        %v3082 = vpop.trf.xlu0
        %v3083 = vpop.trf.xlu0
        %v3084 = vpop.trf.xlu0
        %v3085 = vpop.trf.xlu0
        %v3086 = vpop.trf.xlu0
        %v3087 = vpop.trf.xlu0
        %v3089 = vsel %vm739, %v3080, 0
        %v3092 = vsel %vm739, %v3081, 0
        %v3095 = vsel %vm739, %v3082, 0
        %v3098 = vsel %vm739, %v3083, 0
        %v3101 = vsel %vm739, %v3084, 0
        %v3104 = vsel %vm739, %v3085, 0
        %v3107 = vsel %vm739, %v3086, 0
        %v3110 = vsel %vm739, %v3087, 0
        %3112 = vmatprep.subr.bf16.mxu0 0
        %3113 = vmatpush1.bf16.msra.mxu0 %v3071
        %3114 = vmatprep.subr.bf16.mxu0 0
        %3115 = vmatpush1.bf16.msra.mxu0 0
        %3116 = vmatprep.subr.bf16.mxu0 0
        %3117 = vmatpush1.bf16.msra.mxu0 0
        %3118 = vmatprep.subr.bf16.mxu0 0
        %3119 = vmatpush1.bf16.msra.mxu0 0
        %3120 = vmatprep.subr.bf16.mxu0 0
        %3121 = vmatpush1.bf16.msra.mxu0 0
        %3122 = vmatprep.subr.bf16.mxu0 0
        %3123 = vmatpush1.bf16.msra.mxu0 0
        %3124 = vmatprep.subr.bf16.mxu0 0
        %3125 = vmatpush1.bf16.msra.mxu0 0
        %3126 = vmatprep.subr.bf16.mxu0 0
        %3127 = vmatpush1.bf16.msra.mxu0 0
        %3128 = vmatprep.subr.bf16.mxu0 0
        %3129 = vmatpush1.bf16.msra.mxu0 0
        %3130 = vmatprep.subr.bf16.mxu0 0
        %3131 = vmatpush1.bf16.msra.mxu0 0
        %3132 = vmatprep.subr.bf16.mxu0 0
        %3133 = vmatpush1.bf16.msra.mxu0 0
        %3134 = vmatprep.subr.bf16.mxu0 0
        %3135 = vmatpush1.bf16.msra.mxu0 0
        %3136 = vmatprep.subr.bf16.mxu0 0
        %3137 = vmatpush1.bf16.msra.mxu0 0
        %3138 = vmatprep.subr.bf16.mxu0 0
        %3139 = vmatpush1.bf16.msra.mxu0 0
        %3140 = vmatprep.subr.bf16.mxu0 0
        %3141 = vmatpush1.bf16.msra.mxu0 0
        %3142 = vmatprep.subr.bf16.mxu0 0
        %3143 = vmatpush1.bf16.msra.mxu0 0
        %3144 = vmatprep.mubr.bf16.mxu0 0
        %3145 = vmatmul.mubr.bf16.gmra.mrb[0].mxu0 %v3089
        %v3146 = vpop.f32.mrb[0].mxu0
        %v3147 = vadd.f32 0.0, %v3146
        %v3148 = vpop.f32.mrb[0].mxu0
        %v3149 = vpop.f32.mrb[0].mxu0
        %v3150 = vadd.f32 0.0, %v3149
        %v3151 = vpop.f32.mrb[0].mxu0
        %3152 = vmatprep.mubr.bf16.mxu0 0
        %3153 = vmatmul.mubr.bf16.gmra.mrb[0].mxu0 %v3092
        %v3154 = vpop.f32.mrb[0].mxu0
        %v3155 = vadd.f32 0.0, %v3154
        %v3156 = vpop.f32.mrb[0].mxu0
        %v3157 = vpop.f32.mrb[0].mxu0
        %v3158 = vadd.f32 0.0, %v3157
        %v3159 = vpop.f32.mrb[0].mxu0
        %3160 = vmatprep.mubr.bf16.mxu0 0
        %3161 = vmatmul.mubr.bf16.gmra.mrb[0].mxu0 %v3095
        %v3162 = vpop.f32.mrb[0].mxu0
        %v3163 = vadd.f32 0.0, %v3162
        %v3164 = vpop.f32.mrb[0].mxu0
        %v3165 = vpop.f32.mrb[0].mxu0
        %v3166 = vadd.f32 0.0, %v3165
        %v3167 = vpop.f32.mrb[0].mxu0
        %3168 = vmatprep.mubr.bf16.mxu0 0
        %3169 = vmatmul.mubr.bf16.gmra.mrb[0].mxu0 %v3098
        %v3170 = vpop.f32.mrb[0].mxu0
        %v3171 = vadd.f32 0.0, %v3170
        %v3172 = vpop.f32.mrb[0].mxu0
        %v3173 = vpop.f32.mrb[0].mxu0
        %v3174 = vadd.f32 0.0, %v3173
        %v3175 = vpop.f32.mrb[0].mxu0
        %3176 = vmatprep.mubr.bf16.mxu0 0
        %3177 = vmatmul.mubr.bf16.gmra.mrb[0].mxu0 %v3101
        %v3178 = vpop.f32.mrb[0].mxu0
        %v3179 = vadd.f32 0.0, %v3178
        %v3180 = vpop.f32.mrb[0].mxu0
        %v3181 = vpop.f32.mrb[0].mxu0
        %v3182 = vadd.f32 0.0, %v3181
        %v3183 = vpop.f32.mrb[0].mxu0
        %3184 = vmatprep.mubr.bf16.mxu0 0
        %3185 = vmatmul.mubr.bf16.gmra.mrb[0].mxu0 %v3104
        %v3186 = vpop.f32.mrb[0].mxu0
        %v3187 = vadd.f32 0.0, %v3186
        %v3188 = vpop.f32.mrb[0].mxu0
        %v3189 = vpop.f32.mrb[0].mxu0
        %v3190 = vadd.f32 0.0, %v3189
        %v3191 = vpop.f32.mrb[0].mxu0
        %3192 = vmatprep.mubr.bf16.mxu0 0
        %3193 = vmatmul.mubr.bf16.gmra.mrb[0].mxu0 %v3107
        %v3194 = vpop.f32.mrb[0].mxu0
        %v3195 = vadd.f32 0.0, %v3194
        %v3196 = vpop.f32.mrb[0].mxu0
        %v3197 = vpop.f32.mrb[0].mxu0
        %v3198 = vadd.f32 0.0, %v3197
        %v3199 = vpop.f32.mrb[0].mxu0
        %3200 = vmatprep.mubr.bf16.mxu0 0
        %3201 = vmatmul.mubr.bf16.gmra.mrb[0].mxu0 %v3110
        %v3202 = vpop.f32.mrb[0].mxu0
        %v3203 = vadd.f32 0.0, %v3202
        %v3204 = vpop.f32.mrb[0].mxu0
        %v3205 = vpop.f32.mrb[0].mxu0
        %v3206 = vadd.f32 0.0, %v3205
        %v3207 = vpop.f32.mrb[0].mxu0
        %3208 = vdwg.mxu0
        %3209 = vmax.xlane.f32.xlu0 %v3147
        %v3210 = vpop.xlane.xlu0 %3209
        %3211 = vmax.xlane.f32.xlu0 %v3150
        %v3212 = vpop.xlane.xlu0 %3211
        %3213 = vmax.xlane.f32.xlu0 %v3155
        %v3214 = vpop.xlane.xlu0 %3213
        %3215 = vmax.xlane.f32.xlu0 %v3158
        %v3216 = vpop.xlane.xlu0 %3215
        %3217 = vmax.xlane.f32.xlu0 %v3163
        %v3218 = vpop.xlane.xlu0 %3217
        %3219 = vmax.xlane.f32.xlu0 %v3166
        %v3220 = vpop.xlane.xlu0 %3219
        %3221 = vmax.xlane.f32.xlu0 %v3171
        %v3222 = vpop.xlane.xlu0 %3221
        %3223 = vmax.xlane.f32.xlu0 %v3174
        %v3224 = vpop.xlane.xlu0 %3223
        %3225 = vmax.xlane.f32.xlu0 %v3179
        %v3226 = vpop.xlane.xlu0 %3225
        %3227 = vmax.xlane.f32.xlu0 %v3182
        %v3228 = vpop.xlane.xlu0 %3227
        %3229 = vmax.xlane.f32.xlu0 %v3187
        %v3230 = vpop.xlane.xlu0 %3229
        %3231 = vmax.xlane.f32.xlu0 %v3190
        %v3232 = vpop.xlane.xlu0 %3231
        %3233 = vmax.xlane.f32.xlu0 %v3195
        %v3234 = vpop.xlane.xlu0 %3233
        %3235 = vmax.xlane.f32.xlu0 %v3198
        %v3236 = vpop.xlane.xlu0 %3235
        %3237 = vmax.xlane.f32.xlu0 %v3203
        %v3238 = vpop.xlane.xlu0 %3237
        %3239 = vmax.xlane.f32.xlu0 %v3206
        %v3240 = vpop.xlane.xlu0 %3239
        %v3241 = vsub.f32 %v3147, %v3210
        %v3242 = vsub.f32 %v3150, %v3212
        %v3243 = vsub.f32 %v3155, %v3214
        %v3244 = vsub.f32 %v3158, %v3216
        %v3245 = vsub.f32 %v3163, %v3218
        %v3246 = vsub.f32 %v3166, %v3220
        %v3247 = vsub.f32 %v3171, %v3222
        %v3248 = vsub.f32 %v3174, %v3224
        %v3249 = vsub.f32 %v3179, %v3226
        %v3250 = vsub.f32 %v3182, %v3228
        %v3251 = vsub.f32 %v3187, %v3230
        %v3252 = vsub.f32 %v3190, %v3232
        %v3253 = vsub.f32 %v3195, %v3234
        %v3254 = vsub.f32 %v3198, %v3236
        %v3255 = vsub.f32 %v3203, %v3238
        %v3256 = vsub.f32 %v3206, %v3240
        %v3257 = vmul.f32 %v3241, 1.442695
        %v3258 = vpow.pop %v3257
        %v3259 = vmul.f32 %v3242, 1.442695
        %v3260 = vpow.pop %v3259
        %v3261 = vmul.f32 %v3243, 1.442695
        %v3262 = vpow.pop %v3261
        %v3263 = vmul.f32 %v3244, 1.442695
        %v3264 = vpow.pop %v3263
        %v3265 = vmul.f32 %v3245, 1.442695
        %v3266 = vpow.pop %v3265
        %v3267 = vmul.f32 %v3246, 1.442695
        %v3268 = vpow.pop %v3267
        %v3269 = vmul.f32 %v3247, 1.442695
        %v3270 = vpow.pop %v3269
        %v3271 = vmul.f32 %v3248, 1.442695
        %v3272 = vpow.pop %v3271
        %v3273 = vmul.f32 %v3249, 1.442695
        %v3274 = vpow.pop %v3273
        %v3275 = vmul.f32 %v3250, 1.442695
        %v3276 = vpow.pop %v3275
        %v3277 = vmul.f32 %v3251, 1.442695
        %v3278 = vpow.pop %v3277
        %v3279 = vmul.f32 %v3252, 1.442695
        %v3280 = vpow.pop %v3279
        %v3281 = vmul.f32 %v3253, 1.442695
        %v3282 = vpow.pop %v3281
        %v3283 = vmul.f32 %v3254, 1.442695
        %v3284 = vpow.pop %v3283
        %v3285 = vmul.f32 %v3255, 1.442695
        %v3286 = vpow.pop %v3285
        %v3287 = vmul.f32 %v3256, 1.442695
        %v3288 = vpow.pop %v3287
        %3289 = vadd.xlane.f32.xlu0 %v3258
        %v3290 = vpop.xlane.xlu0 %3289
        %3291 = vadd.xlane.f32.xlu0 %v3260
        %v3292 = vpop.xlane.xlu0 %3291
        %3293 = vadd.xlane.f32.xlu0 %v3262
        %v3294 = vpop.xlane.xlu0 %3293
        %3295 = vadd.xlane.f32.xlu0 %v3264
        %v3296 = vpop.xlane.xlu0 %3295
        %3297 = vadd.xlane.f32.xlu0 %v3266
        %v3298 = vpop.xlane.xlu0 %3297
        %3299 = vadd.xlane.f32.xlu0 %v3268
        %v3300 = vpop.xlane.xlu0 %3299
        %3301 = vadd.xlane.f32.xlu0 %v3270
        %v3302 = vpop.xlane.xlu0 %3301
        %3303 = vadd.xlane.f32.xlu0 %v3272
        %v3304 = vpop.xlane.xlu0 %3303
        %3305 = vadd.xlane.f32.xlu0 %v3274
        %v3306 = vpop.xlane.xlu0 %3305
        %3307 = vadd.xlane.f32.xlu0 %v3276
        %v3308 = vpop.xlane.xlu0 %3307
        %3309 = vadd.xlane.f32.xlu0 %v3278
        %v3310 = vpop.xlane.xlu0 %3309
        %3311 = vadd.xlane.f32.xlu0 %v3280
        %v3312 = vpop.xlane.xlu0 %3311
        %3313 = vadd.xlane.f32.xlu0 %v3282
        %v3314 = vpop.xlane.xlu0 %3313
        %3315 = vadd.xlane.f32.xlu0 %v3284
        %v3316 = vpop.xlane.xlu0 %3315
        %3317 = vadd.xlane.f32.xlu0 %v3286
        %v3318 = vpop.xlane.xlu0 %3317
        %3319 = vadd.xlane.f32.xlu0 %v3288
        %v3320 = vpop.xlane.xlu0 %3319
        %v3321 = vrcp.pop %v3290
        %v3322 = vmul.f32 1.0, %v3321
        %v3323 = vrcp.pop %v3292
        %v3324 = vmul.f32 1.0, %v3323
        %v3325 = vrcp.pop %v3294
        %v3326 = vmul.f32 1.0, %v3325
        %v3327 = vrcp.pop %v3296
        %v3328 = vmul.f32 1.0, %v3327
        %v3329 = vrcp.pop %v3298
        %v3330 = vmul.f32 1.0, %v3329
        %v3331 = vrcp.pop %v3300
        %v3332 = vmul.f32 1.0, %v3331
        %v3333 = vrcp.pop %v3302
        %v3334 = vmul.f32 1.0, %v3333
        %v3335 = vrcp.pop %v3304
        %v3336 = vmul.f32 1.0, %v3335
        %v3337 = vrcp.pop %v3306
        %v3338 = vmul.f32 1.0, %v3337
        %v3339 = vrcp.pop %v3308
        %v3340 = vmul.f32 1.0, %v3339
        %v3341 = vrcp.pop %v3310
        %v3342 = vmul.f32 1.0, %v3341
        %v3343 = vrcp.pop %v3312
        %v3344 = vmul.f32 1.0, %v3343
        %v3345 = vrcp.pop %v3314
        %v3346 = vmul.f32 1.0, %v3345
        %v3347 = vrcp.pop %v3316
        %v3348 = vmul.f32 1.0, %v3347
        %v3349 = vrcp.pop %v3318
        %v3350 = vmul.f32 1.0, %v3349
        %v3351 = vrcp.pop %v3320
        %v3352 = vmul.f32 1.0, %v3351
        %v3353 = vmul.f32 %v3258, %v3322
        %v3354 = vmul.f32 %v3260, %v3324
        %v3355 = vmul.f32 %v3262, %v3326
        %v3356 = vmul.f32 %v3264, %v3328
        %v3357 = vmul.f32 %v3266, %v3330
        %v3358 = vmul.f32 %v3268, %v3332
        %v3359 = vmul.f32 %v3270, %v3334
        %v3360 = vmul.f32 %v3272, %v3336
        %v3361 = vmul.f32 %v3274, %v3338
        %v3362 = vmul.f32 %v3276, %v3340
        %v3363 = vmul.f32 %v3278, %v3342
        %v3364 = vmul.f32 %v3280, %v3344
        %v3365 = vmul.f32 %v3282, %v3346
        %v3366 = vmul.f32 %v3284, %v3348
        %v3367 = vmul.f32 %v3286, %v3350
        %v3368 = vmul.f32 %v3288, %v3352
        %v3369 = vadd.f32 %v3353, %v3354
        %v3370 = vadd.f32 %v3369, %v3355
        %v3371 = vadd.f32 %v3370, %v3356
        %v3372 = vadd.f32 %v3371, %v3357
        %v3373 = vadd.f32 %v3372, %v3358
        %v3374 = vadd.f32 %v3373, %v3359
        %v3375 = vadd.f32 %v3374, %v3360
        %v3376 = vadd.f32 %v3375, %v3361
        %v3377 = vadd.f32 %v3376, %v3362
        %v3378 = vadd.f32 %v3377, %v3363
        %v3379 = vadd.f32 %v3378, %v3364
        %v3380 = vadd.f32 %v3379, %v3365
        %v3381 = vadd.f32 %v3380, %v3366
        %v3382 = vadd.f32 %v3381, %v3367
        %v3383 = vadd.f32 %v3382, %v3368
        %v3384 = vrot.slane %v3383, 4
        %v3385 = vadd.f32 %v3383, %v3384
        %v3386 = vrot.slane %v3385, 2
        %v3387 = vadd.f32 %v3385, %v3386
        %v3388 = vrot.slane %v3387, 1
        %v3389 = vadd.f32 %v3387, %v3388
        %v3390 = vadd.f32 %v3389, 1e-09
        %v3391 = vrcp.pop %v3390
        %v3392 = vpack.c.bf16 %v3064, %v3063
        %v3393 = vpack.c.bf16 %v3066, %v3065
        %v3394 = vpack.c.bf16 %v3068, %v3067
        %v3395 = vpack.c.bf16 %v3070, %v3069
        %v3396 = vpack.c.bf16 %v3354, %v3353
        %v3397 = vpack.c.bf16 %v3356, %v3355
        %v3398 = vpack.c.bf16 %v3358, %v3357
        %v3399 = vpack.c.bf16 %v3360, %v3359
        %v3400 = vpack.c.bf16 %v3362, %v3361
        %v3401 = vpack.c.bf16 %v3364, %v3363
        %v3402 = vpack.c.bf16 %v3366, %v3365
        %v3403 = vpack.c.bf16 %v3368, %v3367
        %3404 = vmatprep.subr.bf16.mxu0 0
        %3405 = vmatpush1.bf16.msra.mxu0 %v3396
        %3406 = vmatprep.subr.bf16.mxu0 0
        %3407 = vmatpush1.bf16.msra.mxu0 %v3397
        %3408 = vmatprep.subr.bf16.mxu0 0
        %3409 = vmatpush1.bf16.msra.mxu0 %v3398
        %3410 = vmatprep.subr.bf16.mxu0 0
        %3411 = vmatpush1.bf16.msra.mxu0 %v3399
        %3412 = vmatprep.subr.bf16.mxu0 0
        %3413 = vmatpush1.bf16.msra.mxu0 %v3400
        %3414 = vmatprep.subr.bf16.mxu0 0
        %3415 = vmatpush1.bf16.msra.mxu0 %v3401
        %3416 = vmatprep.subr.bf16.mxu0 0
        %3417 = vmatpush1.bf16.msra.mxu0 %v3402
        %3418 = vmatprep.subr.bf16.mxu0 0
        %3419 = vmatpush1.bf16.msra.mxu0 %v3403
        %3420 = vmatprep.subr.bf16.mxu0 0
        %3421 = vmatpush1.bf16.msra.mxu0 0
        %3422 = vmatprep.subr.bf16.mxu0 0
        %3423 = vmatpush1.bf16.msra.mxu0 0
        %3424 = vmatprep.subr.bf16.mxu0 0
        %3425 = vmatpush1.bf16.msra.mxu0 0
        %3426 = vmatprep.subr.bf16.mxu0 0
        %3427 = vmatpush1.bf16.msra.mxu0 0
        %3428 = vmatprep.subr.bf16.mxu0 0
        %3429 = vmatpush1.bf16.msra.mxu0 0
        %3430 = vmatprep.subr.bf16.mxu0 0
        %3431 = vmatpush1.bf16.msra.mxu0 0
        %3432 = vmatprep.subr.bf16.mxu0 0
        %3433 = vmatpush1.bf16.msra.mxu0 0
        %3434 = vmatprep.subr.bf16.mxu0 0
        %3435 = vmatpush1.bf16.msra.mxu0 0
        %3436 = vmatprep.mubr.bf16.mxu0 0
        %3437 = vmatmul.mubr.bf16.gmra.mrb[0].mxu0 %v3392
        %v3438 = vpop.f32.mrb[0].mxu0
        %v3439 = vadd.f32 0.0, %v3438
        %v3440 = vpop.f32.mrb[0].mxu0
        %v3441 = vpop.f32.mrb[0].mxu0
        %v3442 = vadd.f32 0.0, %v3441
        %v3443 = vpop.f32.mrb[0].mxu0
        %3444 = vmatprep.mubr.bf16.mxu0 0
        %3445 = vmatmul.mubr.bf16.gmra.mrb[0].mxu0 %v3393
        %v3446 = vpop.f32.mrb[0].mxu0
        %v3447 = vadd.f32 0.0, %v3446
        %v3448 = vpop.f32.mrb[0].mxu0
        %v3449 = vpop.f32.mrb[0].mxu0
        %v3450 = vadd.f32 0.0, %v3449
        %v3451 = vpop.f32.mrb[0].mxu0
        %3452 = vmatprep.mubr.bf16.mxu0 0
        %3453 = vmatmul.mubr.bf16.gmra.mrb[0].mxu0 %v3394
        %v3454 = vpop.f32.mrb[0].mxu0
        %v3455 = vadd.f32 0.0, %v3454
        %v3456 = vpop.f32.mrb[0].mxu0
        %v3457 = vpop.f32.mrb[0].mxu0
        %v3458 = vadd.f32 0.0, %v3457
        %v3459 = vpop.f32.mrb[0].mxu0
        %3460 = vmatprep.mubr.bf16.mxu0 0
        %3461 = vmatmul.mubr.bf16.gmra.mrb[0].mxu0 %v3395
        %v3462 = vpop.f32.mrb[0].mxu0
        %v3463 = vadd.f32 0.0, %v3462
        %v3464 = vpop.f32.mrb[0].mxu0
        %v3465 = vpop.f32.mrb[0].mxu0
        %v3466 = vadd.f32 0.0, %v3465
        %v3467 = vpop.f32.mrb[0].mxu0
        %3468 = vdwg.mxu0
        %v3469 = vmul.f32 %v3439, %v3391
        %v3470 = vmul.f32 %v3442, %v3391
        %v3471 = vmul.f32 %v3447, %v3391
        %v3472 = vmul.f32 %v3450, %v3391
        %v3473 = vmul.f32 %v3455, %v3391
        %v3474 = vmul.f32 %v3458, %v3391
        %v3475 = vmul.f32 %v3463, %v3391
        %v3476 = vmul.f32 %v3466, %v3391
        %s3477 = scalar_lea.vmem %s1, 160
        %v3478 = vld [vmem:[%s3477] sm:$0xf]
        %v3479 = vld [vmem:[%s3477 + $0x4] sm:$0xf]
        %v3480 = vld [vmem:[%s3477 + $0x8] sm:$0xf]
        %v3481 = vld [vmem:[%s3477 + $0xc] sm:$0xf]
        %v3482 = vld [vmem:[%s3477 + $0x10] sm:$0xf]
        %v3483 = vld [vmem:[%s3477 + $0x14] sm:$0xf]
        %v3484 = vld [vmem:[%s3477 + $0x18] sm:$0xf]
        %v3485 = vld [vmem:[%s3477 + $0x1c] sm:$0xf]
        %v3486 = vsub.f32 %v2869, %v3469
        %v3487 = vsub.f32 %v2870, %v3470
        %v3488 = vsub.f32 %v2871, %v3471
        %v3489 = vsub.f32 %v2872, %v3472
        %v3490 = vsub.f32 %v2873, %v3473
        %v3491 = vsub.f32 %v2874, %v3474
        %v3492 = vsub.f32 %v2875, %v3475
        %v3493 = vsub.f32 %v2876, %v3476
        %v3494 = vpack.c.bf16 %v3487, %v3486
        %v3495 = vpack.c.bf16 %v3489, %v3488
        %v3496 = vpack.c.bf16 %v3491, %v3490
        %v3497 = vpack.c.bf16 %v3493, %v3492
        %s3498 = scalar_lea.vmem %s3, 576
        %v3499 = vld [vmem:[%s3498] sm:$0xff]
        %v3500 = vld [vmem:[%s3498 + $0x8] sm:$0xff]
        %v3501 = vld [vmem:[%s3498 + $0x10] sm:$0xff]
        %v3502 = vld [vmem:[%s3498 + $0x18] sm:$0xff]
        %v3503 = vld [vmem:[%s3498 + $0x20] sm:$0xff]
        %v3504 = vld [vmem:[%s3498 + $0x28] sm:$0xff]
        %v3505 = vld [vmem:[%s3498 + $0x30] sm:$0xff]
        %v3506 = vld [vmem:[%s3498 + $0x38] sm:$0xff]
        %3508 = vset.pattern.permute.xlu0 0
        %3509 = vperm.xlu0 %3508, %v3499
        %v3510 = vpop.permute.xlu0 %3509
        %3513 = vset.pattern.permute.xlu0 0
        %3514 = vperm.xlu0 %3513, %v3500
        %v3515 = vpop.permute.xlu0 %3514
        %3518 = vset.pattern.permute.xlu0 0
        %3519 = vperm.xlu0 %3518, %v3501
        %v3520 = vpop.permute.xlu0 %3519
        %3523 = vset.pattern.permute.xlu0 0
        %3524 = vperm.xlu0 %3523, %v3502
        %v3525 = vpop.permute.xlu0 %3524
        %3528 = vset.pattern.permute.xlu0 0
        %3529 = vperm.xlu0 %3528, %v3503
        %v3530 = vpop.permute.xlu0 %3529
        %3533 = vset.pattern.permute.xlu0 0
        %3534 = vperm.xlu0 %3533, %v3504
        %v3535 = vpop.permute.xlu0 %3534
        %3538 = vset.pattern.permute.xlu0 0
        %3539 = vperm.xlu0 %3538, %v3505
        %v3540 = vpop.permute.xlu0 %3539
        %3543 = vset.pattern.permute.xlu0 0
        %3544 = vperm.xlu0 %3543, %v3506
        %v3545 = vpop.permute.xlu0 %3544
        %v3555 = vunpack.c.l.b16 %v3478
        %v3556 = vunpack.c.l.b16 %v3479
        %v3557 = vunpack.c.l.b16 %v3480
        %v3558 = vunpack.c.l.b16 %v3481
        %v3559 = vunpack.c.l.b16 %v3482
        %v3560 = vunpack.c.l.b16 %v3483
        %v3561 = vunpack.c.l.b16 %v3484
        %v3562 = vunpack.c.l.b16 %v3485
        %v3563 = vpack.c.b16 %v3556, %v3555
        %v3564 = vpack.c.b16 %v3558, %v3557
        %v3565 = vpack.c.b16 %v3560, %v3559
        %v3566 = vpack.c.b16 %v3562, %v3561
        %v3568 = vsel %vm285, %v3563, 0
        %v3571 = vsel %vm285, %v3564, 0
        %v3574 = vsel %vm285, %v3565, 0
        %v3577 = vsel %vm285, %v3566, 0
        %3579 = vmatprep.subr.bf16.mxu0 0
        %3580 = vmatpush1.bf16.msra.mxu0 %v3494
        %3581 = vmatprep.subr.bf16.mxu0 0
        %3582 = vmatpush1.bf16.msra.mxu0 %v3495
        %3583 = vmatprep.subr.bf16.mxu0 0
        %3584 = vmatpush1.bf16.msra.mxu0 %v3496
        %3585 = vmatprep.subr.bf16.mxu0 0
        %3586 = vmatpush1.bf16.msra.mxu0 %v3497
        %3587 = vmatprep.subr.bf16.mxu0 0
        %3588 = vmatpush1.bf16.msra.mxu0 0
        %3589 = vmatprep.subr.bf16.mxu0 0
        %3590 = vmatpush1.bf16.msra.mxu0 0
        %3591 = vmatprep.subr.bf16.mxu0 0
        %3592 = vmatpush1.bf16.msra.mxu0 0
        %3593 = vmatprep.subr.bf16.mxu0 0
        %3594 = vmatpush1.bf16.msra.mxu0 0
        %3595 = vmatprep.subr.bf16.mxu0 0
        %3596 = vmatpush1.bf16.msra.mxu0 0
        %3597 = vmatprep.subr.bf16.mxu0 0
        %3598 = vmatpush1.bf16.msra.mxu0 0
        %3599 = vmatprep.subr.bf16.mxu0 0
        %3600 = vmatpush1.bf16.msra.mxu0 0
        %3601 = vmatprep.subr.bf16.mxu0 0
        %3602 = vmatpush1.bf16.msra.mxu0 0
        %3603 = vmatprep.subr.bf16.mxu0 0
        %3604 = vmatpush1.bf16.msra.mxu0 0
        %3605 = vmatprep.subr.bf16.mxu0 0
        %3606 = vmatpush1.bf16.msra.mxu0 0
        %3607 = vmatprep.subr.bf16.mxu0 0
        %3608 = vmatpush1.bf16.msra.mxu0 0
        %3609 = vmatprep.subr.bf16.mxu0 0
        %3610 = vmatpush1.bf16.msra.mxu0 0
        %3611 = vmatprep.mubr.bf16.mxu0 0
        %3612 = vmatmul.mubr.bf16.gmra.mrb[0].mxu0 %v3568
        %v3613 = vpop.f32.mrb[0].mxu0
        %v3614 = vadd.f32 %v3510, %v3613
        %v3615 = vpop.f32.mrb[0].mxu0
        %v3616 = vpop.f32.mrb[0].mxu0
        %v3617 = vadd.f32 %v3515, %v3616
        %v3618 = vpop.f32.mrb[0].mxu0
        %3619 = vmatprep.mubr.bf16.mxu0 0
        %3620 = vmatmul.mubr.bf16.gmra.mrb[0].mxu0 %v3571
        %v3621 = vpop.f32.mrb[0].mxu0
        %v3622 = vadd.f32 %v3520, %v3621
        %v3623 = vpop.f32.mrb[0].mxu0
        %v3624 = vpop.f32.mrb[0].mxu0
        %v3625 = vadd.f32 %v3525, %v3624
        %v3626 = vpop.f32.mrb[0].mxu0
        %3627 = vmatprep.mubr.bf16.mxu0 0
        %3628 = vmatmul.mubr.bf16.gmra.mrb[0].mxu0 %v3574
        %v3629 = vpop.f32.mrb[0].mxu0
        %v3630 = vadd.f32 %v3530, %v3629
        %v3631 = vpop.f32.mrb[0].mxu0
        %v3632 = vpop.f32.mrb[0].mxu0
        %v3633 = vadd.f32 %v3535, %v3632
        %v3634 = vpop.f32.mrb[0].mxu0
        %3635 = vmatprep.mubr.bf16.mxu0 0
        %3636 = vmatmul.mubr.bf16.gmra.mrb[0].mxu0 %v3577
        %v3637 = vpop.f32.mrb[0].mxu0
        %v3638 = vadd.f32 %v3540, %v3637
        %v3639 = vpop.f32.mrb[0].mxu0
        %v3640 = vpop.f32.mrb[0].mxu0
        %v3641 = vadd.f32 %v3545, %v3640
        %v3642 = vpop.f32.mrb[0].mxu0
        %3643 = vdwg.mxu0
        %v3644 = vmax.f32 %v3614, 0.0
        %v3645 = vmax.f32 %v3617, 0.0
        %v3646 = vmax.f32 %v3622, 0.0
        %v3647 = vmax.f32 %v3625, 0.0
        %v3648 = vmax.f32 %v3630, 0.0
        %v3649 = vmax.f32 %v3633, 0.0
        %v3650 = vmax.f32 %v3638, 0.0
        %v3651 = vmax.f32 %v3641, 0.0
        %v3652 = vadd.f32 %v2869, %v3644
        %v3653 = vadd.f32 %v2870, %v3645
        %v3654 = vadd.f32 %v2871, %v3646
        %v3655 = vadd.f32 %v2872, %v3647
        %v3656 = vadd.f32 %v2873, %v3648
        %v3657 = vadd.f32 %v2874, %v3649
        %v3658 = vadd.f32 %v2875, %v3650
        %v3659 = vadd.f32 %v2876, %v3651
        %s3660 = scalar_lea.vmem %s190, 192 [#allocation2]
        %3661 = vst [vmem:[%s3660] sm:$0xff] %v3652
        %3662 = vst [vmem:[%s3660 + $0x8] sm:$0xff] %v3653
        %3663 = vst [vmem:[%s3660 + $0x10] sm:$0xff] %v3654
        %3664 = vst [vmem:[%s3660 + $0x18] sm:$0xff] %v3655
        %3665 = vst [vmem:[%s3660 + $0x20] sm:$0xff] %v3656
        %3666 = vst [vmem:[%s3660 + $0x28] sm:$0xff] %v3657
        %3667 = vst [vmem:[%s3660 + $0x30] sm:$0xff] %v3658
        %3668 = vst [vmem:[%s3660 + $0x38] sm:$0xff] %v3659
        %s3669 = sand.u32 %s115, 1
        %s3670 = scalar_lea.sflag [#allocation3], %s3669
        %s3671 = sand.u32 %s115, 1
        %s3672 = smul.addr %s3671, 256
        %s3673 = scalar_lea.vmem [#allocation2], %s3672
        // Predicated region
        $region37: #{tpu_custom_call.1} parent=35 // pred_check
          %p3674 = pneg %p125
        $region38: #{tpu_custom_call.1} parent=35 // pred_check_branch
          %3676 = sbr.rel (%p3674) target = $region40
        $region39: #{tpu_custom_call.1} parent=35 // pred_region
          %s3678 = ssub.s32 4096, 4096
          %3679 = vsyncadd %s3670, %s3678
          %s3680 = smul.addr %s18, 32
          %s3681 = smul.addr %s3680, 128
          %s3682 = scalar_lea.hbm %s4, %s3681
          %s3683 = sshll.u32 %s3673, 4
          %s3684 = int_to_ptr.vmem [resolvable:$true] %s3683
          %3689 = dma.vmem_to_hbm [thread:$0]  %s3684, 4096, %s3682, %s3670, 128, 128, 8
        $region40: #{tpu_custom_call.1} parent=35 // pred_fallthru
          _
      $region36: #{tpu_custom_call.1} parent=5 // pred_fallthru
        _
      %p3690 = scmp.le.s32.totalorder 2, %s13
      // Predicated region
      $region41: #{tpu_custom_call.1} parent=5 // pred_check
        %p3691 = pneg %p3690
      $region42: #{tpu_custom_call.1} parent=5 // pred_check_branch
        %3693 = sbr.rel (%p3691) target = $region44
      $region43: #{tpu_custom_call.1} parent=5 // pred_region
        %s3694 = ssub.s32 %s13, 2
        // Predicated region
        $region45: #{tpu_custom_call.1} parent=43 // pred_check
          %p3695 = pneg %p131
        $region46: #{tpu_custom_call.1} parent=43 // pred_check_branch
          %3697 = sbr.rel (%p3695) target = $region48
        $region47: #{tpu_custom_call.1} parent=43 // pred_region
          %s3698 = sand.u32 %s116, 1
          %s3699 = scalar_lea.sflag [#allocation3], %s3698
          %s3700 = sand.u32 %s116, 1
          %s3701 = smul.addr %s3700, 256
          %s3702 = scalar_lea.vmem [#allocation2], %s3701
          %3703 = dma.done %s3699, 4096
        $region48: #{tpu_custom_call.1} parent=43 // pred_fallthru
          _
      $region44: #{tpu_custom_call.1} parent=5 // pred_fallthru
        _
    $region6: #{tpu_custom_call.1} parent=1 // loop_footer
      %s17 = sadd.s32 1, %s13
    $region7: #{tpu_custom_call.1} parent=1 // loop_footer_branch
      %12 = sbr.rel target = $region3
    $region8: #{tpu_custom_call.1} parent=1 // loop_exit
      _
    %3704 = vsyncpa [#allocation3], 1
    %s3705 = scalar_lea.sflag [#allocation3], 1
    %3706 = vsyncpa %s3705, 1

</llo_original>
